<compile_context>
chip_gen: v7x
topology: tpu7x:2x2x1
jax: 0.10.0
libtpu: 0.0.40
codegen_flags: <defaults>
</compile_context>

<pallas_src>
import jax
import jax.numpy as jnp
from jax.experimental import pallas as pl
from jax.experimental.pallas import tpu as pltpu

# ---------------- hyperparameters (small, synthetic) ----------------
VOCAB_SIZE = 64
MELODY_EMBEDDING_SIZE = 32
HIDDEN_SIZE_1 = 32
HIDDEN_SIZE_2 = 32
NUM_LAYERS = 2
BATCH = 2
SEQ_LEN = 8


# ---------------- fused Pallas kernel ----------------
def _lofi_kernel(mel_ref, emb_ref,
                 wih1_ref, whh1_ref, b1_ref,        # layer 1, both directions fused
                 wih2_ref, whh2_ref, b2_ref,        # layer 2, backward direction only
                 wlin_ref, blin_ref, wout_ref, bout_ref,
                 out_ref,
                 l1f_sc, l1b_sc):
    B, V = out_ref.shape
    TB = mel_ref.shape[0]
    T = TB // B
    H4 = wih1_ref.shape[1] // 2          # 4 * hidden
    H = H4 // 4

    def cell(gates, c):
        # PyTorch gate order: i, f, g, o
        i = jax.nn.sigmoid(gates[:, 0 * H:1 * H])
        f = jax.nn.sigmoid(gates[:, 1 * H:2 * H])
        g = jnp.tanh(gates[:, 2 * H:3 * H])
        o = jax.nn.sigmoid(gates[:, 3 * H:4 * H])
        c_new = f * c + i * g
        return o * jnp.tanh(c_new), c_new

    # ---- embedding lookup as one-hot matmul (exact; MXU-friendly) ----
    ids = mel_ref[...]                                                     # (T*B, 1) int32
    onehot = (jax.lax.broadcasted_iota(jnp.int32, (TB, V), 1) == ids
              ).astype(jnp.float32)                                        # (T*B, V)
    x_flat = jnp.dot(onehot, emb_ref[...],
                     preferred_element_type=jnp.float32)                   # (T*B, E)

    # ---- layer 1: hoisted input projection for BOTH directions (8H=256 wide) ----
    xp1 = jnp.dot(x_flat, wih1_ref[...],
                  preferred_element_type=jnp.float32) + b1_ref[...]        # (T*B, 8H)
    whh1 = whh1_ref[...]                                                   # (2H, 8H) block-diag

    zeros = jnp.zeros((B, H), jnp.float32)
    h_f, c_f, h_b, c_b = zeros, zeros, zeros, zeros
    for t in range(T):                      # fully unrolled (T = 8, compile-time)
        hg = jnp.dot(jnp.concatenate([h_f, h_b], axis=1), whh1,
                     preferred_element_type=jnp.float32)                   # (B, 8H)
        g_f = xp1[t * B:(t + 1) * B, :H4] + hg[:, :H4]                     # fwd reads x[t]
        g_b = xp1[(T - 1 - t) * B:(T - t) * B, H4:] + hg[:, H4:]           # bwd reads x[T-1-t]
        h_f, c_f = cell(g_f, c_f)
        h_b, c_b = cell(g_b, c_b)
        l1f_sc[pl.ds(t * B, B), :] = h_f                                   # time-aligned
        l1b_sc[pl.ds((T - 1 - t) * B, B), :] = h_b                         # time-aligned

    l1_f = l1f_sc[...]                                                     # (T*B, H)
    l1_b = l1b_sc[...]                                                     # (T*B, H)

    # ---- layer 2 (backward direction only feeds hidden_lstm[-1]) ----
    wih2 = wih2_ref[...]                                                   # (2H, 4H)
    xp2 = (jnp.dot(l1_f, wih2[:H, :], preferred_element_type=jnp.float32)
           + jnp.dot(l1_b, wih2[H:, :], preferred_element_type=jnp.float32)
           + b2_ref[...])                                                  # (T*B, 4H)
    whh2 = whh2_ref[...]                                                   # (H, 4H)

    h2, c2 = zeros, zeros
    for t in range(T):                      # reversed time, fully unrolled
        s = T - 1 - t
        gates = xp2[s * B:(s + 1) * B, :] + jnp.dot(
            h2, whh2, preferred_element_type=jnp.float32)
        h2, c2 = cell(gates, c2)

    # ---- head: linear (H -> H2) then output (H2 -> vocab) ----
    z = jnp.dot(h2, wlin_ref[...], preferred_element_type=jnp.float32) + blin_ref[...]
    out_ref[...] = jnp.dot(z, wout_ref[...],
                           preferred_element_type=jnp.float32) + bout_ref[...]


# ---------------- wrapper: weight packing + single pallas_call ----------------
def lofi_lstm_forward(params, melody):
    B, T = melody.shape
    H = HIDDEN_SIZE_1
    V = VOCAB_SIZE
    p0, p1 = params["lstm"]

    # Layer 1: both directions share the same input, so concatenate the gate
    # columns -> one (E, 8H) input projection and one (2H, 8H) block-diagonal
    # recurrent matrix for the fused [h_f | h_b] matmul.
    wih1 = jnp.concatenate([p0["w_ih_f"].T, p0["w_ih_b"].T], axis=1)        # (E, 8H)
    b1 = jnp.concatenate([p0["b_ih_f"] + p0["b_hh_f"],
                          p0["b_ih_b"] + p0["b_hh_b"]]).reshape(1, 8 * H)
    whh1 = jnp.zeros((2 * H, 8 * H), jnp.float32)
    whh1 = whh1.at[:H, :4 * H].set(p0["w_hh_f"].T)
    whh1 = whh1.at[H:, 4 * H:].set(p0["w_hh_b"].T)

    # Layer 2: only the backward direction is needed (hidden_lstm[-1]).
    wih2_b = p1["w_ih_b"].T                                                 # (2H, 4H)
    whh2_b = p1["w_hh_b"].T                                                 # (H, 4H)
    b2_b = (p1["b_ih_b"] + p1["b_hh_b"]).reshape(1, 4 * H)

    # Time-major token ids, row = t * B + b.
    mel_tm = melody.T.reshape(T * B, 1).astype(jnp.int32)

    return pl.pallas_call(
        _lofi_kernel,
        out_shape=jax.ShapeDtypeStruct((B, V), jnp.float32),
        scratch_shapes=[
            pltpu.VMEM((T * B, H), jnp.float32),   # layer-1 fwd outputs (time-aligned)
            pltpu.VMEM((T * B, H), jnp.float32),   # layer-1 bwd outputs (time-aligned)
        ],
    )(mel_tm, params["embedding"], wih1, whh1, b1,
      wih2_b, whh2_b, b2_b,
      params["w_lin"].T, params["b_lin"].reshape(1, -1),
      params["w_out"].T, params["b_out"].reshape(1, -1))


# ---------------- pure-JAX reference (lax.scan) for validation ----------------
def _lstm_ref(x_tm, w_ih, w_hh, b_ih, b_hh):
    T, B, _ = x_tm.shape
    H = w_hh.shape[1]

    def step(carry, x_t):
        h, c = carry
        gates = x_t @ w_ih.T + h @ w_hh.T + b_ih + b_hh
        i, f, g, o = jnp.split(gates, 4, axis=-1)
        c = jax.nn.sigmoid(f) * c + jax.nn.sigmoid(i) * jnp.tanh(g)
        h = jax.nn.sigmoid(o) * jnp.tanh(c)
        return (h, c), h

    _, hs = jax.lax.scan(step, (jnp.zeros((B, H)), jnp.zeros((B, H))), x_tm)
    return hs


def lofi_lstm_forward_ref(params, melody):
    emb = jnp.take(params["embedding"], melody, axis=0)
    x = jnp.transpose(emb, (1, 0, 2))
    layer_in = x
    h_bwd_last = None
    for l in range(NUM_LAYERS):
        p = params["lstm"][l]
        out_f = _lstm_ref(layer_in, p["w_ih_f"], p["w_hh_f"], p["b_ih_f"], p["b_hh_f"])
        out_b_rev = _lstm_ref(layer_in[::-1], p["w_ih_b"], p["w_hh_b"], p["b_ih_b"], p["b_hh_b"])
        h_bwd_last = out_b_rev[-1]
        layer_in = jnp.concatenate([out_f, out_b_rev[::-1]], axis=-1)
    z = h_bwd_last @ params["w_lin"].T + params["b_lin"]
    return z @ params["w_out"].T + params["b_out"]


# ---------------- deterministic parameter init ----------------
def init_params(key):
    def u(k, shape, scale=0.1):
        return jax.random.uniform(k, shape, jnp.float32, -scale, scale)

    keys = iter(jax.random.split(key, 8 * NUM_LAYERS + 8))
    H, E = HIDDEN_SIZE_1, MELODY_EMBEDDING_SIZE
    params = {
        "embedding": jax.random.normal(next(keys), (VOCAB_SIZE, E), jnp.float32),
        "lstm": [],
        "w_lin": u(next(keys), (HIDDEN_SIZE_2, H)),
        "b_lin": u(next(keys), (HIDDEN_SIZE_2,)),
        "w_out": u(next(keys), (VOCAB_SIZE, HIDDEN_SIZE_2)),
        "b_out": u(next(keys), (VOCAB_SIZE,)),
    }
    for l in range(NUM_LAYERS):
        in_size = E if l == 0 else 2 * H
        params["lstm"].append({
            "w_ih_f": u(next(keys), (4 * H, in_size)),
            "w_hh_f": u(next(keys), (4 * H, H)),
            "b_ih_f": u(next(keys), (4 * H,)),
            "b_hh_f": u(next(keys), (4 * H,)),
            "w_ih_b": u(next(keys), (4 * H, in_size)),
            "w_hh_b": u(next(keys), (4 * H, H)),
            "b_ih_b": u(next(keys), (4 * H,)),
            "b_hh_b": u(next(keys), (4 * H,)),
        })
    return params


if __name__ == "__main__":
    key = jax.random.PRNGKey(0)
    k_param, k_tok = jax.random.split(key)
    params = init_params(k_param)
    melody = jax.random.randint(k_tok, (BATCH, SEQ_LEN), 0, VOCAB_SIZE, dtype=jnp.int32)

    fwd = jax.jit(lofi_lstm_forward)
    out = jax.block_until_ready(fwd(params, melody))
    ref = jax.block_until_ready(lofi_lstm_forward_ref(params, melody))

    assert out.shape == (BATCH, VOCAB_SIZE), out.shape
    assert jnp.allclose(out, ref, atol=1e-4, rtol=1e-4), \
        f"max abs diff = {jnp.max(jnp.abs(out - ref))}"
    print("KERNEL_OK")
</pallas_src>

<mosaic_0001>
module attributes {stable_mosaic.version = 11 : i64} {
  func.func @_lofi_kernel(%arg0: memref<16x1xi32, #tpu.memory_space<vmem>>, %arg1: memref<64x32xf32, #tpu.memory_space<vmem>>, %arg2: memref<32x256xf32, #tpu.memory_space<vmem>>, %arg3: memref<64x256xf32, #tpu.memory_space<vmem>>, %arg4: memref<1x256xf32, #tpu.memory_space<vmem>>, %arg5: memref<64x128xf32, #tpu.memory_space<vmem>>, %arg6: memref<32x128xf32, #tpu.memory_space<vmem>>, %arg7: memref<1x128xf32, #tpu.memory_space<vmem>>, %arg8: memref<32x32xf32, #tpu.memory_space<vmem>>, %arg9: memref<1x32xf32, #tpu.memory_space<vmem>>, %arg10: memref<32x64xf32, #tpu.memory_space<vmem>>, %arg11: memref<1x64xf32, #tpu.memory_space<vmem>>, %arg12: memref<2x64xf32, #tpu.memory_space<vmem>>, %arg13: memref<16x32xf32, #tpu.memory_space<vmem>>, %arg14: memref<16x32xf32, #tpu.memory_space<vmem>>) attributes {dimension_semantics = [], scalar_prefetch = 0 : i64, scratch_operands = 2 : i64, tpu.core_type = #tpu.core_type<tc>} {
    %c0 = arith.constant 0 : index
    %c0_0 = arith.constant 0 : index
    %0 = vector.load %arg0[%c0, %c0_0] : memref<16x1xi32, #tpu.memory_space<vmem>>, vector<16x1xi32>
    %1 = tpu.iota {dimensions = array<i32: 1>} : vector<16x64xi32>
    %2 = vector.broadcast %0 : vector<16x1xi32> to vector<16x64xi32>
    %3 = arith.cmpi eq, %1, %2 : vector<16x64xi32>
    %4 = arith.extui %3 : vector<16x64xi1> to vector<16x64xi32>
    %5 = arith.sitofp %4 : vector<16x64xi32> to vector<16x64xf32>
    %c0_1 = arith.constant 0 : index
    %c0_2 = arith.constant 0 : index
    %6 = vector.load %arg1[%c0_1, %c0_2] : memref<64x32xf32, #tpu.memory_space<vmem>>, vector<64x32xf32>
    %cst = arith.constant dense<0.000000e+00> : vector<16x32xf32>
    %7 = tpu.matmul %5, %6, %cst {dimension_numbers = #tpu.dot_dimension_numbers<[1], [0], [0], [1], [0, 0, 1, 1], [], []>} : vector<16x64xf32>, vector<64x32xf32>, vector<16x32xf32> -> vector<16x32xf32>
    %c0_3 = arith.constant 0 : index
    %c0_4 = arith.constant 0 : index
    %8 = vector.load %arg2[%c0_3, %c0_4] : memref<32x256xf32, #tpu.memory_space<vmem>>, vector<32x256xf32>
    %cst_5 = arith.constant dense<0.000000e+00> : vector<16x256xf32>
    %9 = tpu.matmul %7, %8, %cst_5 {dimension_numbers = #tpu.dot_dimension_numbers<[1], [0], [0], [1], [0, 0, 1, 1], [], []>} : vector<16x32xf32>, vector<32x256xf32>, vector<16x256xf32> -> vector<16x256xf32>
    %c0_6 = arith.constant 0 : index
    %c0_7 = arith.constant 0 : index
    %10 = vector.load %arg4[%c0_6, %c0_7] : memref<1x256xf32, #tpu.memory_space<vmem>>, vector<1x256xf32>
    %11 = vector.broadcast %10 : vector<1x256xf32> to vector<16x256xf32>
    %12 = arith.addf %9, %11 : vector<16x256xf32>
    %c0_8 = arith.constant 0 : index
    %c0_9 = arith.constant 0 : index
    %13 = vector.load %arg3[%c0_8, %c0_9] : memref<64x256xf32, #tpu.memory_space<vmem>>, vector<64x256xf32>
    %cst_10 = arith.constant 0.000000e+00 : f32
    %14 = vector.broadcast %cst_10 : f32 to vector<2x32xf32>
    %15 = tpu.concatenate %14, %14 in 1 : vector<2x32xf32>, vector<2x32xf32> -> vector<2x64xf32>
    %cst_11 = arith.constant dense<0.000000e+00> : vector<2x256xf32>
    %16 = tpu.matmul %15, %13, %cst_11 {dimension_numbers = #tpu.dot_dimension_numbers<[1], [0], [0], [1], [0, 0, 1, 1], [], []>} : vector<2x64xf32>, vector<64x256xf32>, vector<2x256xf32> -> vector<2x256xf32>
    %17 = vector.extract_strided_slice %12 {offsets = [0, 0], sizes = [2, 128], strides = [1, 1]} : vector<16x256xf32> to vector<2x128xf32>
    %18 = vector.extract_strided_slice %16 {offsets = [0, 0], sizes = [2, 128], strides = [1, 1]} : vector<2x256xf32> to vector<2x128xf32>
    %19 = arith.addf %17, %18 : vector<2x128xf32>
    %20 = vector.extract_strided_slice %12 {offsets = [14, 128], sizes = [2, 128], strides = [1, 1]} : vector<16x256xf32> to vector<2x128xf32>
    %21 = vector.extract_strided_slice %16 {offsets = [0, 128], sizes = [2, 128], strides = [1, 1]} : vector<2x256xf32> to vector<2x128xf32>
    %22 = arith.addf %20, %21 : vector<2x128xf32>
    %23 = vector.extract_strided_slice %19 {offsets = [0, 0], sizes = [2, 32], strides = [1, 1]} : vector<2x128xf32> to vector<2x32xf32>
    %24 = arith.negf %23 : vector<2x32xf32>
    %25 = math.exp %24 : vector<2x32xf32>
    %cst_12 = arith.constant 1.000000e+00 : f32
    %26 = vector.broadcast %cst_12 : f32 to vector<2x32xf32>
    %27 = arith.addf %26, %25 : vector<2x32xf32>
    %28 = arith.divf %26, %27 : vector<2x32xf32>
    %29 = vector.extract_strided_slice %19 {offsets = [0, 32], sizes = [2, 32], strides = [1, 1]} : vector<2x128xf32> to vector<2x32xf32>
    %30 = arith.negf %29 : vector<2x32xf32>
    %31 = math.exp %30 : vector<2x32xf32>
    %cst_13 = arith.constant 1.000000e+00 : f32
    %32 = vector.broadcast %cst_13 : f32 to vector<2x32xf32>
    %33 = arith.addf %32, %31 : vector<2x32xf32>
    %34 = arith.divf %32, %33 : vector<2x32xf32>
    %35 = vector.extract_strided_slice %19 {offsets = [0, 64], sizes = [2, 32], strides = [1, 1]} : vector<2x128xf32> to vector<2x32xf32>
    %36 = math.tanh %35 : vector<2x32xf32>
    %37 = vector.extract_strided_slice %19 {offsets = [0, 96], sizes = [2, 32], strides = [1, 1]} : vector<2x128xf32> to vector<2x32xf32>
    %38 = arith.negf %37 : vector<2x32xf32>
    %39 = math.exp %38 : vector<2x32xf32>
    %cst_14 = arith.constant 1.000000e+00 : f32
    %40 = vector.broadcast %cst_14 : f32 to vector<2x32xf32>
    %41 = arith.addf %40, %39 : vector<2x32xf32>
    %42 = arith.divf %40, %41 : vector<2x32xf32>
    %43 = arith.mulf %34, %14 : vector<2x32xf32>
    %44 = arith.mulf %28, %36 : vector<2x32xf32>
    %45 = arith.addf %43, %44 : vector<2x32xf32>
    %46 = math.tanh %45 : vector<2x32xf32>
    %47 = arith.mulf %42, %46 : vector<2x32xf32>
    %48 = vector.extract_strided_slice %22 {offsets = [0, 0], sizes = [2, 32], strides = [1, 1]} : vector<2x128xf32> to vector<2x32xf32>
    %49 = arith.negf %48 : vector<2x32xf32>
    %50 = math.exp %49 : vector<2x32xf32>
    %cst_15 = arith.constant 1.000000e+00 : f32
    %51 = vector.broadcast %cst_15 : f32 to vector<2x32xf32>
    %52 = arith.addf %51, %50 : vector<2x32xf32>
    %53 = arith.divf %51, %52 : vector<2x32xf32>
    %54 = vector.extract_strided_slice %22 {offsets = [0, 32], sizes = [2, 32], strides = [1, 1]} : vector<2x128xf32> to vector<2x32xf32>
    %55 = arith.negf %54 : vector<2x32xf32>
    %56 = math.exp %55 : vector<2x32xf32>
    %cst_16 = arith.constant 1.000000e+00 : f32
    %57 = vector.broadcast %cst_16 : f32 to vector<2x32xf32>
    %58 = arith.addf %57, %56 : vector<2x32xf32>
    %59 = arith.divf %57, %58 : vector<2x32xf32>
    %60 = vector.extract_strided_slice %22 {offsets = [0, 64], sizes = [2, 32], strides = [1, 1]} : vector<2x128xf32> to vector<2x32xf32>
    %61 = math.tanh %60 : vector<2x32xf32>
    %62 = vector.extract_strided_slice %22 {offsets = [0, 96], sizes = [2, 32], strides = [1, 1]} : vector<2x128xf32> to vector<2x32xf32>
    %63 = arith.negf %62 : vector<2x32xf32>
    %64 = math.exp %63 : vector<2x32xf32>
    %cst_17 = arith.constant 1.000000e+00 : f32
    %65 = vector.broadcast %cst_17 : f32 to vector<2x32xf32>
    %66 = arith.addf %65, %64 : vector<2x32xf32>
    %67 = arith.divf %65, %66 : vector<2x32xf32>
    %68 = arith.mulf %59, %14 : vector<2x32xf32>
    %69 = arith.mulf %53, %61 : vector<2x32xf32>
    %70 = arith.addf %68, %69 : vector<2x32xf32>
    %71 = math.tanh %70 : vector<2x32xf32>
    %72 = arith.mulf %67, %71 : vector<2x32xf32>
    %c0_18 = arith.constant 0 : index
    %c0_19 = arith.constant 0 : index
    %73 = vector.load %arg13[%c0_18, %c0_19] : memref<16x32xf32, #tpu.memory_space<vmem>>, vector<2x32xf32>
    tpu.vector_store %arg13[%c0_18, %c0_19], %47 {strides = array<i32>} : memref<16x32xf32, #tpu.memory_space<vmem>>, vector<2x32xf32>,
    %c14 = arith.constant 14 : index
    %c0_20 = arith.constant 0 : index
    %74 = vector.load %arg14[%c14, %c0_20] : memref<16x32xf32, #tpu.memory_space<vmem>>, vector<2x32xf32>
    tpu.vector_store %arg14[%c14, %c0_20], %72 {strides = array<i32>} : memref<16x32xf32, #tpu.memory_space<vmem>>, vector<2x32xf32>,
    %75 = tpu.concatenate %47, %72 in 1 : vector<2x32xf32>, vector<2x32xf32> -> vector<2x64xf32>
    %cst_21 = arith.constant dense<0.000000e+00> : vector<2x256xf32>
    %76 = tpu.matmul %75, %13, %cst_21 {dimension_numbers = #tpu.dot_dimension_numbers<[1], [0], [0], [1], [0, 0, 1, 1], [], []>} : vector<2x64xf32>, vector<64x256xf32>, vector<2x256xf32> -> vector<2x256xf32>
    %77 = vector.extract_strided_slice %12 {offsets = [2, 0], sizes = [2, 128], strides = [1, 1]} : vector<16x256xf32> to vector<2x128xf32>
    %78 = vector.extract_strided_slice %76 {offsets = [0, 0], sizes = [2, 128], strides = [1, 1]} : vector<2x256xf32> to vector<2x128xf32>
    %79 = arith.addf %77, %78 : vector<2x128xf32>
    %80 = vector.extract_strided_slice %12 {offsets = [12, 128], sizes = [2, 128], strides = [1, 1]} : vector<16x256xf32> to vector<2x128xf32>
    %81 = vector.extract_strided_slice %76 {offsets = [0, 128], sizes = [2, 128], strides = [1, 1]} : vector<2x256xf32> to vector<2x128xf32>
    %82 = arith.addf %80, %81 : vector<2x128xf32>
    %83 = vector.extract_strided_slice %79 {offsets = [0, 0], sizes = [2, 32], strides = [1, 1]} : vector<2x128xf32> to vector<2x32xf32>
    %84 = arith.negf %83 : vector<2x32xf32>
    %85 = math.exp %84 : vector<2x32xf32>
    %cst_22 = arith.constant 1.000000e+00 : f32
    %86 = vector.broadcast %cst_22 : f32 to vector<2x32xf32>
    %87 = arith.addf %86, %85 : vector<2x32xf32>
    %88 = arith.divf %86, %87 : vector<2x32xf32>
    %89 = vector.extract_strided_slice %79 {offsets = [0, 32], sizes = [2, 32], strides = [1, 1]} : vector<2x128xf32> to vector<2x32xf32>
    %90 = arith.negf %89 : vector<2x32xf32>
    %91 = math.exp %90 : vector<2x32xf32>
    %cst_23 = arith.constant 1.000000e+00 : f32
    %92 = vector.broadcast %cst_23 : f32 to vector<2x32xf32>
    %93 = arith.addf %92, %91 : vector<2x32xf32>
    %94 = arith.divf %92, %93 : vector<2x32xf32>
    %95 = vector.extract_strided_slice %79 {offsets = [0, 64], sizes = [2, 32], strides = [1, 1]} : vector<2x128xf32> to vector<2x32xf32>
    %96 = math.tanh %95 : vector<2x32xf32>
    %97 = vector.extract_strided_slice %79 {offsets = [0, 96], sizes = [2, 32], strides = [1, 1]} : vector<2x128xf32> to vector<2x32xf32>
    %98 = arith.negf %97 : vector<2x32xf32>
    %99 = math.exp %98 : vector<2x32xf32>
    %cst_24 = arith.constant 1.000000e+00 : f32
    %100 = vector.broadcast %cst_24 : f32 to vector<2x32xf32>
    %101 = arith.addf %100, %99 : vector<2x32xf32>
    %102 = arith.divf %100, %101 : vector<2x32xf32>
    %103 = arith.mulf %94, %45 : vector<2x32xf32>
    %104 = arith.mulf %88, %96 : vector<2x32xf32>
    %105 = arith.addf %103, %104 : vector<2x32xf32>
    %106 = math.tanh %105 : vector<2x32xf32>
    %107 = arith.mulf %102, %106 : vector<2x32xf32>
    %108 = vector.extract_strided_slice %82 {offsets = [0, 0], sizes = [2, 32], strides = [1, 1]} : vector<2x128xf32> to vector<2x32xf32>
    %109 = arith.negf %108 : vector<2x32xf32>
    %110 = math.exp %109 : vector<2x32xf32>
    %cst_25 = arith.constant 1.000000e+00 : f32
    %111 = vector.broadcast %cst_25 : f32 to vector<2x32xf32>
    %112 = arith.addf %111, %110 : vector<2x32xf32>
    %113 = arith.divf %111, %112 : vector<2x32xf32>
    %114 = vector.extract_strided_slice %82 {offsets = [0, 32], sizes = [2, 32], strides = [1, 1]} : vector<2x128xf32> to vector<2x32xf32>
    %115 = arith.negf %114 : vector<2x32xf32>
    %116 = math.exp %115 : vector<2x32xf32>
    %cst_26 = arith.constant 1.000000e+00 : f32
    %117 = vector.broadcast %cst_26 : f32 to vector<2x32xf32>
    %118 = arith.addf %117, %116 : vector<2x32xf32>
    %119 = arith.divf %117, %118 : vector<2x32xf32>
    %120 = vector.extract_strided_slice %82 {offsets = [0, 64], sizes = [2, 32], strides = [1, 1]} : vector<2x128xf32> to vector<2x32xf32>
    %121 = math.tanh %120 : vector<2x32xf32>
    %122 = vector.extract_strided_slice %82 {offsets = [0, 96], sizes = [2, 32], strides = [1, 1]} : vector<2x128xf32> to vector<2x32xf32>
    %123 = arith.negf %122 : vector<2x32xf32>
    %124 = math.exp %123 : vector<2x32xf32>
    %cst_27 = arith.constant 1.000000e+00 : f32
    %125 = vector.broadcast %cst_27 : f32 to vector<2x32xf32>
    %126 = arith.addf %125, %124 : vector<2x32xf32>
    %127 = arith.divf %125, %126 : vector<2x32xf32>
    %128 = arith.mulf %119, %70 : vector<2x32xf32>
    %129 = arith.mulf %113, %121 : vector<2x32xf32>
    %130 = arith.addf %128, %129 : vector<2x32xf32>
    %131 = math.tanh %130 : vector<2x32xf32>
    %132 = arith.mulf %127, %131 : vector<2x32xf32>
    %c2 = arith.constant 2 : index
    %c0_28 = arith.constant 0 : index
    %133 = vector.load %arg13[%c2, %c0_28] : memref<16x32xf32, #tpu.memory_space<vmem>>, vector<2x32xf32>
    tpu.vector_store %arg13[%c2, %c0_28], %107 {strides = array<i32>} : memref<16x32xf32, #tpu.memory_space<vmem>>, vector<2x32xf32>,
    %c12 = arith.constant 12 : index
    %c0_29 = arith.constant 0 : index
    %134 = vector.load %arg14[%c12, %c0_29] : memref<16x32xf32, #tpu.memory_space<vmem>>, vector<2x32xf32>
    tpu.vector_store %arg14[%c12, %c0_29], %132 {strides = array<i32>} : memref<16x32xf32, #tpu.memory_space<vmem>>, vector<2x32xf32>,
    %135 = tpu.concatenate %107, %132 in 1 : vector<2x32xf32>, vector<2x32xf32> -> vector<2x64xf32>
    %cst_30 = arith.constant dense<0.000000e+00> : vector<2x256xf32>
    %136 = tpu.matmul %135, %13, %cst_30 {dimension_numbers = #tpu.dot_dimension_numbers<[1], [0], [0], [1], [0, 0, 1, 1], [], []>} : vector<2x64xf32>, vector<64x256xf32>, vector<2x256xf32> -> vector<2x256xf32>
    %137 = vector.extract_strided_slice %12 {offsets = [4, 0], sizes = [2, 128], strides = [1, 1]} : vector<16x256xf32> to vector<2x128xf32>
    %138 = vector.extract_strided_slice %136 {offsets = [0, 0], sizes = [2, 128], strides = [1, 1]} : vector<2x256xf32> to vector<2x128xf32>
    %139 = arith.addf %137, %138 : vector<2x128xf32>
    %140 = vector.extract_strided_slice %12 {offsets = [10, 128], sizes = [2, 128], strides = [1, 1]} : vector<16x256xf32> to vector<2x128xf32>
    %141 = vector.extract_strided_slice %136 {offsets = [0, 128], sizes = [2, 128], strides = [1, 1]} : vector<2x256xf32> to vector<2x128xf32>
    %142 = arith.addf %140, %141 : vector<2x128xf32>
    %143 = vector.extract_strided_slice %139 {offsets = [0, 0], sizes = [2, 32], strides = [1, 1]} : vector<2x128xf32> to vector<2x32xf32>
    %144 = arith.negf %143 : vector<2x32xf32>
    %145 = math.exp %144 : vector<2x32xf32>
    %cst_31 = arith.constant 1.000000e+00 : f32
    %146 = vector.broadcast %cst_31 : f32 to vector<2x32xf32>
    %147 = arith.addf %146, %145 : vector<2x32xf32>
    %148 = arith.divf %146, %147 : vector<2x32xf32>
    %149 = vector.extract_strided_slice %139 {offsets = [0, 32], sizes = [2, 32], strides = [1, 1]} : vector<2x128xf32> to vector<2x32xf32>
    %150 = arith.negf %149 : vector<2x32xf32>
    %151 = math.exp %150 : vector<2x32xf32>
    %cst_32 = arith.constant 1.000000e+00 : f32
    %152 = vector.broadcast %cst_32 : f32 to vector<2x32xf32>
    %153 = arith.addf %152, %151 : vector<2x32xf32>
    %154 = arith.divf %152, %153 : vector<2x32xf32>
    %155 = vector.extract_strided_slice %139 {offsets = [0, 64], sizes = [2, 32], strides = [1, 1]} : vector<2x128xf32> to vector<2x32xf32>
    %156 = math.tanh %155 : vector<2x32xf32>
    %157 = vector.extract_strided_slice %139 {offsets = [0, 96], sizes = [2, 32], strides = [1, 1]} : vector<2x128xf32> to vector<2x32xf32>
    %158 = arith.negf %157 : vector<2x32xf32>
    %159 = math.exp %158 : vector<2x32xf32>
    %cst_33 = arith.constant 1.000000e+00 : f32
    %160 = vector.broadcast %cst_33 : f32 to vector<2x32xf32>
    %161 = arith.addf %160, %159 : vector<2x32xf32>
    %162 = arith.divf %160, %161 : vector<2x32xf32>
    %163 = arith.mulf %154, %105 : vector<2x32xf32>
    %164 = arith.mulf %148, %156 : vector<2x32xf32>
    %165 = arith.addf %163, %164 : vector<2x32xf32>
    %166 = math.tanh %165 : vector<2x32xf32>
    %167 = arith.mulf %162, %166 : vector<2x32xf32>
    %168 = vector.extract_strided_slice %142 {offsets = [0, 0], sizes = [2, 32], strides = [1, 1]} : vector<2x128xf32> to vector<2x32xf32>
    %169 = arith.negf %168 : vector<2x32xf32>
    %170 = math.exp %169 : vector<2x32xf32>
    %cst_34 = arith.constant 1.000000e+00 : f32
    %171 = vector.broadcast %cst_34 : f32 to vector<2x32xf32>
    %172 = arith.addf %171, %170 : vector<2x32xf32>
    %173 = arith.divf %171, %172 : vector<2x32xf32>
    %174 = vector.extract_strided_slice %142 {offsets = [0, 32], sizes = [2, 32], strides = [1, 1]} : vector<2x128xf32> to vector<2x32xf32>
    %175 = arith.negf %174 : vector<2x32xf32>
    %176 = math.exp %175 : vector<2x32xf32>
    %cst_35 = arith.constant 1.000000e+00 : f32
    %177 = vector.broadcast %cst_35 : f32 to vector<2x32xf32>
    %178 = arith.addf %177, %176 : vector<2x32xf32>
    %179 = arith.divf %177, %178 : vector<2x32xf32>
    %180 = vector.extract_strided_slice %142 {offsets = [0, 64], sizes = [2, 32], strides = [1, 1]} : vector<2x128xf32> to vector<2x32xf32>
    %181 = math.tanh %180 : vector<2x32xf32>
    %182 = vector.extract_strided_slice %142 {offsets = [0, 96], sizes = [2, 32], strides = [1, 1]} : vector<2x128xf32> to vector<2x32xf32>
    %183 = arith.negf %182 : vector<2x32xf32>
    %184 = math.exp %183 : vector<2x32xf32>
    %cst_36 = arith.constant 1.000000e+00 : f32
    %185 = vector.broadcast %cst_36 : f32 to vector<2x32xf32>
    %186 = arith.addf %185, %184 : vector<2x32xf32>
    %187 = arith.divf %185, %186 : vector<2x32xf32>
    %188 = arith.mulf %179, %130 : vector<2x32xf32>
    %189 = arith.mulf %173, %181 : vector<2x32xf32>
    %190 = arith.addf %188, %189 : vector<2x32xf32>
    %191 = math.tanh %190 : vector<2x32xf32>
    %192 = arith.mulf %187, %191 : vector<2x32xf32>
    %c4 = arith.constant 4 : index
    %c0_37 = arith.constant 0 : index
    %193 = vector.load %arg13[%c4, %c0_37] : memref<16x32xf32, #tpu.memory_space<vmem>>, vector<2x32xf32>
    tpu.vector_store %arg13[%c4, %c0_37], %167 {strides = array<i32>} : memref<16x32xf32, #tpu.memory_space<vmem>>, vector<2x32xf32>,
    %c10 = arith.constant 10 : index
    %c0_38 = arith.constant 0 : index
    %194 = vector.load %arg14[%c10, %c0_38] : memref<16x32xf32, #tpu.memory_space<vmem>>, vector<2x32xf32>
    tpu.vector_store %arg14[%c10, %c0_38], %192 {strides = array<i32>} : memref<16x32xf32, #tpu.memory_space<vmem>>, vector<2x32xf32>,
    %195 = tpu.concatenate %167, %192 in 1 : vector<2x32xf32>, vector<2x32xf32> -> vector<2x64xf32>
    %cst_39 = arith.constant dense<0.000000e+00> : vector<2x256xf32>
    %196 = tpu.matmul %195, %13, %cst_39 {dimension_numbers = #tpu.dot_dimension_numbers<[1], [0], [0], [1], [0, 0, 1, 1], [], []>} : vector<2x64xf32>, vector<64x256xf32>, vector<2x256xf32> -> vector<2x256xf32>
    %197 = vector.extract_strided_slice %12 {offsets = [6, 0], sizes = [2, 128], strides = [1, 1]} : vector<16x256xf32> to vector<2x128xf32>
    %198 = vector.extract_strided_slice %196 {offsets = [0, 0], sizes = [2, 128], strides = [1, 1]} : vector<2x256xf32> to vector<2x128xf32>
    %199 = arith.addf %197, %198 : vector<2x128xf32>
    %200 = vector.extract_strided_slice %12 {offsets = [8, 128], sizes = [2, 128], strides = [1, 1]} : vector<16x256xf32> to vector<2x128xf32>
    %201 = vector.extract_strided_slice %196 {offsets = [0, 128], sizes = [2, 128], strides = [1, 1]} : vector<2x256xf32> to vector<2x128xf32>
    %202 = arith.addf %200, %201 : vector<2x128xf32>
    %203 = vector.extract_strided_slice %199 {offsets = [0, 0], sizes = [2, 32], strides = [1, 1]} : vector<2x128xf32> to vector<2x32xf32>
    %204 = arith.negf %203 : vector<2x32xf32>
    %205 = math.exp %204 : vector<2x32xf32>
    %cst_40 = arith.constant 1.000000e+00 : f32
    %206 = vector.broadcast %cst_40 : f32 to vector<2x32xf32>
    %207 = arith.addf %206, %205 : vector<2x32xf32>
    %208 = arith.divf %206, %207 : vector<2x32xf32>
    %209 = vector.extract_strided_slice %199 {offsets = [0, 32], sizes = [2, 32], strides = [1, 1]} : vector<2x128xf32> to vector<2x32xf32>
    %210 = arith.negf %209 : vector<2x32xf32>
    %211 = math.exp %210 : vector<2x32xf32>
    %cst_41 = arith.constant 1.000000e+00 : f32
    %212 = vector.broadcast %cst_41 : f32 to vector<2x32xf32>
    %213 = arith.addf %212, %211 : vector<2x32xf32>
    %214 = arith.divf %212, %213 : vector<2x32xf32>
    %215 = vector.extract_strided_slice %199 {offsets = [0, 64], sizes = [2, 32], strides = [1, 1]} : vector<2x128xf32> to vector<2x32xf32>
    %216 = math.tanh %215 : vector<2x32xf32>
    %217 = vector.extract_strided_slice %199 {offsets = [0, 96], sizes = [2, 32], strides = [1, 1]} : vector<2x128xf32> to vector<2x32xf32>
    %218 = arith.negf %217 : vector<2x32xf32>
    %219 = math.exp %218 : vector<2x32xf32>
    %cst_42 = arith.constant 1.000000e+00 : f32
    %220 = vector.broadcast %cst_42 : f32 to vector<2x32xf32>
    %221 = arith.addf %220, %219 : vector<2x32xf32>
    %222 = arith.divf %220, %221 : vector<2x32xf32>
    %223 = arith.mulf %214, %165 : vector<2x32xf32>
    %224 = arith.mulf %208, %216 : vector<2x32xf32>
    %225 = arith.addf %223, %224 : vector<2x32xf32>
    %226 = math.tanh %225 : vector<2x32xf32>
    %227 = arith.mulf %222, %226 : vector<2x32xf32>
    %228 = vector.extract_strided_slice %202 {offsets = [0, 0], sizes = [2, 32], strides = [1, 1]} : vector<2x128xf32> to vector<2x32xf32>
    %229 = arith.negf %228 : vector<2x32xf32>
    %230 = math.exp %229 : vector<2x32xf32>
    %cst_43 = arith.constant 1.000000e+00 : f32
    %231 = vector.broadcast %cst_43 : f32 to vector<2x32xf32>
    %232 = arith.addf %231, %230 : vector<2x32xf32>
    %233 = arith.divf %231, %232 : vector<2x32xf32>
    %234 = vector.extract_strided_slice %202 {offsets = [0, 32], sizes = [2, 32], strides = [1, 1]} : vector<2x128xf32> to vector<2x32xf32>
    %235 = arith.negf %234 : vector<2x32xf32>
    %236 = math.exp %235 : vector<2x32xf32>
    %cst_44 = arith.constant 1.000000e+00 : f32
    %237 = vector.broadcast %cst_44 : f32 to vector<2x32xf32>
    %238 = arith.addf %237, %236 : vector<2x32xf32>
    %239 = arith.divf %237, %238 : vector<2x32xf32>
    %240 = vector.extract_strided_slice %202 {offsets = [0, 64], sizes = [2, 32], strides = [1, 1]} : vector<2x128xf32> to vector<2x32xf32>
    %241 = math.tanh %240 : vector<2x32xf32>
    %242 = vector.extract_strided_slice %202 {offsets = [0, 96], sizes = [2, 32], strides = [1, 1]} : vector<2x128xf32> to vector<2x32xf32>
    %243 = arith.negf %242 : vector<2x32xf32>
    %244 = math.exp %243 : vector<2x32xf32>
    %cst_45 = arith.constant 1.000000e+00 : f32
    %245 = vector.broadcast %cst_45 : f32 to vector<2x32xf32>
    %246 = arith.addf %245, %244 : vector<2x32xf32>
    %247 = arith.divf %245, %246 : vector<2x32xf32>
    %248 = arith.mulf %239, %190 : vector<2x32xf32>
    %249 = arith.mulf %233, %241 : vector<2x32xf32>
    %250 = arith.addf %248, %249 : vector<2x32xf32>
    %251 = math.tanh %250 : vector<2x32xf32>
    %252 = arith.mulf %247, %251 : vector<2x32xf32>
    %c6 = arith.constant 6 : index
    %c0_46 = arith.constant 0 : index
    %253 = vector.load %arg13[%c6, %c0_46] : memref<16x32xf32, #tpu.memory_space<vmem>>, vector<2x32xf32>
    tpu.vector_store %arg13[%c6, %c0_46], %227 {strides = array<i32>} : memref<16x32xf32, #tpu.memory_space<vmem>>, vector<2x32xf32>,
    %c8 = arith.constant 8 : index
    %c0_47 = arith.constant 0 : index
    %254 = vector.load %arg14[%c8, %c0_47] : memref<16x32xf32, #tpu.memory_space<vmem>>, vector<2x32xf32>
    tpu.vector_store %arg14[%c8, %c0_47], %252 {strides = array<i32>} : memref<16x32xf32, #tpu.memory_space<vmem>>, vector<2x32xf32>,
    %255 = tpu.concatenate %227, %252 in 1 : vector<2x32xf32>, vector<2x32xf32> -> vector<2x64xf32>
    %cst_48 = arith.constant dense<0.000000e+00> : vector<2x256xf32>
    %256 = tpu.matmul %255, %13, %cst_48 {dimension_numbers = #tpu.dot_dimension_numbers<[1], [0], [0], [1], [0, 0, 1, 1], [], []>} : vector<2x64xf32>, vector<64x256xf32>, vector<2x256xf32> -> vector<2x256xf32>
    %257 = vector.extract_strided_slice %12 {offsets = [8, 0], sizes = [2, 128], strides = [1, 1]} : vector<16x256xf32> to vector<2x128xf32>
    %258 = vector.extract_strided_slice %256 {offsets = [0, 0], sizes = [2, 128], strides = [1, 1]} : vector<2x256xf32> to vector<2x128xf32>
    %259 = arith.addf %257, %258 : vector<2x128xf32>
    %260 = vector.extract_strided_slice %12 {offsets = [6, 128], sizes = [2, 128], strides = [1, 1]} : vector<16x256xf32> to vector<2x128xf32>
    %261 = vector.extract_strided_slice %256 {offsets = [0, 128], sizes = [2, 128], strides = [1, 1]} : vector<2x256xf32> to vector<2x128xf32>
    %262 = arith.addf %260, %261 : vector<2x128xf32>
    %263 = vector.extract_strided_slice %259 {offsets = [0, 0], sizes = [2, 32], strides = [1, 1]} : vector<2x128xf32> to vector<2x32xf32>
    %264 = arith.negf %263 : vector<2x32xf32>
    %265 = math.exp %264 : vector<2x32xf32>
    %cst_49 = arith.constant 1.000000e+00 : f32
    %266 = vector.broadcast %cst_49 : f32 to vector<2x32xf32>
    %267 = arith.addf %266, %265 : vector<2x32xf32>
    %268 = arith.divf %266, %267 : vector<2x32xf32>
    %269 = vector.extract_strided_slice %259 {offsets = [0, 32], sizes = [2, 32], strides = [1, 1]} : vector<2x128xf32> to vector<2x32xf32>
    %270 = arith.negf %269 : vector<2x32xf32>
    %271 = math.exp %270 : vector<2x32xf32>
    %cst_50 = arith.constant 1.000000e+00 : f32
    %272 = vector.broadcast %cst_50 : f32 to vector<2x32xf32>
    %273 = arith.addf %272, %271 : vector<2x32xf32>
    %274 = arith.divf %272, %273 : vector<2x32xf32>
    %275 = vector.extract_strided_slice %259 {offsets = [0, 64], sizes = [2, 32], strides = [1, 1]} : vector<2x128xf32> to vector<2x32xf32>
    %276 = math.tanh %275 : vector<2x32xf32>
    %277 = vector.extract_strided_slice %259 {offsets = [0, 96], sizes = [2, 32], strides = [1, 1]} : vector<2x128xf32> to vector<2x32xf32>
    %278 = arith.negf %277 : vector<2x32xf32>
    %279 = math.exp %278 : vector<2x32xf32>
    %cst_51 = arith.constant 1.000000e+00 : f32
    %280 = vector.broadcast %cst_51 : f32 to vector<2x32xf32>
    %281 = arith.addf %280, %279 : vector<2x32xf32>
    %282 = arith.divf %280, %281 : vector<2x32xf32>
    %283 = arith.mulf %274, %225 : vector<2x32xf32>
    %284 = arith.mulf %268, %276 : vector<2x32xf32>
    %285 = arith.addf %283, %284 : vector<2x32xf32>
    %286 = math.tanh %285 : vector<2x32xf32>
    %287 = arith.mulf %282, %286 : vector<2x32xf32>
    %288 = vector.extract_strided_slice %262 {offsets = [0, 0], sizes = [2, 32], strides = [1, 1]} : vector<2x128xf32> to vector<2x32xf32>
    %289 = arith.negf %288 : vector<2x32xf32>
    %290 = math.exp %289 : vector<2x32xf32>
    %cst_52 = arith.constant 1.000000e+00 : f32
    %291 = vector.broadcast %cst_52 : f32 to vector<2x32xf32>
    %292 = arith.addf %291, %290 : vector<2x32xf32>
    %293 = arith.divf %291, %292 : vector<2x32xf32>
    %294 = vector.extract_strided_slice %262 {offsets = [0, 32], sizes = [2, 32], strides = [1, 1]} : vector<2x128xf32> to vector<2x32xf32>
    %295 = arith.negf %294 : vector<2x32xf32>
    %296 = math.exp %295 : vector<2x32xf32>
    %cst_53 = arith.constant 1.000000e+00 : f32
    %297 = vector.broadcast %cst_53 : f32 to vector<2x32xf32>
    %298 = arith.addf %297, %296 : vector<2x32xf32>
    %299 = arith.divf %297, %298 : vector<2x32xf32>
    %300 = vector.extract_strided_slice %262 {offsets = [0, 64], sizes = [2, 32], strides = [1, 1]} : vector<2x128xf32> to vector<2x32xf32>
    %301 = math.tanh %300 : vector<2x32xf32>
    %302 = vector.extract_strided_slice %262 {offsets = [0, 96], sizes = [2, 32], strides = [1, 1]} : vector<2x128xf32> to vector<2x32xf32>
    %303 = arith.negf %302 : vector<2x32xf32>
    %304 = math.exp %303 : vector<2x32xf32>
    %cst_54 = arith.constant 1.000000e+00 : f32
    %305 = vector.broadcast %cst_54 : f32 to vector<2x32xf32>
    %306 = arith.addf %305, %304 : vector<2x32xf32>
    %307 = arith.divf %305, %306 : vector<2x32xf32>
    %308 = arith.mulf %299, %250 : vector<2x32xf32>
    %309 = arith.mulf %293, %301 : vector<2x32xf32>
    %310 = arith.addf %308, %309 : vector<2x32xf32>
    %311 = math.tanh %310 : vector<2x32xf32>
    %312 = arith.mulf %307, %311 : vector<2x32xf32>
    %c8_55 = arith.constant 8 : index
    %c0_56 = arith.constant 0 : index
    %313 = vector.load %arg13[%c8_55, %c0_56] : memref<16x32xf32, #tpu.memory_space<vmem>>, vector<2x32xf32>
    tpu.vector_store %arg13[%c8_55, %c0_56], %287 {strides = array<i32>} : memref<16x32xf32, #tpu.memory_space<vmem>>, vector<2x32xf32>,
    %c6_57 = arith.constant 6 : index
    %c0_58 = arith.constant 0 : index
    %314 = vector.load %arg14[%c6_57, %c0_58] : memref<16x32xf32, #tpu.memory_space<vmem>>, vector<2x32xf32>
    tpu.vector_store %arg14[%c6_57, %c0_58], %312 {strides = array<i32>} : memref<16x32xf32, #tpu.memory_space<vmem>>, vector<2x32xf32>,
    %315 = tpu.concatenate %287, %312 in 1 : vector<2x32xf32>, vector<2x32xf32> -> vector<2x64xf32>
    %cst_59 = arith.constant dense<0.000000e+00> : vector<2x256xf32>
    %316 = tpu.matmul %315, %13, %cst_59 {dimension_numbers = #tpu.dot_dimension_numbers<[1], [0], [0], [1], [0, 0, 1, 1], [], []>} : vector<2x64xf32>, vector<64x256xf32>, vector<2x256xf32> -> vector<2x256xf32>
    %317 = vector.extract_strided_slice %12 {offsets = [10, 0], sizes = [2, 128], strides = [1, 1]} : vector<16x256xf32> to vector<2x128xf32>
    %318 = vector.extract_strided_slice %316 {offsets = [0, 0], sizes = [2, 128], strides = [1, 1]} : vector<2x256xf32> to vector<2x128xf32>
    %319 = arith.addf %317, %318 : vector<2x128xf32>
    %320 = vector.extract_strided_slice %12 {offsets = [4, 128], sizes = [2, 128], strides = [1, 1]} : vector<16x256xf32> to vector<2x128xf32>
    %321 = vector.extract_strided_slice %316 {offsets = [0, 128], sizes = [2, 128], strides = [1, 1]} : vector<2x256xf32> to vector<2x128xf32>
    %322 = arith.addf %320, %321 : vector<2x128xf32>
    %323 = vector.extract_strided_slice %319 {offsets = [0, 0], sizes = [2, 32], strides = [1, 1]} : vector<2x128xf32> to vector<2x32xf32>
    %324 = arith.negf %323 : vector<2x32xf32>
    %325 = math.exp %324 : vector<2x32xf32>
    %cst_60 = arith.constant 1.000000e+00 : f32
    %326 = vector.broadcast %cst_60 : f32 to vector<2x32xf32>
    %327 = arith.addf %326, %325 : vector<2x32xf32>
    %328 = arith.divf %326, %327 : vector<2x32xf32>
    %329 = vector.extract_strided_slice %319 {offsets = [0, 32], sizes = [2, 32], strides = [1, 1]} : vector<2x128xf32> to vector<2x32xf32>
    %330 = arith.negf %329 : vector<2x32xf32>
    %331 = math.exp %330 : vector<2x32xf32>
    %cst_61 = arith.constant 1.000000e+00 : f32
    %332 = vector.broadcast %cst_61 : f32 to vector<2x32xf32>
    %333 = arith.addf %332, %331 : vector<2x32xf32>
    %334 = arith.divf %332, %333 : vector<2x32xf32>
    %335 = vector.extract_strided_slice %319 {offsets = [0, 64], sizes = [2, 32], strides = [1, 1]} : vector<2x128xf32> to vector<2x32xf32>
    %336 = math.tanh %335 : vector<2x32xf32>
    %337 = vector.extract_strided_slice %319 {offsets = [0, 96], sizes = [2, 32], strides = [1, 1]} : vector<2x128xf32> to vector<2x32xf32>
    %338 = arith.negf %337 : vector<2x32xf32>
    %339 = math.exp %338 : vector<2x32xf32>
    %cst_62 = arith.constant 1.000000e+00 : f32
    %340 = vector.broadcast %cst_62 : f32 to vector<2x32xf32>
    %341 = arith.addf %340, %339 : vector<2x32xf32>
    %342 = arith.divf %340, %341 : vector<2x32xf32>
    %343 = arith.mulf %334, %285 : vector<2x32xf32>
    %344 = arith.mulf %328, %336 : vector<2x32xf32>
    %345 = arith.addf %343, %344 : vector<2x32xf32>
    %346 = math.tanh %345 : vector<2x32xf32>
    %347 = arith.mulf %342, %346 : vector<2x32xf32>
    %348 = vector.extract_strided_slice %322 {offsets = [0, 0], sizes = [2, 32], strides = [1, 1]} : vector<2x128xf32> to vector<2x32xf32>
    %349 = arith.negf %348 : vector<2x32xf32>
    %350 = math.exp %349 : vector<2x32xf32>
    %cst_63 = arith.constant 1.000000e+00 : f32
    %351 = vector.broadcast %cst_63 : f32 to vector<2x32xf32>
    %352 = arith.addf %351, %350 : vector<2x32xf32>
    %353 = arith.divf %351, %352 : vector<2x32xf32>
    %354 = vector.extract_strided_slice %322 {offsets = [0, 32], sizes = [2, 32], strides = [1, 1]} : vector<2x128xf32> to vector<2x32xf32>
    %355 = arith.negf %354 : vector<2x32xf32>
    %356 = math.exp %355 : vector<2x32xf32>
    %cst_64 = arith.constant 1.000000e+00 : f32
    %357 = vector.broadcast %cst_64 : f32 to vector<2x32xf32>
    %358 = arith.addf %357, %356 : vector<2x32xf32>
    %359 = arith.divf %357, %358 : vector<2x32xf32>
    %360 = vector.extract_strided_slice %322 {offsets = [0, 64], sizes = [2, 32], strides = [1, 1]} : vector<2x128xf32> to vector<2x32xf32>
    %361 = math.tanh %360 : vector<2x32xf32>
    %362 = vector.extract_strided_slice %322 {offsets = [0, 96], sizes = [2, 32], strides = [1, 1]} : vector<2x128xf32> to vector<2x32xf32>
    %363 = arith.negf %362 : vector<2x32xf32>
    %364 = math.exp %363 : vector<2x32xf32>
    %cst_65 = arith.constant 1.000000e+00 : f32
    %365 = vector.broadcast %cst_65 : f32 to vector<2x32xf32>
    %366 = arith.addf %365, %364 : vector<2x32xf32>
    %367 = arith.divf %365, %366 : vector<2x32xf32>
    %368 = arith.mulf %359, %310 : vector<2x32xf32>
    %369 = arith.mulf %353, %361 : vector<2x32xf32>
    %370 = arith.addf %368, %369 : vector<2x32xf32>
    %371 = math.tanh %370 : vector<2x32xf32>
    %372 = arith.mulf %367, %371 : vector<2x32xf32>
    %c10_66 = arith.constant 10 : index
    %c0_67 = arith.constant 0 : index
    %373 = vector.load %arg13[%c10_66, %c0_67] : memref<16x32xf32, #tpu.memory_space<vmem>>, vector<2x32xf32>
    tpu.vector_store %arg13[%c10_66, %c0_67], %347 {strides = array<i32>} : memref<16x32xf32, #tpu.memory_space<vmem>>, vector<2x32xf32>,
    %c4_68 = arith.constant 4 : index
    %c0_69 = arith.constant 0 : index
    %374 = vector.load %arg14[%c4_68, %c0_69] : memref<16x32xf32, #tpu.memory_space<vmem>>, vector<2x32xf32>
    tpu.vector_store %arg14[%c4_68, %c0_69], %372 {strides = array<i32>} : memref<16x32xf32, #tpu.memory_space<vmem>>, vector<2x32xf32>,
    %375 = tpu.concatenate %347, %372 in 1 : vector<2x32xf32>, vector<2x32xf32> -> vector<2x64xf32>
    %cst_70 = arith.constant dense<0.000000e+00> : vector<2x256xf32>
    %376 = tpu.matmul %375, %13, %cst_70 {dimension_numbers = #tpu.dot_dimension_numbers<[1], [0], [0], [1], [0, 0, 1, 1], [], []>} : vector<2x64xf32>, vector<64x256xf32>, vector<2x256xf32> -> vector<2x256xf32>
    %377 = vector.extract_strided_slice %12 {offsets = [12, 0], sizes = [2, 128], strides = [1, 1]} : vector<16x256xf32> to vector<2x128xf32>
    %378 = vector.extract_strided_slice %376 {offsets = [0, 0], sizes = [2, 128], strides = [1, 1]} : vector<2x256xf32> to vector<2x128xf32>
    %379 = arith.addf %377, %378 : vector<2x128xf32>
    %380 = vector.extract_strided_slice %12 {offsets = [2, 128], sizes = [2, 128], strides = [1, 1]} : vector<16x256xf32> to vector<2x128xf32>
    %381 = vector.extract_strided_slice %376 {offsets = [0, 128], sizes = [2, 128], strides = [1, 1]} : vector<2x256xf32> to vector<2x128xf32>
    %382 = arith.addf %380, %381 : vector<2x128xf32>
    %383 = vector.extract_strided_slice %379 {offsets = [0, 0], sizes = [2, 32], strides = [1, 1]} : vector<2x128xf32> to vector<2x32xf32>
    %384 = arith.negf %383 : vector<2x32xf32>
    %385 = math.exp %384 : vector<2x32xf32>
    %cst_71 = arith.constant 1.000000e+00 : f32
    %386 = vector.broadcast %cst_71 : f32 to vector<2x32xf32>
    %387 = arith.addf %386, %385 : vector<2x32xf32>
    %388 = arith.divf %386, %387 : vector<2x32xf32>
    %389 = vector.extract_strided_slice %379 {offsets = [0, 32], sizes = [2, 32], strides = [1, 1]} : vector<2x128xf32> to vector<2x32xf32>
    %390 = arith.negf %389 : vector<2x32xf32>
    %391 = math.exp %390 : vector<2x32xf32>
    %cst_72 = arith.constant 1.000000e+00 : f32
    %392 = vector.broadcast %cst_72 : f32 to vector<2x32xf32>
    %393 = arith.addf %392, %391 : vector<2x32xf32>
    %394 = arith.divf %392, %393 : vector<2x32xf32>
    %395 = vector.extract_strided_slice %379 {offsets = [0, 64], sizes = [2, 32], strides = [1, 1]} : vector<2x128xf32> to vector<2x32xf32>
    %396 = math.tanh %395 : vector<2x32xf32>
    %397 = vector.extract_strided_slice %379 {offsets = [0, 96], sizes = [2, 32], strides = [1, 1]} : vector<2x128xf32> to vector<2x32xf32>
    %398 = arith.negf %397 : vector<2x32xf32>
    %399 = math.exp %398 : vector<2x32xf32>
    %cst_73 = arith.constant 1.000000e+00 : f32
    %400 = vector.broadcast %cst_73 : f32 to vector<2x32xf32>
    %401 = arith.addf %400, %399 : vector<2x32xf32>
    %402 = arith.divf %400, %401 : vector<2x32xf32>
    %403 = arith.mulf %394, %345 : vector<2x32xf32>
    %404 = arith.mulf %388, %396 : vector<2x32xf32>
    %405 = arith.addf %403, %404 : vector<2x32xf32>
    %406 = math.tanh %405 : vector<2x32xf32>
    %407 = arith.mulf %402, %406 : vector<2x32xf32>
    %408 = vector.extract_strided_slice %382 {offsets = [0, 0], sizes = [2, 32], strides = [1, 1]} : vector<2x128xf32> to vector<2x32xf32>
    %409 = arith.negf %408 : vector<2x32xf32>
    %410 = math.exp %409 : vector<2x32xf32>
    %cst_74 = arith.constant 1.000000e+00 : f32
    %411 = vector.broadcast %cst_74 : f32 to vector<2x32xf32>
    %412 = arith.addf %411, %410 : vector<2x32xf32>
    %413 = arith.divf %411, %412 : vector<2x32xf32>
    %414 = vector.extract_strided_slice %382 {offsets = [0, 32], sizes = [2, 32], strides = [1, 1]} : vector<2x128xf32> to vector<2x32xf32>
    %415 = arith.negf %414 : vector<2x32xf32>
    %416 = math.exp %415 : vector<2x32xf32>
    %cst_75 = arith.constant 1.000000e+00 : f32
    %417 = vector.broadcast %cst_75 : f32 to vector<2x32xf32>
    %418 = arith.addf %417, %416 : vector<2x32xf32>
    %419 = arith.divf %417, %418 : vector<2x32xf32>
    %420 = vector.extract_strided_slice %382 {offsets = [0, 64], sizes = [2, 32], strides = [1, 1]} : vector<2x128xf32> to vector<2x32xf32>
    %421 = math.tanh %420 : vector<2x32xf32>
    %422 = vector.extract_strided_slice %382 {offsets = [0, 96], sizes = [2, 32], strides = [1, 1]} : vector<2x128xf32> to vector<2x32xf32>
    %423 = arith.negf %422 : vector<2x32xf32>
    %424 = math.exp %423 : vector<2x32xf32>
    %cst_76 = arith.constant 1.000000e+00 : f32
    %425 = vector.broadcast %cst_76 : f32 to vector<2x32xf32>
    %426 = arith.addf %425, %424 : vector<2x32xf32>
    %427 = arith.divf %425, %426 : vector<2x32xf32>
    %428 = arith.mulf %419, %370 : vector<2x32xf32>
    %429 = arith.mulf %413, %421 : vector<2x32xf32>
    %430 = arith.addf %428, %429 : vector<2x32xf32>
    %431 = math.tanh %430 : vector<2x32xf32>
    %432 = arith.mulf %427, %431 : vector<2x32xf32>
    %c12_77 = arith.constant 12 : index
    %c0_78 = arith.constant 0 : index
    %433 = vector.load %arg13[%c12_77, %c0_78] : memref<16x32xf32, #tpu.memory_space<vmem>>, vector<2x32xf32>
    tpu.vector_store %arg13[%c12_77, %c0_78], %407 {strides = array<i32>} : memref<16x32xf32, #tpu.memory_space<vmem>>, vector<2x32xf32>,
    %c2_79 = arith.constant 2 : index
    %c0_80 = arith.constant 0 : index
    %434 = vector.load %arg14[%c2_79, %c0_80] : memref<16x32xf32, #tpu.memory_space<vmem>>, vector<2x32xf32>
    tpu.vector_store %arg14[%c2_79, %c0_80], %432 {strides = array<i32>} : memref<16x32xf32, #tpu.memory_space<vmem>>, vector<2x32xf32>,
    %435 = tpu.concatenate %407, %432 in 1 : vector<2x32xf32>, vector<2x32xf32> -> vector<2x64xf32>
    %cst_81 = arith.constant dense<0.000000e+00> : vector<2x256xf32>
    %436 = tpu.matmul %435, %13, %cst_81 {dimension_numbers = #tpu.dot_dimension_numbers<[1], [0], [0], [1], [0, 0, 1, 1], [], []>} : vector<2x64xf32>, vector<64x256xf32>, vector<2x256xf32> -> vector<2x256xf32>
    %437 = vector.extract_strided_slice %12 {offsets = [14, 0], sizes = [2, 128], strides = [1, 1]} : vector<16x256xf32> to vector<2x128xf32>
    %438 = vector.extract_strided_slice %436 {offsets = [0, 0], sizes = [2, 128], strides = [1, 1]} : vector<2x256xf32> to vector<2x128xf32>
    %439 = arith.addf %437, %438 : vector<2x128xf32>
    %440 = vector.extract_strided_slice %12 {offsets = [0, 128], sizes = [2, 128], strides = [1, 1]} : vector<16x256xf32> to vector<2x128xf32>
    %441 = vector.extract_strided_slice %436 {offsets = [0, 128], sizes = [2, 128], strides = [1, 1]} : vector<2x256xf32> to vector<2x128xf32>
    %442 = arith.addf %440, %441 : vector<2x128xf32>
    %443 = vector.extract_strided_slice %439 {offsets = [0, 0], sizes = [2, 32], strides = [1, 1]} : vector<2x128xf32> to vector<2x32xf32>
    %444 = arith.negf %443 : vector<2x32xf32>
    %445 = math.exp %444 : vector<2x32xf32>
    %cst_82 = arith.constant 1.000000e+00 : f32
    %446 = vector.broadcast %cst_82 : f32 to vector<2x32xf32>
    %447 = arith.addf %446, %445 : vector<2x32xf32>
    %448 = arith.divf %446, %447 : vector<2x32xf32>
    %449 = vector.extract_strided_slice %439 {offsets = [0, 32], sizes = [2, 32], strides = [1, 1]} : vector<2x128xf32> to vector<2x32xf32>
    %450 = arith.negf %449 : vector<2x32xf32>
    %451 = math.exp %450 : vector<2x32xf32>
    %cst_83 = arith.constant 1.000000e+00 : f32
    %452 = vector.broadcast %cst_83 : f32 to vector<2x32xf32>
    %453 = arith.addf %452, %451 : vector<2x32xf32>
    %454 = arith.divf %452, %453 : vector<2x32xf32>
    %455 = vector.extract_strided_slice %439 {offsets = [0, 64], sizes = [2, 32], strides = [1, 1]} : vector<2x128xf32> to vector<2x32xf32>
    %456 = math.tanh %455 : vector<2x32xf32>
    %457 = vector.extract_strided_slice %439 {offsets = [0, 96], sizes = [2, 32], strides = [1, 1]} : vector<2x128xf32> to vector<2x32xf32>
    %458 = arith.negf %457 : vector<2x32xf32>
    %459 = math.exp %458 : vector<2x32xf32>
    %cst_84 = arith.constant 1.000000e+00 : f32
    %460 = vector.broadcast %cst_84 : f32 to vector<2x32xf32>
    %461 = arith.addf %460, %459 : vector<2x32xf32>
    %462 = arith.divf %460, %461 : vector<2x32xf32>
    %463 = arith.mulf %454, %405 : vector<2x32xf32>
    %464 = arith.mulf %448, %456 : vector<2x32xf32>
    %465 = arith.addf %463, %464 : vector<2x32xf32>
    %466 = math.tanh %465 : vector<2x32xf32>
    %467 = arith.mulf %462, %466 : vector<2x32xf32>
    %468 = vector.extract_strided_slice %442 {offsets = [0, 0], sizes = [2, 32], strides = [1, 1]} : vector<2x128xf32> to vector<2x32xf32>
    %469 = arith.negf %468 : vector<2x32xf32>
    %470 = math.exp %469 : vector<2x32xf32>
    %cst_85 = arith.constant 1.000000e+00 : f32
    %471 = vector.broadcast %cst_85 : f32 to vector<2x32xf32>
    %472 = arith.addf %471, %470 : vector<2x32xf32>
    %473 = arith.divf %471, %472 : vector<2x32xf32>
    %474 = vector.extract_strided_slice %442 {offsets = [0, 32], sizes = [2, 32], strides = [1, 1]} : vector<2x128xf32> to vector<2x32xf32>
    %475 = arith.negf %474 : vector<2x32xf32>
    %476 = math.exp %475 : vector<2x32xf32>
    %cst_86 = arith.constant 1.000000e+00 : f32
    %477 = vector.broadcast %cst_86 : f32 to vector<2x32xf32>
    %478 = arith.addf %477, %476 : vector<2x32xf32>
    %479 = arith.divf %477, %478 : vector<2x32xf32>
    %480 = vector.extract_strided_slice %442 {offsets = [0, 64], sizes = [2, 32], strides = [1, 1]} : vector<2x128xf32> to vector<2x32xf32>
    %481 = math.tanh %480 : vector<2x32xf32>
    %482 = vector.extract_strided_slice %442 {offsets = [0, 96], sizes = [2, 32], strides = [1, 1]} : vector<2x128xf32> to vector<2x32xf32>
    %483 = arith.negf %482 : vector<2x32xf32>
    %484 = math.exp %483 : vector<2x32xf32>
    %cst_87 = arith.constant 1.000000e+00 : f32
    %485 = vector.broadcast %cst_87 : f32 to vector<2x32xf32>
    %486 = arith.addf %485, %484 : vector<2x32xf32>
    %487 = arith.divf %485, %486 : vector<2x32xf32>
    %488 = arith.mulf %479, %430 : vector<2x32xf32>
    %489 = arith.mulf %473, %481 : vector<2x32xf32>
    %490 = arith.addf %488, %489 : vector<2x32xf32>
    %491 = math.tanh %490 : vector<2x32xf32>
    %492 = arith.mulf %487, %491 : vector<2x32xf32>
    %c14_88 = arith.constant 14 : index
    %c0_89 = arith.constant 0 : index
    %493 = vector.load %arg13[%c14_88, %c0_89] : memref<16x32xf32, #tpu.memory_space<vmem>>, vector<2x32xf32>
    tpu.vector_store %arg13[%c14_88, %c0_89], %467 {strides = array<i32>} : memref<16x32xf32, #tpu.memory_space<vmem>>, vector<2x32xf32>,
    %c0_90 = arith.constant 0 : index
    %c0_91 = arith.constant 0 : index
    %494 = vector.load %arg14[%c0_90, %c0_91] : memref<16x32xf32, #tpu.memory_space<vmem>>, vector<2x32xf32>
    tpu.vector_store %arg14[%c0_90, %c0_91], %492 {strides = array<i32>} : memref<16x32xf32, #tpu.memory_space<vmem>>, vector<2x32xf32>,
    %c0_92 = arith.constant 0 : index
    %c0_93 = arith.constant 0 : index
    %495 = vector.load %arg13[%c0_92, %c0_93] : memref<16x32xf32, #tpu.memory_space<vmem>>, vector<16x32xf32>
    %c0_94 = arith.constant 0 : index
    %c0_95 = arith.constant 0 : index
    %496 = vector.load %arg14[%c0_94, %c0_95] : memref<16x32xf32, #tpu.memory_space<vmem>>, vector<16x32xf32>
    %c0_96 = arith.constant 0 : index
    %c0_97 = arith.constant 0 : index
    %497 = vector.load %arg5[%c0_96, %c0_97] : memref<64x128xf32, #tpu.memory_space<vmem>>, vector<64x128xf32>
    %498 = vector.extract_strided_slice %497 {offsets = [0, 0], sizes = [32, 128], strides = [1, 1]} : vector<64x128xf32> to vector<32x128xf32>
    %cst_98 = arith.constant dense<0.000000e+00> : vector<16x128xf32>
    %499 = tpu.matmul %495, %498, %cst_98 {dimension_numbers = #tpu.dot_dimension_numbers<[1], [0], [0], [1], [0, 0, 1, 1], [], []>} : vector<16x32xf32>, vector<32x128xf32>, vector<16x128xf32> -> vector<16x128xf32>
    %500 = vector.extract_strided_slice %497 {offsets = [32, 0], sizes = [32, 128], strides = [1, 1]} : vector<64x128xf32> to vector<32x128xf32>
    %cst_99 = arith.constant dense<0.000000e+00> : vector<16x128xf32>
    %501 = tpu.matmul %496, %500, %cst_99 {dimension_numbers = #tpu.dot_dimension_numbers<[1], [0], [0], [1], [0, 0, 1, 1], [], []>} : vector<16x32xf32>, vector<32x128xf32>, vector<16x128xf32> -> vector<16x128xf32>
    %502 = arith.addf %499, %501 : vector<16x128xf32>
    %c0_100 = arith.constant 0 : index
    %c0_101 = arith.constant 0 : index
    %503 = vector.load %arg7[%c0_100, %c0_101] : memref<1x128xf32, #tpu.memory_space<vmem>>, vector<1x128xf32>
    %504 = vector.broadcast %503 : vector<1x128xf32> to vector<16x128xf32>
    %505 = arith.addf %502, %504 : vector<16x128xf32>
    %c0_102 = arith.constant 0 : index
    %c0_103 = arith.constant 0 : index
    %506 = vector.load %arg6[%c0_102, %c0_103] : memref<32x128xf32, #tpu.memory_space<vmem>>, vector<32x128xf32>
    %507 = vector.extract_strided_slice %505 {offsets = [14, 0], sizes = [2, 128], strides = [1, 1]} : vector<16x128xf32> to vector<2x128xf32>
    %cst_104 = arith.constant dense<0.000000e+00> : vector<2x128xf32>
    %508 = tpu.matmul %14, %506, %cst_104 {dimension_numbers = #tpu.dot_dimension_numbers<[1], [0], [0], [1], [0, 0, 1, 1], [], []>} : vector<2x32xf32>, vector<32x128xf32>, vector<2x128xf32> -> vector<2x128xf32>
    %509 = arith.addf %507, %508 : vector<2x128xf32>
    %510 = vector.extract_strided_slice %509 {offsets = [0, 0], sizes = [2, 32], strides = [1, 1]} : vector<2x128xf32> to vector<2x32xf32>
    %511 = arith.negf %510 : vector<2x32xf32>
    %512 = math.exp %511 : vector<2x32xf32>
    %cst_105 = arith.constant 1.000000e+00 : f32
    %513 = vector.broadcast %cst_105 : f32 to vector<2x32xf32>
    %514 = arith.addf %513, %512 : vector<2x32xf32>
    %515 = arith.divf %513, %514 : vector<2x32xf32>
    %516 = vector.extract_strided_slice %509 {offsets = [0, 32], sizes = [2, 32], strides = [1, 1]} : vector<2x128xf32> to vector<2x32xf32>
    %517 = arith.negf %516 : vector<2x32xf32>
    %518 = math.exp %517 : vector<2x32xf32>
    %cst_106 = arith.constant 1.000000e+00 : f32
    %519 = vector.broadcast %cst_106 : f32 to vector<2x32xf32>
    %520 = arith.addf %519, %518 : vector<2x32xf32>
    %521 = arith.divf %519, %520 : vector<2x32xf32>
    %522 = vector.extract_strided_slice %509 {offsets = [0, 64], sizes = [2, 32], strides = [1, 1]} : vector<2x128xf32> to vector<2x32xf32>
    %523 = math.tanh %522 : vector<2x32xf32>
    %524 = vector.extract_strided_slice %509 {offsets = [0, 96], sizes = [2, 32], strides = [1, 1]} : vector<2x128xf32> to vector<2x32xf32>
    %525 = arith.negf %524 : vector<2x32xf32>
    %526 = math.exp %525 : vector<2x32xf32>
    %cst_107 = arith.constant 1.000000e+00 : f32
    %527 = vector.broadcast %cst_107 : f32 to vector<2x32xf32>
    %528 = arith.addf %527, %526 : vector<2x32xf32>
    %529 = arith.divf %527, %528 : vector<2x32xf32>
    %530 = arith.mulf %521, %14 : vector<2x32xf32>
    %531 = arith.mulf %515, %523 : vector<2x32xf32>
    %532 = arith.addf %530, %531 : vector<2x32xf32>
    %533 = math.tanh %532 : vector<2x32xf32>
    %534 = arith.mulf %529, %533 : vector<2x32xf32>
    %535 = vector.extract_strided_slice %505 {offsets = [12, 0], sizes = [2, 128], strides = [1, 1]} : vector<16x128xf32> to vector<2x128xf32>
    %cst_108 = arith.constant dense<0.000000e+00> : vector<2x128xf32>
    %536 = tpu.matmul %534, %506, %cst_108 {dimension_numbers = #tpu.dot_dimension_numbers<[1], [0], [0], [1], [0, 0, 1, 1], [], []>} : vector<2x32xf32>, vector<32x128xf32>, vector<2x128xf32> -> vector<2x128xf32>
    %537 = arith.addf %535, %536 : vector<2x128xf32>
    %538 = vector.extract_strided_slice %537 {offsets = [0, 0], sizes = [2, 32], strides = [1, 1]} : vector<2x128xf32> to vector<2x32xf32>
    %539 = arith.negf %538 : vector<2x32xf32>
    %540 = math.exp %539 : vector<2x32xf32>
    %cst_109 = arith.constant 1.000000e+00 : f32
    %541 = vector.broadcast %cst_109 : f32 to vector<2x32xf32>
    %542 = arith.addf %541, %540 : vector<2x32xf32>
    %543 = arith.divf %541, %542 : vector<2x32xf32>
    %544 = vector.extract_strided_slice %537 {offsets = [0, 32], sizes = [2, 32], strides = [1, 1]} : vector<2x128xf32> to vector<2x32xf32>
    %545 = arith.negf %544 : vector<2x32xf32>
    %546 = math.exp %545 : vector<2x32xf32>
    %cst_110 = arith.constant 1.000000e+00 : f32
    %547 = vector.broadcast %cst_110 : f32 to vector<2x32xf32>
    %548 = arith.addf %547, %546 : vector<2x32xf32>
    %549 = arith.divf %547, %548 : vector<2x32xf32>
    %550 = vector.extract_strided_slice %537 {offsets = [0, 64], sizes = [2, 32], strides = [1, 1]} : vector<2x128xf32> to vector<2x32xf32>
    %551 = math.tanh %550 : vector<2x32xf32>
    %552 = vector.extract_strided_slice %537 {offsets = [0, 96], sizes = [2, 32], strides = [1, 1]} : vector<2x128xf32> to vector<2x32xf32>
    %553 = arith.negf %552 : vector<2x32xf32>
    %554 = math.exp %553 : vector<2x32xf32>
    %cst_111 = arith.constant 1.000000e+00 : f32
    %555 = vector.broadcast %cst_111 : f32 to vector<2x32xf32>
    %556 = arith.addf %555, %554 : vector<2x32xf32>
    %557 = arith.divf %555, %556 : vector<2x32xf32>
    %558 = arith.mulf %549, %532 : vector<2x32xf32>
    %559 = arith.mulf %543, %551 : vector<2x32xf32>
    %560 = arith.addf %558, %559 : vector<2x32xf32>
    %561 = math.tanh %560 : vector<2x32xf32>
    %562 = arith.mulf %557, %561 : vector<2x32xf32>
    %563 = vector.extract_strided_slice %505 {offsets = [10, 0], sizes = [2, 128], strides = [1, 1]} : vector<16x128xf32> to vector<2x128xf32>
    %cst_112 = arith.constant dense<0.000000e+00> : vector<2x128xf32>
    %564 = tpu.matmul %562, %506, %cst_112 {dimension_numbers = #tpu.dot_dimension_numbers<[1], [0], [0], [1], [0, 0, 1, 1], [], []>} : vector<2x32xf32>, vector<32x128xf32>, vector<2x128xf32> -> vector<2x128xf32>
    %565 = arith.addf %563, %564 : vector<2x128xf32>
    %566 = vector.extract_strided_slice %565 {offsets = [0, 0], sizes = [2, 32], strides = [1, 1]} : vector<2x128xf32> to vector<2x32xf32>
    %567 = arith.negf %566 : vector<2x32xf32>
    %568 = math.exp %567 : vector<2x32xf32>
    %cst_113 = arith.constant 1.000000e+00 : f32
    %569 = vector.broadcast %cst_113 : f32 to vector<2x32xf32>
    %570 = arith.addf %569, %568 : vector<2x32xf32>
    %571 = arith.divf %569, %570 : vector<2x32xf32>
    %572 = vector.extract_strided_slice %565 {offsets = [0, 32], sizes = [2, 32], strides = [1, 1]} : vector<2x128xf32> to vector<2x32xf32>
    %573 = arith.negf %572 : vector<2x32xf32>
    %574 = math.exp %573 : vector<2x32xf32>
    %cst_114 = arith.constant 1.000000e+00 : f32
    %575 = vector.broadcast %cst_114 : f32 to vector<2x32xf32>
    %576 = arith.addf %575, %574 : vector<2x32xf32>
    %577 = arith.divf %575, %576 : vector<2x32xf32>
    %578 = vector.extract_strided_slice %565 {offsets = [0, 64], sizes = [2, 32], strides = [1, 1]} : vector<2x128xf32> to vector<2x32xf32>
    %579 = math.tanh %578 : vector<2x32xf32>
    %580 = vector.extract_strided_slice %565 {offsets = [0, 96], sizes = [2, 32], strides = [1, 1]} : vector<2x128xf32> to vector<2x32xf32>
    %581 = arith.negf %580 : vector<2x32xf32>
    %582 = math.exp %581 : vector<2x32xf32>
    %cst_115 = arith.constant 1.000000e+00 : f32
    %583 = vector.broadcast %cst_115 : f32 to vector<2x32xf32>
    %584 = arith.addf %583, %582 : vector<2x32xf32>
    %585 = arith.divf %583, %584 : vector<2x32xf32>
    %586 = arith.mulf %577, %560 : vector<2x32xf32>
    %587 = arith.mulf %571, %579 : vector<2x32xf32>
    %588 = arith.addf %586, %587 : vector<2x32xf32>
    %589 = math.tanh %588 : vector<2x32xf32>
    %590 = arith.mulf %585, %589 : vector<2x32xf32>
    %591 = vector.extract_strided_slice %505 {offsets = [8, 0], sizes = [2, 128], strides = [1, 1]} : vector<16x128xf32> to vector<2x128xf32>
    %cst_116 = arith.constant dense<0.000000e+00> : vector<2x128xf32>
    %592 = tpu.matmul %590, %506, %cst_116 {dimension_numbers = #tpu.dot_dimension_numbers<[1], [0], [0], [1], [0, 0, 1, 1], [], []>} : vector<2x32xf32>, vector<32x128xf32>, vector<2x128xf32> -> vector<2x128xf32>
    %593 = arith.addf %591, %592 : vector<2x128xf32>
    %594 = vector.extract_strided_slice %593 {offsets = [0, 0], sizes = [2, 32], strides = [1, 1]} : vector<2x128xf32> to vector<2x32xf32>
    %595 = arith.negf %594 : vector<2x32xf32>
    %596 = math.exp %595 : vector<2x32xf32>
    %cst_117 = arith.constant 1.000000e+00 : f32
    %597 = vector.broadcast %cst_117 : f32 to vector<2x32xf32>
    %598 = arith.addf %597, %596 : vector<2x32xf32>
    %599 = arith.divf %597, %598 : vector<2x32xf32>
    %600 = vector.extract_strided_slice %593 {offsets = [0, 32], sizes = [2, 32], strides = [1, 1]} : vector<2x128xf32> to vector<2x32xf32>
    %601 = arith.negf %600 : vector<2x32xf32>
    %602 = math.exp %601 : vector<2x32xf32>
    %cst_118 = arith.constant 1.000000e+00 : f32
    %603 = vector.broadcast %cst_118 : f32 to vector<2x32xf32>
    %604 = arith.addf %603, %602 : vector<2x32xf32>
    %605 = arith.divf %603, %604 : vector<2x32xf32>
    %606 = vector.extract_strided_slice %593 {offsets = [0, 64], sizes = [2, 32], strides = [1, 1]} : vector<2x128xf32> to vector<2x32xf32>
    %607 = math.tanh %606 : vector<2x32xf32>
    %608 = vector.extract_strided_slice %593 {offsets = [0, 96], sizes = [2, 32], strides = [1, 1]} : vector<2x128xf32> to vector<2x32xf32>
    %609 = arith.negf %608 : vector<2x32xf32>
    %610 = math.exp %609 : vector<2x32xf32>
    %cst_119 = arith.constant 1.000000e+00 : f32
    %611 = vector.broadcast %cst_119 : f32 to vector<2x32xf32>
    %612 = arith.addf %611, %610 : vector<2x32xf32>
    %613 = arith.divf %611, %612 : vector<2x32xf32>
    %614 = arith.mulf %605, %588 : vector<2x32xf32>
    %615 = arith.mulf %599, %607 : vector<2x32xf32>
    %616 = arith.addf %614, %615 : vector<2x32xf32>
    %617 = math.tanh %616 : vector<2x32xf32>
    %618 = arith.mulf %613, %617 : vector<2x32xf32>
    %619 = vector.extract_strided_slice %505 {offsets = [6, 0], sizes = [2, 128], strides = [1, 1]} : vector<16x128xf32> to vector<2x128xf32>
    %cst_120 = arith.constant dense<0.000000e+00> : vector<2x128xf32>
    %620 = tpu.matmul %618, %506, %cst_120 {dimension_numbers = #tpu.dot_dimension_numbers<[1], [0], [0], [1], [0, 0, 1, 1], [], []>} : vector<2x32xf32>, vector<32x128xf32>, vector<2x128xf32> -> vector<2x128xf32>
    %621 = arith.addf %619, %620 : vector<2x128xf32>
    %622 = vector.extract_strided_slice %621 {offsets = [0, 0], sizes = [2, 32], strides = [1, 1]} : vector<2x128xf32> to vector<2x32xf32>
    %623 = arith.negf %622 : vector<2x32xf32>
    %624 = math.exp %623 : vector<2x32xf32>
    %cst_121 = arith.constant 1.000000e+00 : f32
    %625 = vector.broadcast %cst_121 : f32 to vector<2x32xf32>
    %626 = arith.addf %625, %624 : vector<2x32xf32>
    %627 = arith.divf %625, %626 : vector<2x32xf32>
    %628 = vector.extract_strided_slice %621 {offsets = [0, 32], sizes = [2, 32], strides = [1, 1]} : vector<2x128xf32> to vector<2x32xf32>
    %629 = arith.negf %628 : vector<2x32xf32>
    %630 = math.exp %629 : vector<2x32xf32>
    %cst_122 = arith.constant 1.000000e+00 : f32
    %631 = vector.broadcast %cst_122 : f32 to vector<2x32xf32>
    %632 = arith.addf %631, %630 : vector<2x32xf32>
    %633 = arith.divf %631, %632 : vector<2x32xf32>
    %634 = vector.extract_strided_slice %621 {offsets = [0, 64], sizes = [2, 32], strides = [1, 1]} : vector<2x128xf32> to vector<2x32xf32>
    %635 = math.tanh %634 : vector<2x32xf32>
    %636 = vector.extract_strided_slice %621 {offsets = [0, 96], sizes = [2, 32], strides = [1, 1]} : vector<2x128xf32> to vector<2x32xf32>
    %637 = arith.negf %636 : vector<2x32xf32>
    %638 = math.exp %637 : vector<2x32xf32>
    %cst_123 = arith.constant 1.000000e+00 : f32
    %639 = vector.broadcast %cst_123 : f32 to vector<2x32xf32>
    %640 = arith.addf %639, %638 : vector<2x32xf32>
    %641 = arith.divf %639, %640 : vector<2x32xf32>
    %642 = arith.mulf %633, %616 : vector<2x32xf32>
    %643 = arith.mulf %627, %635 : vector<2x32xf32>
    %644 = arith.addf %642, %643 : vector<2x32xf32>
    %645 = math.tanh %644 : vector<2x32xf32>
    %646 = arith.mulf %641, %645 : vector<2x32xf32>
    %647 = vector.extract_strided_slice %505 {offsets = [4, 0], sizes = [2, 128], strides = [1, 1]} : vector<16x128xf32> to vector<2x128xf32>
    %cst_124 = arith.constant dense<0.000000e+00> : vector<2x128xf32>
    %648 = tpu.matmul %646, %506, %cst_124 {dimension_numbers = #tpu.dot_dimension_numbers<[1], [0], [0], [1], [0, 0, 1, 1], [], []>} : vector<2x32xf32>, vector<32x128xf32>, vector<2x128xf32> -> vector<2x128xf32>
    %649 = arith.addf %647, %648 : vector<2x128xf32>
    %650 = vector.extract_strided_slice %649 {offsets = [0, 0], sizes = [2, 32], strides = [1, 1]} : vector<2x128xf32> to vector<2x32xf32>
    %651 = arith.negf %650 : vector<2x32xf32>
    %652 = math.exp %651 : vector<2x32xf32>
    %cst_125 = arith.constant 1.000000e+00 : f32
    %653 = vector.broadcast %cst_125 : f32 to vector<2x32xf32>
    %654 = arith.addf %653, %652 : vector<2x32xf32>
    %655 = arith.divf %653, %654 : vector<2x32xf32>
    %656 = vector.extract_strided_slice %649 {offsets = [0, 32], sizes = [2, 32], strides = [1, 1]} : vector<2x128xf32> to vector<2x32xf32>
    %657 = arith.negf %656 : vector<2x32xf32>
    %658 = math.exp %657 : vector<2x32xf32>
    %cst_126 = arith.constant 1.000000e+00 : f32
    %659 = vector.broadcast %cst_126 : f32 to vector<2x32xf32>
    %660 = arith.addf %659, %658 : vector<2x32xf32>
    %661 = arith.divf %659, %660 : vector<2x32xf32>
    %662 = vector.extract_strided_slice %649 {offsets = [0, 64], sizes = [2, 32], strides = [1, 1]} : vector<2x128xf32> to vector<2x32xf32>
    %663 = math.tanh %662 : vector<2x32xf32>
    %664 = vector.extract_strided_slice %649 {offsets = [0, 96], sizes = [2, 32], strides = [1, 1]} : vector<2x128xf32> to vector<2x32xf32>
    %665 = arith.negf %664 : vector<2x32xf32>
    %666 = math.exp %665 : vector<2x32xf32>
    %cst_127 = arith.constant 1.000000e+00 : f32
    %667 = vector.broadcast %cst_127 : f32 to vector<2x32xf32>
    %668 = arith.addf %667, %666 : vector<2x32xf32>
    %669 = arith.divf %667, %668 : vector<2x32xf32>
    %670 = arith.mulf %661, %644 : vector<2x32xf32>
    %671 = arith.mulf %655, %663 : vector<2x32xf32>
    %672 = arith.addf %670, %671 : vector<2x32xf32>
    %673 = math.tanh %672 : vector<2x32xf32>
    %674 = arith.mulf %669, %673 : vector<2x32xf32>
    %675 = vector.extract_strided_slice %505 {offsets = [2, 0], sizes = [2, 128], strides = [1, 1]} : vector<16x128xf32> to vector<2x128xf32>
    %cst_128 = arith.constant dense<0.000000e+00> : vector<2x128xf32>
    %676 = tpu.matmul %674, %506, %cst_128 {dimension_numbers = #tpu.dot_dimension_numbers<[1], [0], [0], [1], [0, 0, 1, 1], [], []>} : vector<2x32xf32>, vector<32x128xf32>, vector<2x128xf32> -> vector<2x128xf32>
    %677 = arith.addf %675, %676 : vector<2x128xf32>
    %678 = vector.extract_strided_slice %677 {offsets = [0, 0], sizes = [2, 32], strides = [1, 1]} : vector<2x128xf32> to vector<2x32xf32>
    %679 = arith.negf %678 : vector<2x32xf32>
    %680 = math.exp %679 : vector<2x32xf32>
    %cst_129 = arith.constant 1.000000e+00 : f32
    %681 = vector.broadcast %cst_129 : f32 to vector<2x32xf32>
    %682 = arith.addf %681, %680 : vector<2x32xf32>
    %683 = arith.divf %681, %682 : vector<2x32xf32>
    %684 = vector.extract_strided_slice %677 {offsets = [0, 32], sizes = [2, 32], strides = [1, 1]} : vector<2x128xf32> to vector<2x32xf32>
    %685 = arith.negf %684 : vector<2x32xf32>
    %686 = math.exp %685 : vector<2x32xf32>
    %cst_130 = arith.constant 1.000000e+00 : f32
    %687 = vector.broadcast %cst_130 : f32 to vector<2x32xf32>
    %688 = arith.addf %687, %686 : vector<2x32xf32>
    %689 = arith.divf %687, %688 : vector<2x32xf32>
    %690 = vector.extract_strided_slice %677 {offsets = [0, 64], sizes = [2, 32], strides = [1, 1]} : vector<2x128xf32> to vector<2x32xf32>
    %691 = math.tanh %690 : vector<2x32xf32>
    %692 = vector.extract_strided_slice %677 {offsets = [0, 96], sizes = [2, 32], strides = [1, 1]} : vector<2x128xf32> to vector<2x32xf32>
    %693 = arith.negf %692 : vector<2x32xf32>
    %694 = math.exp %693 : vector<2x32xf32>
    %cst_131 = arith.constant 1.000000e+00 : f32
    %695 = vector.broadcast %cst_131 : f32 to vector<2x32xf32>
    %696 = arith.addf %695, %694 : vector<2x32xf32>
    %697 = arith.divf %695, %696 : vector<2x32xf32>
    %698 = arith.mulf %689, %672 : vector<2x32xf32>
    %699 = arith.mulf %683, %691 : vector<2x32xf32>
    %700 = arith.addf %698, %699 : vector<2x32xf32>
    %701 = math.tanh %700 : vector<2x32xf32>
    %702 = arith.mulf %697, %701 : vector<2x32xf32>
    %703 = vector.extract_strided_slice %505 {offsets = [0, 0], sizes = [2, 128], strides = [1, 1]} : vector<16x128xf32> to vector<2x128xf32>
    %cst_132 = arith.constant dense<0.000000e+00> : vector<2x128xf32>
    %704 = tpu.matmul %702, %506, %cst_132 {dimension_numbers = #tpu.dot_dimension_numbers<[1], [0], [0], [1], [0, 0, 1, 1], [], []>} : vector<2x32xf32>, vector<32x128xf32>, vector<2x128xf32> -> vector<2x128xf32>
    %705 = arith.addf %703, %704 : vector<2x128xf32>
    %706 = vector.extract_strided_slice %705 {offsets = [0, 0], sizes = [2, 32], strides = [1, 1]} : vector<2x128xf32> to vector<2x32xf32>
    %707 = arith.negf %706 : vector<2x32xf32>
    %708 = math.exp %707 : vector<2x32xf32>
    %cst_133 = arith.constant 1.000000e+00 : f32
    %709 = vector.broadcast %cst_133 : f32 to vector<2x32xf32>
    %710 = arith.addf %709, %708 : vector<2x32xf32>
    %711 = arith.divf %709, %710 : vector<2x32xf32>
    %712 = vector.extract_strided_slice %705 {offsets = [0, 32], sizes = [2, 32], strides = [1, 1]} : vector<2x128xf32> to vector<2x32xf32>
    %713 = arith.negf %712 : vector<2x32xf32>
    %714 = math.exp %713 : vector<2x32xf32>
    %cst_134 = arith.constant 1.000000e+00 : f32
    %715 = vector.broadcast %cst_134 : f32 to vector<2x32xf32>
    %716 = arith.addf %715, %714 : vector<2x32xf32>
    %717 = arith.divf %715, %716 : vector<2x32xf32>
    %718 = vector.extract_strided_slice %705 {offsets = [0, 64], sizes = [2, 32], strides = [1, 1]} : vector<2x128xf32> to vector<2x32xf32>
    %719 = math.tanh %718 : vector<2x32xf32>
    %720 = vector.extract_strided_slice %705 {offsets = [0, 96], sizes = [2, 32], strides = [1, 1]} : vector<2x128xf32> to vector<2x32xf32>
    %721 = arith.negf %720 : vector<2x32xf32>
    %722 = math.exp %721 : vector<2x32xf32>
    %cst_135 = arith.constant 1.000000e+00 : f32
    %723 = vector.broadcast %cst_135 : f32 to vector<2x32xf32>
    %724 = arith.addf %723, %722 : vector<2x32xf32>
    %725 = arith.divf %723, %724 : vector<2x32xf32>
    %726 = arith.mulf %717, %700 : vector<2x32xf32>
    %727 = arith.mulf %711, %719 : vector<2x32xf32>
    %728 = arith.addf %726, %727 : vector<2x32xf32>
    %729 = math.tanh %728 : vector<2x32xf32>
    %730 = arith.mulf %725, %729 : vector<2x32xf32>
    %c0_136 = arith.constant 0 : index
    %c0_137 = arith.constant 0 : index
    %731 = vector.load %arg8[%c0_136, %c0_137] : memref<32x32xf32, #tpu.memory_space<vmem>>, vector<32x32xf32>
    %cst_138 = arith.constant dense<0.000000e+00> : vector<2x32xf32>
    %732 = tpu.matmul %730, %731, %cst_138 {dimension_numbers = #tpu.dot_dimension_numbers<[1], [0], [0], [1], [0, 0, 1, 1], [], []>} : vector<2x32xf32>, vector<32x32xf32>, vector<2x32xf32> -> vector<2x32xf32>
    %c0_139 = arith.constant 0 : index
    %c0_140 = arith.constant 0 : index
    %733 = vector.load %arg9[%c0_139, %c0_140] : memref<1x32xf32, #tpu.memory_space<vmem>>, vector<1x32xf32>
    %734 = vector.broadcast %733 : vector<1x32xf32> to vector<2x32xf32>
    %735 = arith.addf %732, %734 : vector<2x32xf32>
    %c0_141 = arith.constant 0 : index
    %c0_142 = arith.constant 0 : index
    %736 = vector.load %arg10[%c0_141, %c0_142] : memref<32x64xf32, #tpu.memory_space<vmem>>, vector<32x64xf32>
    %cst_143 = arith.constant dense<0.000000e+00> : vector<2x64xf32>
    %737 = tpu.matmul %735, %736, %cst_143 {dimension_numbers = #tpu.dot_dimension_numbers<[1], [0], [0], [1], [0, 0, 1, 1], [], []>} : vector<2x32xf32>, vector<32x64xf32>, vector<2x64xf32> -> vector<2x64xf32>
    %c0_144 = arith.constant 0 : index
    %c0_145 = arith.constant 0 : index
    %738 = vector.load %arg11[%c0_144, %c0_145] : memref<1x64xf32, #tpu.memory_space<vmem>>, vector<1x64xf32>
    %739 = vector.broadcast %738 : vector<1x64xf32> to vector<2x64xf32>
    %740 = arith.addf %737, %739 : vector<2x64xf32>
    %c0_146 = arith.constant 0 : index
    %c0_147 = arith.constant 0 : index
    %741 = vector.load %arg12[%c0_146, %c0_147] : memref<2x64xf32, #tpu.memory_space<vmem>>, vector<2x64xf32>
    tpu.vector_store %arg12[%c0_146, %c0_147], %740 {strides = array<i32>} : memref<2x64xf32, #tpu.memory_space<vmem>>, vector<2x64xf32>,
    return
  }
}

</mosaic_0001>

<llo_original>
// kernel: lofi_lstm_forward.1
$region0: #{lofi_lstm_forward.1}
  #allocation0 [shape = 'u32[]', space=smem, size = 0x4, offset = 0x4, fixed_abs, tag = 'smem constant byte address 0x4 - core index']
  #allocation1 [shape = 'u32[144,128]{1,0:T(1,128)}', space=vmem, size = 0x12000, scoped, tag = 'internal scratch']
  #allocation2 [shape = 'f32[16,32]{1,0:T(8,128)}', space=vmem, size = 0x2000, scoped, tag = 'scratch operand']
  #allocation3 [shape = 'f32[16,32]{1,0:T(8,128)}', space=vmem, size = 0x2000, scoped, tag = 'scratch operand']
  %s0 = inlined_call_operand.vmem [shape: s32[16,1], index: 0, kind: input, shape index: {}]
  %s1 = inlined_call_operand.vmem [shape: f32[64,32], index: 1, kind: input, shape index: {}]
  %s2 = inlined_call_operand.vmem [shape: f32[32,256], index: 2, kind: input, shape index: {}]
  %s3 = inlined_call_operand.vmem [shape: f32[64,256], index: 3, kind: input, shape index: {}]
  %s4 = inlined_call_operand.vmem [shape: f32[1,256], index: 4, kind: input, shape index: {}]
  %s5 = inlined_call_operand.vmem [shape: f32[64,128], index: 5, kind: input, shape index: {}]
  %s6 = inlined_call_operand.vmem [shape: f32[32,128], index: 6, kind: input, shape index: {}]
  %s7 = inlined_call_operand.vmem [shape: f32[1,128], index: 7, kind: input, shape index: {}]
  %s8 = inlined_call_operand.vmem [shape: f32[32,32], index: 8, kind: input, shape index: {}]
  %s9 = inlined_call_operand.vmem [shape: f32[1,32], index: 9, kind: input, shape index: {}]
  %s10 = inlined_call_operand.vmem [shape: f32[32,64], index: 10, kind: input, shape index: {}]
  %s11 = inlined_call_operand.vmem [shape: f32[1,64], index: 11, kind: input, shape index: {}]
  %s12 = inlined_call_operand.hbm [shape: f32[2,64], index: 12, kind: output, shape index: {}]
  %s13 = sld [smem:[#allocation0]]
  $region58: #{lofi_lstm_forward.1} parent=0
    _
  %s15 = ssub.s32 1, %s13
  %s16 = scalar_select 0, %s15, %s13
  $region1: #{lofi_lstm_forward.1} parent=0
    #allocation4 [shape = 'u8[1024]{0}', space=vmem, size = 0x400, scoped, tag = 'output window, operand 0, single buffered']
    #allocation5 [shape = 's32[1]{0}', space=sflag, size = 0x4, scoped, tag = 'scoped memory for lofi_lstm_forward.1']
    %17 = vsyncpa [#allocation5], 0
    // Predicated region
    $region2: #{lofi_lstm_forward.1} parent=1 // pred_check
      _
    $region3: #{lofi_lstm_forward.1} parent=1 // pred_check_branch
      %19 = sbr.rel (0) target = $region5
    $region4: #{lofi_lstm_forward.1} parent=1 // pred_region
      _
    $region5: #{lofi_lstm_forward.1} parent=1 // pred_fallthru
      _
    // Predicated region
    $region6: #{lofi_lstm_forward.1} parent=1 // pred_check
      _
    $region7: #{lofi_lstm_forward.1} parent=1 // pred_check_branch
      %21 = sbr.rel (0) target = $region9
    $region8: #{lofi_lstm_forward.1} parent=1 // pred_region
      _
    $region9: #{lofi_lstm_forward.1} parent=1 // pred_fallthru
      _
    // Predicated region
    $region10: #{lofi_lstm_forward.1} parent=1 // pred_check
      _
    $region11: #{lofi_lstm_forward.1} parent=1 // pred_check_branch
      %23 = sbr.rel (0) target = $region13
    $region12: #{lofi_lstm_forward.1} parent=1 // pred_region
      _
    $region13: #{lofi_lstm_forward.1} parent=1 // pred_fallthru
      _
    // Predicated region
    $region14: #{lofi_lstm_forward.1} parent=1 // pred_check
      _
    $region15: #{lofi_lstm_forward.1} parent=1 // pred_check_branch
      %25 = sbr.rel (0) target = $region17
    $region16: #{lofi_lstm_forward.1} parent=1 // pred_region
      _
    $region17: #{lofi_lstm_forward.1} parent=1 // pred_fallthru
      _
    // Predicated region
    $region18: #{lofi_lstm_forward.1} parent=1 // pred_check
      _
    $region19: #{lofi_lstm_forward.1} parent=1 // pred_check_branch
      %27 = sbr.rel (0) target = $region21
    $region20: #{lofi_lstm_forward.1} parent=1 // pred_region
      _
    $region21: #{lofi_lstm_forward.1} parent=1 // pred_fallthru
      _
    // Predicated region
    $region22: #{lofi_lstm_forward.1} parent=1 // pred_check
      _
    $region23: #{lofi_lstm_forward.1} parent=1 // pred_check_branch
      %29 = sbr.rel (0) target = $region25
    $region24: #{lofi_lstm_forward.1} parent=1 // pred_region
      _
    $region25: #{lofi_lstm_forward.1} parent=1 // pred_fallthru
      _
    // Predicated region
    $region26: #{lofi_lstm_forward.1} parent=1 // pred_check
      _
    $region27: #{lofi_lstm_forward.1} parent=1 // pred_check_branch
      %31 = sbr.rel (0) target = $region29
    $region28: #{lofi_lstm_forward.1} parent=1 // pred_region
      _
    $region29: #{lofi_lstm_forward.1} parent=1 // pred_fallthru
      _
    // Predicated region
    $region30: #{lofi_lstm_forward.1} parent=1 // pred_check
      _
    $region31: #{lofi_lstm_forward.1} parent=1 // pred_check_branch
      %33 = sbr.rel (0) target = $region33
    $region32: #{lofi_lstm_forward.1} parent=1 // pred_region
      _
    $region33: #{lofi_lstm_forward.1} parent=1 // pred_fallthru
      _
    // Predicated region
    $region34: #{lofi_lstm_forward.1} parent=1 // pred_check
      _
    $region35: #{lofi_lstm_forward.1} parent=1 // pred_check_branch
      %35 = sbr.rel (0) target = $region37
    $region36: #{lofi_lstm_forward.1} parent=1 // pred_region
      _
    $region37: #{lofi_lstm_forward.1} parent=1 // pred_fallthru
      _
    // Predicated region
    $region38: #{lofi_lstm_forward.1} parent=1 // pred_check
      _
    $region39: #{lofi_lstm_forward.1} parent=1 // pred_check_branch
      %37 = sbr.rel (0) target = $region41
    $region40: #{lofi_lstm_forward.1} parent=1 // pred_region
      _
    $region41: #{lofi_lstm_forward.1} parent=1 // pred_fallthru
      _
    // Predicated region
    $region42: #{lofi_lstm_forward.1} parent=1 // pred_check
      _
    $region43: #{lofi_lstm_forward.1} parent=1 // pred_check_branch
      %39 = sbr.rel (0) target = $region45
    $region44: #{lofi_lstm_forward.1} parent=1 // pred_region
      _
    $region45: #{lofi_lstm_forward.1} parent=1 // pred_fallthru
      _
    // Predicated region
    $region46: #{lofi_lstm_forward.1} parent=1 // pred_check
      _
    $region47: #{lofi_lstm_forward.1} parent=1 // pred_check_branch
      %41 = sbr.rel (0) target = $region49
    $region48: #{lofi_lstm_forward.1} parent=1 // pred_region
      _
    $region49: #{lofi_lstm_forward.1} parent=1 // pred_fallthru
      _
    %v42 = vld [vmem:[%s0] sm:$0xff]
    %v43 = vld [vmem:[%s0 + $0x8] sm:$0xff]
    %v44 = vlaneseq
    %v45 = vand.u32 %v44, 127
    %46 = vset.pattern.permute.xlu0 0
    %47 = vperm.xlu0 %46, %v42
    %v48 = vpop.permute.xlu0 %47
    %49 = vset.pattern.permute.xlu0 0
    %50 = vperm.xlu0 %49, %v43
    %v51 = vpop.permute.xlu0 %50
    %vm52 = vcmp.eq.s32.totalorder %v45, %v48
    %vm53 = vcmp.eq.s32.totalorder %v45, %v51
    %v54 = vsel %vm52, 1, 0
    %v55 = vsel %vm53, 1, 0
    %v56 = vcvt.s32.f32 %v54
    %v57 = vcvt.s32.f32 %v55
    %v58 = vld [vmem:[%s1] sm:$0xff]
    %v59 = vld [vmem:[%s1 + $0x8] sm:$0xff]
    %v60 = vld [vmem:[%s1 + $0x10] sm:$0xff]
    %v61 = vld [vmem:[%s1 + $0x18] sm:$0xff]
    %v62 = vld [vmem:[%s1 + $0x20] sm:$0xff]
    %v63 = vld [vmem:[%s1 + $0x28] sm:$0xff]
    %v64 = vld [vmem:[%s1 + $0x30] sm:$0xff]
    %v65 = vld [vmem:[%s1 + $0x38] sm:$0xff]
    %vm66 = vcmask 523264
    %v68 = vsel %vm66, %v56, 0
    %v71 = vsel %vm66, %v57, 0
    %73 = vmatprep.subr.mxu0 0.0
    %74 = vmatpush1.msra.mxu0 %v58
    %75 = vmatprep.subr.mxu0 0.0
    %76 = vmatpush1.msra.mxu0 %v59
    %77 = vmatprep.subr.mxu0 0.0
    %78 = vmatpush1.msra.mxu0 %v60
    %79 = vmatprep.subr.mxu0 0.0
    %80 = vmatpush1.msra.mxu0 %v61
    %81 = vmatprep.subr.mxu0 0.0
    %82 = vmatpush1.msra.mxu0 %v62
    %83 = vmatprep.subr.mxu0 0.0
    %84 = vmatpush1.msra.mxu0 %v63
    %85 = vmatprep.subr.mxu0 0.0
    %86 = vmatpush1.msra.mxu0 %v64
    %87 = vmatprep.subr.mxu0 0.0
    %88 = vmatpush1.msra.mxu0 %v65
    %89 = vmatprep.subr.mxu0 0.0
    %90 = vmatpush1.msra.mxu0 0.0
    %91 = vmatprep.subr.mxu0 0.0
    %92 = vmatpush1.msra.mxu0 0.0
    %93 = vmatprep.subr.mxu0 0.0
    %94 = vmatpush1.msra.mxu0 0.0
    %95 = vmatprep.subr.mxu0 0.0
    %96 = vmatpush1.msra.mxu0 0.0
    %97 = vmatprep.subr.mxu0 0.0
    %98 = vmatpush1.msra.mxu0 0.0
    %99 = vmatprep.subr.mxu0 0.0
    %100 = vmatpush1.msra.mxu0 0.0
    %101 = vmatprep.subr.mxu0 0.0
    %102 = vmatpush1.msra.mxu0 0.0
    %103 = vmatprep.subr.mxu0 0.0
    %104 = vmatpush1.msra.mxu0 0.0
    %105 = vmatprep.subr.mxu0 0.0
    %106 = vmatpush1.msra.mxu0 0.0
    %107 = vmatprep.subr.mxu0 0.0
    %108 = vmatpush1.msra.mxu0 0.0
    %109 = vmatprep.subr.mxu0 0.0
    %110 = vmatpush1.msra.mxu0 0.0
    %111 = vmatprep.subr.mxu0 0.0
    %112 = vmatpush1.msra.mxu0 0.0
    %113 = vmatprep.subr.mxu0 0.0
    %114 = vmatpush1.msra.mxu0 0.0
    %115 = vmatprep.subr.mxu0 0.0
    %116 = vmatpush1.msra.mxu0 0.0
    %117 = vmatprep.subr.mxu0 0.0
    %118 = vmatpush1.msra.mxu0 0.0
    %119 = vmatprep.subr.mxu0 0.0
    %120 = vmatpush1.msra.mxu0 0.0
    %121 = vmatprep.subr.mxu0 0.0
    %122 = vmatpush1.msra.mxu0 0.0
    %123 = vmatprep.subr.mxu0 0.0
    %124 = vmatpush1.msra.mxu0 0.0
    %125 = vmatprep.subr.mxu0 0.0
    %126 = vmatpush1.msra.mxu0 0.0
    %127 = vmatprep.subr.mxu0 0.0
    %128 = vmatpush1.msra.mxu0 0.0
    %129 = vmatprep.subr.mxu0 0.0
    %130 = vmatpush1.msra.mxu0 0.0
    %131 = vmatprep.subr.mxu0 0.0
    %132 = vmatpush1.msra.mxu0 0.0
    %133 = vmatprep.subr.mxu0 0.0
    %134 = vmatpush1.msra.mxu0 0.0
    %135 = vmatprep.subr.mxu0 0.0
    %136 = vmatpush1.msra.mxu0 0.0
    %137 = vmatprep.mubr.f32.mxu0 0.0
    %138 = vmatmul.mubr.f32.gmra.mrb[0].mxu0 %v68
    %v139 = vpop.f32.mrb[0].mxu0
    %v140 = vadd.f32 0.0, %v139
    %v141 = vpop.f32.mrb[0].mxu0
    %142 = vmatprep.mubr.f32.mxu0 0.0
    %143 = vmatmul.mubr.f32.gmra.mrb[0].mxu0 %v71
    %v144 = vpop.f32.mrb[0].mxu0
    %v145 = vadd.f32 0.0, %v144
    %v146 = vpop.f32.mrb[0].mxu0
    %147 = vdwg.mxu0
    %v148 = vld [vmem:[%s2] sm:$0xff]
    %v149 = vld [vmem:[%s2 + $0x8] sm:$0xff]
    %v150 = vld [vmem:[%s2 + $0x10] sm:$0xff]
    %v151 = vld [vmem:[%s2 + $0x18] sm:$0xff]
    %v152 = vld [vmem:[%s2 + $0x20] sm:$0xff]
    %v153 = vld [vmem:[%s2 + $0x28] sm:$0xff]
    %v154 = vld [vmem:[%s2 + $0x30] sm:$0xff]
    %v155 = vld [vmem:[%s2 + $0x38] sm:$0xff]
    %v156 = vld [vmem:[%s4] sm:$0x3]
    %v158 = vlaneseq
    %v159 = vshrl.u32 %v158, 7
    %v160 = vsub.s32 0, %v159
    %v161 = vrot.slane %v156, %v160
    %v162 = vlaneseq
    %v163 = vshrl.u32 %v162, 7
    %v164 = vsub.s32 1, %v163
    %v165 = vrot.slane %v156, %v164
    %vm168 = vcmask 261120
    %v170 = vsel %vm168, %v140, 0
    %v173 = vsel %vm168, %v145, 0
    %175 = vmatprep.subr.mxu0 %v149
    %176 = vmatpush1.msra.mxu0 %v148
    %177 = vmatprep.subr.mxu0 %v151
    %178 = vmatpush1.msra.mxu0 %v150
    %179 = vmatprep.subr.mxu0 %v153
    %180 = vmatpush1.msra.mxu0 %v152
    %181 = vmatprep.subr.mxu0 %v155
    %182 = vmatpush1.msra.mxu0 %v154
    %183 = vmatprep.subr.mxu0 0.0
    %184 = vmatpush1.msra.mxu0 0.0
    %185 = vmatprep.subr.mxu0 0.0
    %186 = vmatpush1.msra.mxu0 0.0
    %187 = vmatprep.subr.mxu0 0.0
    %188 = vmatpush1.msra.mxu0 0.0
    %189 = vmatprep.subr.mxu0 0.0
    %190 = vmatpush1.msra.mxu0 0.0
    %191 = vmatprep.subr.mxu0 0.0
    %192 = vmatpush1.msra.mxu0 0.0
    %193 = vmatprep.subr.mxu0 0.0
    %194 = vmatpush1.msra.mxu0 0.0
    %195 = vmatprep.subr.mxu0 0.0
    %196 = vmatpush1.msra.mxu0 0.0
    %197 = vmatprep.subr.mxu0 0.0
    %198 = vmatpush1.msra.mxu0 0.0
    %199 = vmatprep.subr.mxu0 0.0
    %200 = vmatpush1.msra.mxu0 0.0
    %201 = vmatprep.subr.mxu0 0.0
    %202 = vmatpush1.msra.mxu0 0.0
    %203 = vmatprep.subr.mxu0 0.0
    %204 = vmatpush1.msra.mxu0 0.0
    %205 = vmatprep.subr.mxu0 0.0
    %206 = vmatpush1.msra.mxu0 0.0
    %207 = vmatprep.subr.mxu0 0.0
    %208 = vmatpush1.msra.mxu0 0.0
    %209 = vmatprep.subr.mxu0 0.0
    %210 = vmatpush1.msra.mxu0 0.0
    %211 = vmatprep.subr.mxu0 0.0
    %212 = vmatpush1.msra.mxu0 0.0
    %213 = vmatprep.subr.mxu0 0.0
    %214 = vmatpush1.msra.mxu0 0.0
    %215 = vmatprep.subr.mxu0 0.0
    %216 = vmatpush1.msra.mxu0 0.0
    %217 = vmatprep.subr.mxu0 0.0
    %218 = vmatpush1.msra.mxu0 0.0
    %219 = vmatprep.subr.mxu0 0.0
    %220 = vmatpush1.msra.mxu0 0.0
    %221 = vmatprep.subr.mxu0 0.0
    %222 = vmatpush1.msra.mxu0 0.0
    %223 = vmatprep.subr.mxu0 0.0
    %224 = vmatpush1.msra.mxu0 0.0
    %225 = vmatprep.subr.mxu0 0.0
    %226 = vmatpush1.msra.mxu0 0.0
    %227 = vmatprep.subr.mxu0 0.0
    %228 = vmatpush1.msra.mxu0 0.0
    %229 = vmatprep.subr.mxu0 0.0
    %230 = vmatpush1.msra.mxu0 0.0
    %231 = vmatprep.subr.mxu0 0.0
    %232 = vmatpush1.msra.mxu0 0.0
    %233 = vmatprep.subr.mxu0 0.0
    %234 = vmatpush1.msra.mxu0 0.0
    %235 = vmatprep.subr.mxu0 0.0
    %236 = vmatpush1.msra.mxu0 0.0
    %237 = vmatprep.subr.mxu0 0.0
    %238 = vmatpush1.msra.mxu0 0.0
    %239 = vmatprep.mubr.f32.mxu0 0.0
    %240 = vmatmul.mubr.f32.gmra.mrb[0].mxu0 %v170
    %v241 = vpop.f32.mrb[0].mxu0
    %v242 = vadd.f32 %v161, %v241
    %v243 = vpop.f32.mrb[0].mxu0
    %v244 = vadd.f32 %v165, %v243
    %245 = vmatprep.mubr.f32.mxu0 0.0
    %246 = vmatmul.mubr.f32.gmra.mrb[0].mxu0 %v173
    %v247 = vpop.f32.mrb[0].mxu0
    %v248 = vadd.f32 %v161, %v247
    %v249 = vpop.f32.mrb[0].mxu0
    %v250 = vadd.f32 %v165, %v249
    %251 = vdwg.mxu0
    %v252 = vld [vmem:[%s3] sm:$0xff]
    %v253 = vld [vmem:[%s3 + $0x8] sm:$0xff]
    %v254 = vld [vmem:[%s3 + $0x10] sm:$0xff]
    %v255 = vld [vmem:[%s3 + $0x18] sm:$0xff]
    %v256 = vld [vmem:[%s3 + $0x20] sm:$0xff]
    %v257 = vld [vmem:[%s3 + $0x28] sm:$0xff]
    %v258 = vld [vmem:[%s3 + $0x30] sm:$0xff]
    %v259 = vld [vmem:[%s3 + $0x38] sm:$0xff]
    %v260 = vld [vmem:[%s3 + $0x40] sm:$0xff]
    %v261 = vld [vmem:[%s3 + $0x48] sm:$0xff]
    %v262 = vld [vmem:[%s3 + $0x50] sm:$0xff]
    %v263 = vld [vmem:[%s3 + $0x58] sm:$0xff]
    %v264 = vld [vmem:[%s3 + $0x60] sm:$0xff]
    %v265 = vld [vmem:[%s3 + $0x68] sm:$0xff]
    %v266 = vld [vmem:[%s3 + $0x70] sm:$0xff]
    %v267 = vld [vmem:[%s3 + $0x78] sm:$0xff]
    %v269 = vsel %vm66, 0.0, 0
    %271 = vmatprep.subr.mxu0 %v253
    %272 = vmatpush1.msra.mxu0 %v252
    %273 = vmatprep.subr.mxu0 %v255
    %274 = vmatpush1.msra.mxu0 %v254
    %275 = vmatprep.subr.mxu0 %v257
    %276 = vmatpush1.msra.mxu0 %v256
    %277 = vmatprep.subr.mxu0 %v259
    %278 = vmatpush1.msra.mxu0 %v258
    %279 = vmatprep.subr.mxu0 %v261
    %280 = vmatpush1.msra.mxu0 %v260
    %281 = vmatprep.subr.mxu0 %v263
    %282 = vmatpush1.msra.mxu0 %v262
    %283 = vmatprep.subr.mxu0 %v265
    %284 = vmatpush1.msra.mxu0 %v264
    %285 = vmatprep.subr.mxu0 %v267
    %286 = vmatpush1.msra.mxu0 %v266
    %287 = vmatprep.subr.mxu0 0.0
    %288 = vmatpush1.msra.mxu0 0.0
    %289 = vmatprep.subr.mxu0 0.0
    %290 = vmatpush1.msra.mxu0 0.0
    %291 = vmatprep.subr.mxu0 0.0
    %292 = vmatpush1.msra.mxu0 0.0
    %293 = vmatprep.subr.mxu0 0.0
    %294 = vmatpush1.msra.mxu0 0.0
    %295 = vmatprep.subr.mxu0 0.0
    %296 = vmatpush1.msra.mxu0 0.0
    %297 = vmatprep.subr.mxu0 0.0
    %298 = vmatpush1.msra.mxu0 0.0
    %299 = vmatprep.subr.mxu0 0.0
    %300 = vmatpush1.msra.mxu0 0.0
    %301 = vmatprep.subr.mxu0 0.0
    %302 = vmatpush1.msra.mxu0 0.0
    %303 = vmatprep.subr.mxu0 0.0
    %304 = vmatpush1.msra.mxu0 0.0
    %305 = vmatprep.subr.mxu0 0.0
    %306 = vmatpush1.msra.mxu0 0.0
    %307 = vmatprep.subr.mxu0 0.0
    %308 = vmatpush1.msra.mxu0 0.0
    %309 = vmatprep.subr.mxu0 0.0
    %310 = vmatpush1.msra.mxu0 0.0
    %311 = vmatprep.subr.mxu0 0.0
    %312 = vmatpush1.msra.mxu0 0.0
    %313 = vmatprep.subr.mxu0 0.0
    %314 = vmatpush1.msra.mxu0 0.0
    %315 = vmatprep.subr.mxu0 0.0
    %316 = vmatpush1.msra.mxu0 0.0
    %317 = vmatprep.subr.mxu0 0.0
    %318 = vmatpush1.msra.mxu0 0.0
    %319 = vmatprep.subr.mxu0 0.0
    %320 = vmatpush1.msra.mxu0 0.0
    %321 = vmatprep.subr.mxu0 0.0
    %322 = vmatpush1.msra.mxu0 0.0
    %323 = vmatprep.subr.mxu0 0.0
    %324 = vmatpush1.msra.mxu0 0.0
    %325 = vmatprep.subr.mxu0 0.0
    %326 = vmatpush1.msra.mxu0 0.0
    %327 = vmatprep.subr.mxu0 0.0
    %328 = vmatpush1.msra.mxu0 0.0
    %329 = vmatprep.subr.mxu0 0.0
    %330 = vmatpush1.msra.mxu0 0.0
    %331 = vmatprep.subr.mxu0 0.0
    %332 = vmatpush1.msra.mxu0 0.0
    %333 = vmatprep.subr.mxu0 0.0
    %334 = vmatpush1.msra.mxu0 0.0
    %335 = vmatprep.mubr.f32.mxu0 0.0
    %336 = vmatmul.mubr.f32.gmra.mrb[0].mxu0 %v269
    %v337 = vpop.f32.mrb[0].mxu0
    %v338 = vadd.f32 0.0, %v337
    %v339 = vpop.f32.mrb[0].mxu0
    %v340 = vadd.f32 0.0, %v339
    %341 = vdwg.mxu0
    %v342 = vadd.f32 %v242, %v338
    %v344 = vrot.slane %v340, 2
    %v346 = vadd.f32 %v250, %v344
    %v347 = vxor.u32 %v342, 2147483648
    %v348 = vmul.f32 %v347, 1.442695
    %v349 = vpow.pop %v348
    %v350 = vadd.f32 %v349, 1.0
    %v351 = vrcp.pop %v350
    %v352 = vmul.f32 1.0, %v351
    %v353 = vtanh.pop %v342
    %v354 = vmul.f32 %v352, 0.0
    %356 = vrot.lane.b32.xlu0 %v353, 64
    %v357 = vpop.permute.xlu0 %356
    %v359 = vmul.f32 %v352, %v357
    %361 = vrot.lane.b32.xlu0 %v359, 32
    %v362 = vpop.permute.xlu0 %361
    %v364 = vadd.f32 %v354, %v362
    %v365 = vtanh.pop %v364
    %367 = vrot.lane.b32.xlu0 %v365, 64
    %v368 = vpop.permute.xlu0 %367
    %v370 = vmul.f32 %v352, %v368
    %v371 = vxor.u32 %v346, 2147483648
    %v372 = vmul.f32 %v371, 1.442695
    %v373 = vpow.pop %v372
    %v374 = vadd.f32 %v373, 1.0
    %v375 = vrcp.pop %v374
    %v376 = vmul.f32 1.0, %v375
    %v377 = vtanh.pop %v346
    %v378 = vmul.f32 %v376, 0.0
    %380 = vrot.lane.b32.xlu0 %v377, 64
    %v381 = vpop.permute.xlu0 %380
    %v383 = vmul.f32 %v376, %v381
    %385 = vrot.lane.b32.xlu0 %v383, 32
    %v386 = vpop.permute.xlu0 %385
    %v388 = vadd.f32 %v378, %v386
    %v389 = vtanh.pop %v388
    %391 = vrot.lane.b32.xlu0 %v389, 64
    %v392 = vpop.permute.xlu0 %391
    %v394 = vmul.f32 %v376, %v392
    %396 = vrot.lane.b32.xlu0 %v370, 32
    %v397 = vpop.permute.xlu0 %396
    %vm399 = vcmask 254976
    %400 = vst.msk [vmem:[#allocation2] sm:$0x3] %vm399, %v397
    %402 = vrot.lane.b32.xlu0 %v394, 32
    %v403 = vpop.permute.xlu0 %402
    %vm405 = vcmask 261126
    %406 = vst.msk [vmem:[#allocation3 + $0x8] sm:$0xc0] %vm405, %v403
    %v407 = vrot.slane %v394, 6
    %408 = vrot.lane.b32.xlu0 %v407, 64
    %v409 = vpop.permute.xlu0 %408
    %v411 = vsel %vm168, %v397, %v409
    %v413 = vsel %vm66, %v411, 0
    %415 = vmatprep.subr.mxu0 %v253
    %416 = vmatpush1.msra.mxu0 %v252
    %417 = vmatprep.subr.mxu0 %v255
    %418 = vmatpush1.msra.mxu0 %v254
    %419 = vmatprep.subr.mxu0 %v257
    %420 = vmatpush1.msra.mxu0 %v256
    %421 = vmatprep.subr.mxu0 %v259
    %422 = vmatpush1.msra.mxu0 %v258
    %423 = vmatprep.subr.mxu0 %v261
    %424 = vmatpush1.msra.mxu0 %v260
    %425 = vmatprep.subr.mxu0 %v263
    %426 = vmatpush1.msra.mxu0 %v262
    %427 = vmatprep.subr.mxu0 %v265
    %428 = vmatpush1.msra.mxu0 %v264
    %429 = vmatprep.subr.mxu0 %v267
    %430 = vmatpush1.msra.mxu0 %v266
    %431 = vmatprep.subr.mxu0 0.0
    %432 = vmatpush1.msra.mxu0 0.0
    %433 = vmatprep.subr.mxu0 0.0
    %434 = vmatpush1.msra.mxu0 0.0
    %435 = vmatprep.subr.mxu0 0.0
    %436 = vmatpush1.msra.mxu0 0.0
    %437 = vmatprep.subr.mxu0 0.0
    %438 = vmatpush1.msra.mxu0 0.0
    %439 = vmatprep.subr.mxu0 0.0
    %440 = vmatpush1.msra.mxu0 0.0
    %441 = vmatprep.subr.mxu0 0.0
    %442 = vmatpush1.msra.mxu0 0.0
    %443 = vmatprep.subr.mxu0 0.0
    %444 = vmatpush1.msra.mxu0 0.0
    %445 = vmatprep.subr.mxu0 0.0
    %446 = vmatpush1.msra.mxu0 0.0
    %447 = vmatprep.subr.mxu0 0.0
    %448 = vmatpush1.msra.mxu0 0.0
    %449 = vmatprep.subr.mxu0 0.0
    %450 = vmatpush1.msra.mxu0 0.0
    %451 = vmatprep.subr.mxu0 0.0
    %452 = vmatpush1.msra.mxu0 0.0
    %453 = vmatprep.subr.mxu0 0.0
    %454 = vmatpush1.msra.mxu0 0.0
    %455 = vmatprep.subr.mxu0 0.0
    %456 = vmatpush1.msra.mxu0 0.0
    %457 = vmatprep.subr.mxu0 0.0
    %458 = vmatpush1.msra.mxu0 0.0
    %459 = vmatprep.subr.mxu0 0.0
    %460 = vmatpush1.msra.mxu0 0.0
    %461 = vmatprep.subr.mxu0 0.0
    %462 = vmatpush1.msra.mxu0 0.0
    %463 = vmatprep.subr.mxu0 0.0
    %464 = vmatpush1.msra.mxu0 0.0
    %465 = vmatprep.subr.mxu0 0.0
    %466 = vmatpush1.msra.mxu0 0.0
    %467 = vmatprep.subr.mxu0 0.0
    %468 = vmatpush1.msra.mxu0 0.0
    %469 = vmatprep.subr.mxu0 0.0
    %470 = vmatpush1.msra.mxu0 0.0
    %471 = vmatprep.subr.mxu0 0.0
    %472 = vmatpush1.msra.mxu0 0.0
    %473 = vmatprep.subr.mxu0 0.0
    %474 = vmatpush1.msra.mxu0 0.0
    %475 = vmatprep.subr.mxu0 0.0
    %476 = vmatpush1.msra.mxu0 0.0
    %477 = vmatprep.subr.mxu0 0.0
    %478 = vmatpush1.msra.mxu0 0.0
    %479 = vmatprep.mubr.f32.mxu0 0.0
    %480 = vmatmul.mubr.f32.gmra.mrb[0].mxu0 %v413
    %v481 = vpop.f32.mrb[0].mxu0
    %v482 = vadd.f32 0.0, %v481
    %v483 = vpop.f32.mrb[0].mxu0
    %v484 = vadd.f32 0.0, %v483
    %485 = vdwg.mxu0
    %v487 = vrot.slane %v482, 6
    %v489 = vadd.f32 %v242, %v487
    %v491 = vrot.slane %v484, 4
    %v493 = vadd.f32 %v250, %v491
    %v494 = vxor.u32 %v489, 2147483648
    %v495 = vmul.f32 %v494, 1.442695
    %v496 = vpow.pop %v495
    %v497 = vadd.f32 %v496, 1.0
    %v498 = vrcp.pop %v497
    %v499 = vmul.f32 1.0, %v498
    %v500 = vtanh.pop %v489
    %v502 = vrot.slane %v364, 6
    %v504 = vmul.f32 %v499, %v502
    %506 = vrot.lane.b32.xlu0 %v500, 64
    %v507 = vpop.permute.xlu0 %506
    %v509 = vmul.f32 %v499, %v507
    %511 = vrot.lane.b32.xlu0 %v509, 32
    %v512 = vpop.permute.xlu0 %511
    %v514 = vadd.f32 %v504, %v512
    %v515 = vtanh.pop %v514
    %517 = vrot.lane.b32.xlu0 %v515, 64
    %v518 = vpop.permute.xlu0 %517
    %v520 = vmul.f32 %v499, %v518
    %v521 = vxor.u32 %v493, 2147483648
    %v522 = vmul.f32 %v521, 1.442695
    %v523 = vpow.pop %v522
    %v524 = vadd.f32 %v523, 1.0
    %v525 = vrcp.pop %v524
    %v526 = vmul.f32 1.0, %v525
    %v527 = vtanh.pop %v493
    %v529 = vrot.slane %v388, 2
    %v531 = vmul.f32 %v526, %v529
    %533 = vrot.lane.b32.xlu0 %v527, 64
    %v534 = vpop.permute.xlu0 %533
    %v536 = vmul.f32 %v526, %v534
    %538 = vrot.lane.b32.xlu0 %v536, 32
    %v539 = vpop.permute.xlu0 %538
    %v541 = vadd.f32 %v531, %v539
    %v542 = vtanh.pop %v541
    %544 = vrot.lane.b32.xlu0 %v542, 64
    %v545 = vpop.permute.xlu0 %544
    %v547 = vmul.f32 %v526, %v545
    %549 = vrot.lane.b32.xlu0 %v520, 32
    %v550 = vpop.permute.xlu0 %549
    %vm552 = vcmask 257026
    %553 = vst.msk [vmem:[#allocation2] sm:$0xc] %vm552, %v550
    %555 = vrot.lane.b32.xlu0 %v547, 32
    %v556 = vpop.permute.xlu0 %555
    %vm558 = vcmask 259076
    %559 = vst.msk [vmem:[#allocation3 + $0x8] sm:$0x30] %vm558, %v556
    %v560 = vrot.slane %v547, 2
    %561 = vrot.lane.b32.xlu0 %v560, 64
    %v562 = vpop.permute.xlu0 %561
    %v564 = vsel %vm168, %v550, %v562
    %v566 = vrot.slane %v564, 2
    %v567 = vsel %vm66, %v566, 0
    %569 = vmatprep.subr.mxu0 %v253
    %570 = vmatpush1.msra.mxu0 %v252
    %571 = vmatprep.subr.mxu0 %v255
    %572 = vmatpush1.msra.mxu0 %v254
    %573 = vmatprep.subr.mxu0 %v257
    %574 = vmatpush1.msra.mxu0 %v256
    %575 = vmatprep.subr.mxu0 %v259
    %576 = vmatpush1.msra.mxu0 %v258
    %577 = vmatprep.subr.mxu0 %v261
    %578 = vmatpush1.msra.mxu0 %v260
    %579 = vmatprep.subr.mxu0 %v263
    %580 = vmatpush1.msra.mxu0 %v262
    %581 = vmatprep.subr.mxu0 %v265
    %582 = vmatpush1.msra.mxu0 %v264
    %583 = vmatprep.subr.mxu0 %v267
    %584 = vmatpush1.msra.mxu0 %v266
    %585 = vmatprep.subr.mxu0 0.0
    %586 = vmatpush1.msra.mxu0 0.0
    %587 = vmatprep.subr.mxu0 0.0
    %588 = vmatpush1.msra.mxu0 0.0
    %589 = vmatprep.subr.mxu0 0.0
    %590 = vmatpush1.msra.mxu0 0.0
    %591 = vmatprep.subr.mxu0 0.0
    %592 = vmatpush1.msra.mxu0 0.0
    %593 = vmatprep.subr.mxu0 0.0
    %594 = vmatpush1.msra.mxu0 0.0
    %595 = vmatprep.subr.mxu0 0.0
    %596 = vmatpush1.msra.mxu0 0.0
    %597 = vmatprep.subr.mxu0 0.0
    %598 = vmatpush1.msra.mxu0 0.0
    %599 = vmatprep.subr.mxu0 0.0
    %600 = vmatpush1.msra.mxu0 0.0
    %601 = vmatprep.subr.mxu0 0.0
    %602 = vmatpush1.msra.mxu0 0.0
    %603 = vmatprep.subr.mxu0 0.0
    %604 = vmatpush1.msra.mxu0 0.0
    %605 = vmatprep.subr.mxu0 0.0
    %606 = vmatpush1.msra.mxu0 0.0
    %607 = vmatprep.subr.mxu0 0.0
    %608 = vmatpush1.msra.mxu0 0.0
    %609 = vmatprep.subr.mxu0 0.0
    %610 = vmatpush1.msra.mxu0 0.0
    %611 = vmatprep.subr.mxu0 0.0
    %612 = vmatpush1.msra.mxu0 0.0
    %613 = vmatprep.subr.mxu0 0.0
    %614 = vmatpush1.msra.mxu0 0.0
    %615 = vmatprep.subr.mxu0 0.0
    %616 = vmatpush1.msra.mxu0 0.0
    %617 = vmatprep.subr.mxu0 0.0
    %618 = vmatpush1.msra.mxu0 0.0
    %619 = vmatprep.subr.mxu0 0.0
    %620 = vmatpush1.msra.mxu0 0.0
    %621 = vmatprep.subr.mxu0 0.0
    %622 = vmatpush1.msra.mxu0 0.0
    %623 = vmatprep.subr.mxu0 0.0
    %624 = vmatpush1.msra.mxu0 0.0
    %625 = vmatprep.subr.mxu0 0.0
    %626 = vmatpush1.msra.mxu0 0.0
    %627 = vmatprep.subr.mxu0 0.0
    %628 = vmatpush1.msra.mxu0 0.0
    %629 = vmatprep.subr.mxu0 0.0
    %630 = vmatpush1.msra.mxu0 0.0
    %631 = vmatprep.subr.mxu0 0.0
    %632 = vmatpush1.msra.mxu0 0.0
    %633 = vmatprep.mubr.f32.mxu0 0.0
    %634 = vmatmul.mubr.f32.gmra.mrb[0].mxu0 %v567
    %v635 = vpop.f32.mrb[0].mxu0
    %v636 = vadd.f32 0.0, %v635
    %v637 = vpop.f32.mrb[0].mxu0
    %v638 = vadd.f32 0.0, %v637
    %639 = vdwg.mxu0
    %v641 = vrot.slane %v636, 4
    %v643 = vadd.f32 %v242, %v641
    %v645 = vrot.slane %v638, 6
    %v647 = vadd.f32 %v250, %v645
    %v648 = vxor.u32 %v643, 2147483648
    %v649 = vmul.f32 %v648, 1.442695
    %v650 = vpow.pop %v649
    %v651 = vadd.f32 %v650, 1.0
    %v652 = vrcp.pop %v651
    %v653 = vmul.f32 1.0, %v652
    %v654 = vtanh.pop %v643
    %v656 = vrot.slane %v514, 6
    %v658 = vmul.f32 %v653, %v656
    %660 = vrot.lane.b32.xlu0 %v654, 64
    %v661 = vpop.permute.xlu0 %660
    %v663 = vmul.f32 %v653, %v661
    %665 = vrot.lane.b32.xlu0 %v663, 32
    %v666 = vpop.permute.xlu0 %665
    %v668 = vadd.f32 %v658, %v666
    %v669 = vtanh.pop %v668
    %671 = vrot.lane.b32.xlu0 %v669, 64
    %v672 = vpop.permute.xlu0 %671
    %v674 = vmul.f32 %v653, %v672
    %v675 = vxor.u32 %v647, 2147483648
    %v676 = vmul.f32 %v675, 1.442695
    %v677 = vpow.pop %v676
    %v678 = vadd.f32 %v677, 1.0
    %v679 = vrcp.pop %v678
    %v680 = vmul.f32 1.0, %v679
    %v681 = vtanh.pop %v647
    %v683 = vrot.slane %v541, 2
    %v685 = vmul.f32 %v680, %v683
    %687 = vrot.lane.b32.xlu0 %v681, 64
    %v688 = vpop.permute.xlu0 %687
    %v690 = vmul.f32 %v680, %v688
    %692 = vrot.lane.b32.xlu0 %v690, 32
    %v693 = vpop.permute.xlu0 %692
    %v695 = vadd.f32 %v685, %v693
    %v696 = vtanh.pop %v695
    %698 = vrot.lane.b32.xlu0 %v696, 64
    %v699 = vpop.permute.xlu0 %698
    %v701 = vmul.f32 %v680, %v699
    %703 = vrot.lane.b32.xlu0 %v674, 32
    %v704 = vpop.permute.xlu0 %703
    %706 = vst.msk [vmem:[#allocation2] sm:$0x30] %vm558, %v704
    %708 = vrot.lane.b32.xlu0 %v701, 32
    %v709 = vpop.permute.xlu0 %708
    %711 = vst.msk [vmem:[#allocation3 + $0x8] sm:$0xc] %vm552, %v709
    %v712 = vrot.slane %v701, 6
    %713 = vrot.lane.b32.xlu0 %v712, 64
    %v714 = vpop.permute.xlu0 %713
    %v716 = vsel %vm168, %v704, %v714
    %v718 = vrot.slane %v716, 4
    %v719 = vsel %vm66, %v718, 0
    %721 = vmatprep.subr.mxu0 %v253
    %722 = vmatpush1.msra.mxu0 %v252
    %723 = vmatprep.subr.mxu0 %v255
    %724 = vmatpush1.msra.mxu0 %v254
    %725 = vmatprep.subr.mxu0 %v257
    %726 = vmatpush1.msra.mxu0 %v256
    %727 = vmatprep.subr.mxu0 %v259
    %728 = vmatpush1.msra.mxu0 %v258
    %729 = vmatprep.subr.mxu0 %v261
    %730 = vmatpush1.msra.mxu0 %v260
    %731 = vmatprep.subr.mxu0 %v263
    %732 = vmatpush1.msra.mxu0 %v262
    %733 = vmatprep.subr.mxu0 %v265
    %734 = vmatpush1.msra.mxu0 %v264
    %735 = vmatprep.subr.mxu0 %v267
    %736 = vmatpush1.msra.mxu0 %v266
    %737 = vmatprep.subr.mxu0 0.0
    %738 = vmatpush1.msra.mxu0 0.0
    %739 = vmatprep.subr.mxu0 0.0
    %740 = vmatpush1.msra.mxu0 0.0
    %741 = vmatprep.subr.mxu0 0.0
    %742 = vmatpush1.msra.mxu0 0.0
    %743 = vmatprep.subr.mxu0 0.0
    %744 = vmatpush1.msra.mxu0 0.0
    %745 = vmatprep.subr.mxu0 0.0
    %746 = vmatpush1.msra.mxu0 0.0
    %747 = vmatprep.subr.mxu0 0.0
    %748 = vmatpush1.msra.mxu0 0.0
    %749 = vmatprep.subr.mxu0 0.0
    %750 = vmatpush1.msra.mxu0 0.0
    %751 = vmatprep.subr.mxu0 0.0
    %752 = vmatpush1.msra.mxu0 0.0
    %753 = vmatprep.subr.mxu0 0.0
    %754 = vmatpush1.msra.mxu0 0.0
    %755 = vmatprep.subr.mxu0 0.0
    %756 = vmatpush1.msra.mxu0 0.0
    %757 = vmatprep.subr.mxu0 0.0
    %758 = vmatpush1.msra.mxu0 0.0
    %759 = vmatprep.subr.mxu0 0.0
    %760 = vmatpush1.msra.mxu0 0.0
    %761 = vmatprep.subr.mxu0 0.0
    %762 = vmatpush1.msra.mxu0 0.0
    %763 = vmatprep.subr.mxu0 0.0
    %764 = vmatpush1.msra.mxu0 0.0
    %765 = vmatprep.subr.mxu0 0.0
    %766 = vmatpush1.msra.mxu0 0.0
    %767 = vmatprep.subr.mxu0 0.0
    %768 = vmatpush1.msra.mxu0 0.0
    %769 = vmatprep.subr.mxu0 0.0
    %770 = vmatpush1.msra.mxu0 0.0
    %771 = vmatprep.subr.mxu0 0.0
    %772 = vmatpush1.msra.mxu0 0.0
    %773 = vmatprep.subr.mxu0 0.0
    %774 = vmatpush1.msra.mxu0 0.0
    %775 = vmatprep.subr.mxu0 0.0
    %776 = vmatpush1.msra.mxu0 0.0
    %777 = vmatprep.subr.mxu0 0.0
    %778 = vmatpush1.msra.mxu0 0.0
    %779 = vmatprep.subr.mxu0 0.0
    %780 = vmatpush1.msra.mxu0 0.0
    %781 = vmatprep.subr.mxu0 0.0
    %782 = vmatpush1.msra.mxu0 0.0
    %783 = vmatprep.subr.mxu0 0.0
    %784 = vmatpush1.msra.mxu0 0.0
    %785 = vmatprep.mubr.f32.mxu0 0.0
    %786 = vmatmul.mubr.f32.gmra.mrb[0].mxu0 %v719
    %v787 = vpop.f32.mrb[0].mxu0
    %v788 = vadd.f32 0.0, %v787
    %v789 = vpop.f32.mrb[0].mxu0
    %v790 = vadd.f32 0.0, %v789
    %791 = vdwg.mxu0
    %v793 = vrot.slane %v788, 2
    %v795 = vadd.f32 %v242, %v793
    %v796 = vadd.f32 %v250, %v790
    %v797 = vxor.u32 %v795, 2147483648
    %v798 = vmul.f32 %v797, 1.442695
    %v799 = vpow.pop %v798
    %v800 = vadd.f32 %v799, 1.0
    %v801 = vrcp.pop %v800
    %v802 = vmul.f32 1.0, %v801
    %v803 = vtanh.pop %v795
    %v805 = vrot.slane %v668, 6
    %v807 = vmul.f32 %v802, %v805
    %809 = vrot.lane.b32.xlu0 %v803, 64
    %v810 = vpop.permute.xlu0 %809
    %v812 = vmul.f32 %v802, %v810
    %814 = vrot.lane.b32.xlu0 %v812, 32
    %v815 = vpop.permute.xlu0 %814
    %v817 = vadd.f32 %v807, %v815
    %v818 = vtanh.pop %v817
    %820 = vrot.lane.b32.xlu0 %v818, 64
    %v821 = vpop.permute.xlu0 %820
    %v823 = vmul.f32 %v802, %v821
    %v824 = vxor.u32 %v796, 2147483648
    %v825 = vmul.f32 %v824, 1.442695
    %v826 = vpow.pop %v825
    %v827 = vadd.f32 %v826, 1.0
    %v828 = vrcp.pop %v827
    %v829 = vmul.f32 1.0, %v828
    %v830 = vtanh.pop %v796
    %v832 = vrot.slane %v695, 2
    %v834 = vmul.f32 %v829, %v832
    %836 = vrot.lane.b32.xlu0 %v830, 64
    %v837 = vpop.permute.xlu0 %836
    %v839 = vmul.f32 %v829, %v837
    %841 = vrot.lane.b32.xlu0 %v839, 32
    %v842 = vpop.permute.xlu0 %841
    %v844 = vadd.f32 %v834, %v842
    %v845 = vtanh.pop %v844
    %847 = vrot.lane.b32.xlu0 %v845, 64
    %v848 = vpop.permute.xlu0 %847
    %v850 = vmul.f32 %v829, %v848
    %852 = vrot.lane.b32.xlu0 %v823, 32
    %v853 = vpop.permute.xlu0 %852
    %855 = vst.msk [vmem:[#allocation2] sm:$0xc0] %vm405, %v853
    %857 = vrot.lane.b32.xlu0 %v850, 32
    %v858 = vpop.permute.xlu0 %857
    %860 = vst.msk [vmem:[#allocation3 + $0x8] sm:$0x3] %vm399, %v858
    %v861 = vrot.slane %v850, 2
    %862 = vrot.lane.b32.xlu0 %v861, 64
    %v863 = vpop.permute.xlu0 %862
    %v865 = vsel %vm168, %v853, %v863
    %v867 = vrot.slane %v865, 6
    %v868 = vsel %vm66, %v867, 0
    %870 = vmatprep.subr.mxu0 %v253
    %871 = vmatpush1.msra.mxu0 %v252
    %872 = vmatprep.subr.mxu0 %v255
    %873 = vmatpush1.msra.mxu0 %v254
    %874 = vmatprep.subr.mxu0 %v257
    %875 = vmatpush1.msra.mxu0 %v256
    %876 = vmatprep.subr.mxu0 %v259
    %877 = vmatpush1.msra.mxu0 %v258
    %878 = vmatprep.subr.mxu0 %v261
    %879 = vmatpush1.msra.mxu0 %v260
    %880 = vmatprep.subr.mxu0 %v263
    %881 = vmatpush1.msra.mxu0 %v262
    %882 = vmatprep.subr.mxu0 %v265
    %883 = vmatpush1.msra.mxu0 %v264
    %884 = vmatprep.subr.mxu0 %v267
    %885 = vmatpush1.msra.mxu0 %v266
    %886 = vmatprep.subr.mxu0 0.0
    %887 = vmatpush1.msra.mxu0 0.0
    %888 = vmatprep.subr.mxu0 0.0
    %889 = vmatpush1.msra.mxu0 0.0
    %890 = vmatprep.subr.mxu0 0.0
    %891 = vmatpush1.msra.mxu0 0.0
    %892 = vmatprep.subr.mxu0 0.0
    %893 = vmatpush1.msra.mxu0 0.0
    %894 = vmatprep.subr.mxu0 0.0
    %895 = vmatpush1.msra.mxu0 0.0
    %896 = vmatprep.subr.mxu0 0.0
    %897 = vmatpush1.msra.mxu0 0.0
    %898 = vmatprep.subr.mxu0 0.0
    %899 = vmatpush1.msra.mxu0 0.0
    %900 = vmatprep.subr.mxu0 0.0
    %901 = vmatpush1.msra.mxu0 0.0
    %902 = vmatprep.subr.mxu0 0.0
    %903 = vmatpush1.msra.mxu0 0.0
    %904 = vmatprep.subr.mxu0 0.0
    %905 = vmatpush1.msra.mxu0 0.0
    %906 = vmatprep.subr.mxu0 0.0
    %907 = vmatpush1.msra.mxu0 0.0
    %908 = vmatprep.subr.mxu0 0.0
    %909 = vmatpush1.msra.mxu0 0.0
    %910 = vmatprep.subr.mxu0 0.0
    %911 = vmatpush1.msra.mxu0 0.0
    %912 = vmatprep.subr.mxu0 0.0
    %913 = vmatpush1.msra.mxu0 0.0
    %914 = vmatprep.subr.mxu0 0.0
    %915 = vmatpush1.msra.mxu0 0.0
    %916 = vmatprep.subr.mxu0 0.0
    %917 = vmatpush1.msra.mxu0 0.0
    %918 = vmatprep.subr.mxu0 0.0
    %919 = vmatpush1.msra.mxu0 0.0
    %920 = vmatprep.subr.mxu0 0.0
    %921 = vmatpush1.msra.mxu0 0.0
    %922 = vmatprep.subr.mxu0 0.0
    %923 = vmatpush1.msra.mxu0 0.0
    %924 = vmatprep.subr.mxu0 0.0
    %925 = vmatpush1.msra.mxu0 0.0
    %926 = vmatprep.subr.mxu0 0.0
    %927 = vmatpush1.msra.mxu0 0.0
    %928 = vmatprep.subr.mxu0 0.0
    %929 = vmatpush1.msra.mxu0 0.0
    %930 = vmatprep.subr.mxu0 0.0
    %931 = vmatpush1.msra.mxu0 0.0
    %932 = vmatprep.subr.mxu0 0.0
    %933 = vmatpush1.msra.mxu0 0.0
    %934 = vmatprep.mubr.f32.mxu0 0.0
    %935 = vmatmul.mubr.f32.gmra.mrb[0].mxu0 %v868
    %v936 = vpop.f32.mrb[0].mxu0
    %v937 = vadd.f32 0.0, %v936
    %v938 = vpop.f32.mrb[0].mxu0
    %v939 = vadd.f32 0.0, %v938
    %940 = vdwg.mxu0
    %v941 = vadd.f32 %v248, %v937
    %v943 = vrot.slane %v939, 2
    %v945 = vadd.f32 %v244, %v943
    %v946 = vxor.u32 %v941, 2147483648
    %v947 = vmul.f32 %v946, 1.442695
    %v948 = vpow.pop %v947
    %v949 = vadd.f32 %v948, 1.0
    %v950 = vrcp.pop %v949
    %v951 = vmul.f32 1.0, %v950
    %v952 = vtanh.pop %v941
    %v954 = vrot.slane %v817, 6
    %v956 = vmul.f32 %v951, %v954
    %958 = vrot.lane.b32.xlu0 %v952, 64
    %v959 = vpop.permute.xlu0 %958
    %v961 = vmul.f32 %v951, %v959
    %963 = vrot.lane.b32.xlu0 %v961, 32
    %v964 = vpop.permute.xlu0 %963
    %v966 = vadd.f32 %v956, %v964
    %v967 = vtanh.pop %v966
    %969 = vrot.lane.b32.xlu0 %v967, 64
    %v970 = vpop.permute.xlu0 %969
    %v972 = vmul.f32 %v951, %v970
    %v973 = vxor.u32 %v945, 2147483648
    %v974 = vmul.f32 %v973, 1.442695
    %v975 = vpow.pop %v974
    %v976 = vadd.f32 %v975, 1.0
    %v977 = vrcp.pop %v976
    %v978 = vmul.f32 1.0, %v977
    %v979 = vtanh.pop %v945
    %v981 = vrot.slane %v844, 2
    %v983 = vmul.f32 %v978, %v981
    %985 = vrot.lane.b32.xlu0 %v979, 64
    %v986 = vpop.permute.xlu0 %985
    %v988 = vmul.f32 %v978, %v986
    %990 = vrot.lane.b32.xlu0 %v988, 32
    %v991 = vpop.permute.xlu0 %990
    %v993 = vadd.f32 %v983, %v991
    %v994 = vtanh.pop %v993
    %996 = vrot.lane.b32.xlu0 %v994, 64
    %v997 = vpop.permute.xlu0 %996
    %v999 = vmul.f32 %v978, %v997
    %1001 = vrot.lane.b32.xlu0 %v972, 32
    %v1002 = vpop.permute.xlu0 %1001
    %1004 = vst.msk [vmem:[#allocation2 + $0x8] sm:$0x3] %vm399, %v1002
    %1006 = vrot.lane.b32.xlu0 %v999, 32
    %v1007 = vpop.permute.xlu0 %1006
    %1009 = vst.msk [vmem:[#allocation3] sm:$0xc0] %vm405, %v1007
    %v1010 = vrot.slane %v999, 6
    %1011 = vrot.lane.b32.xlu0 %v1010, 64
    %v1012 = vpop.permute.xlu0 %1011
    %v1014 = vsel %vm168, %v1002, %v1012
    %v1016 = vsel %vm66, %v1014, 0
    %1018 = vmatprep.subr.mxu0 %v253
    %1019 = vmatpush1.msra.mxu0 %v252
    %1020 = vmatprep.subr.mxu0 %v255
    %1021 = vmatpush1.msra.mxu0 %v254
    %1022 = vmatprep.subr.mxu0 %v257
    %1023 = vmatpush1.msra.mxu0 %v256
    %1024 = vmatprep.subr.mxu0 %v259
    %1025 = vmatpush1.msra.mxu0 %v258
    %1026 = vmatprep.subr.mxu0 %v261
    %1027 = vmatpush1.msra.mxu0 %v260
    %1028 = vmatprep.subr.mxu0 %v263
    %1029 = vmatpush1.msra.mxu0 %v262
    %1030 = vmatprep.subr.mxu0 %v265
    %1031 = vmatpush1.msra.mxu0 %v264
    %1032 = vmatprep.subr.mxu0 %v267
    %1033 = vmatpush1.msra.mxu0 %v266
    %1034 = vmatprep.subr.mxu0 0.0
    %1035 = vmatpush1.msra.mxu0 0.0
    %1036 = vmatprep.subr.mxu0 0.0
    %1037 = vmatpush1.msra.mxu0 0.0
    %1038 = vmatprep.subr.mxu0 0.0
    %1039 = vmatpush1.msra.mxu0 0.0
    %1040 = vmatprep.subr.mxu0 0.0
    %1041 = vmatpush1.msra.mxu0 0.0
    %1042 = vmatprep.subr.mxu0 0.0
    %1043 = vmatpush1.msra.mxu0 0.0
    %1044 = vmatprep.subr.mxu0 0.0
    %1045 = vmatpush1.msra.mxu0 0.0
    %1046 = vmatprep.subr.mxu0 0.0
    %1047 = vmatpush1.msra.mxu0 0.0
    %1048 = vmatprep.subr.mxu0 0.0
    %1049 = vmatpush1.msra.mxu0 0.0
    %1050 = vmatprep.subr.mxu0 0.0
    %1051 = vmatpush1.msra.mxu0 0.0
    %1052 = vmatprep.subr.mxu0 0.0
    %1053 = vmatpush1.msra.mxu0 0.0
    %1054 = vmatprep.subr.mxu0 0.0
    %1055 = vmatpush1.msra.mxu0 0.0
    %1056 = vmatprep.subr.mxu0 0.0
    %1057 = vmatpush1.msra.mxu0 0.0
    %1058 = vmatprep.subr.mxu0 0.0
    %1059 = vmatpush1.msra.mxu0 0.0
    %1060 = vmatprep.subr.mxu0 0.0
    %1061 = vmatpush1.msra.mxu0 0.0
    %1062 = vmatprep.subr.mxu0 0.0
    %1063 = vmatpush1.msra.mxu0 0.0
    %1064 = vmatprep.subr.mxu0 0.0
    %1065 = vmatpush1.msra.mxu0 0.0
    %1066 = vmatprep.subr.mxu0 0.0
    %1067 = vmatpush1.msra.mxu0 0.0
    %1068 = vmatprep.subr.mxu0 0.0
    %1069 = vmatpush1.msra.mxu0 0.0
    %1070 = vmatprep.subr.mxu0 0.0
    %1071 = vmatpush1.msra.mxu0 0.0
    %1072 = vmatprep.subr.mxu0 0.0
    %1073 = vmatpush1.msra.mxu0 0.0
    %1074 = vmatprep.subr.mxu0 0.0
    %1075 = vmatpush1.msra.mxu0 0.0
    %1076 = vmatprep.subr.mxu0 0.0
    %1077 = vmatpush1.msra.mxu0 0.0
    %1078 = vmatprep.subr.mxu0 0.0
    %1079 = vmatpush1.msra.mxu0 0.0
    %1080 = vmatprep.subr.mxu0 0.0
    %1081 = vmatpush1.msra.mxu0 0.0
    %1082 = vmatprep.mubr.f32.mxu0 0.0
    %1083 = vmatmul.mubr.f32.gmra.mrb[0].mxu0 %v1016
    %v1084 = vpop.f32.mrb[0].mxu0
    %v1085 = vadd.f32 0.0, %v1084
    %v1086 = vpop.f32.mrb[0].mxu0
    %v1087 = vadd.f32 0.0, %v1086
    %1088 = vdwg.mxu0
    %v1090 = vrot.slane %v1085, 6
    %v1092 = vadd.f32 %v248, %v1090
    %v1094 = vrot.slane %v1087, 4
    %v1096 = vadd.f32 %v244, %v1094
    %v1097 = vxor.u32 %v1092, 2147483648
    %v1098 = vmul.f32 %v1097, 1.442695
    %v1099 = vpow.pop %v1098
    %v1100 = vadd.f32 %v1099, 1.0
    %v1101 = vrcp.pop %v1100
    %v1102 = vmul.f32 1.0, %v1101
    %v1103 = vtanh.pop %v1092
    %v1105 = vrot.slane %v966, 6
    %v1107 = vmul.f32 %v1102, %v1105
    %1109 = vrot.lane.b32.xlu0 %v1103, 64
    %v1110 = vpop.permute.xlu0 %1109
    %v1112 = vmul.f32 %v1102, %v1110
    %1114 = vrot.lane.b32.xlu0 %v1112, 32
    %v1115 = vpop.permute.xlu0 %1114
    %v1117 = vadd.f32 %v1107, %v1115
    %v1118 = vtanh.pop %v1117
    %1120 = vrot.lane.b32.xlu0 %v1118, 64
    %v1121 = vpop.permute.xlu0 %1120
    %v1123 = vmul.f32 %v1102, %v1121
    %v1124 = vxor.u32 %v1096, 2147483648
    %v1125 = vmul.f32 %v1124, 1.442695
    %v1126 = vpow.pop %v1125
    %v1127 = vadd.f32 %v1126, 1.0
    %v1128 = vrcp.pop %v1127
    %v1129 = vmul.f32 1.0, %v1128
    %v1130 = vtanh.pop %v1096
    %v1132 = vrot.slane %v993, 2
    %v1134 = vmul.f32 %v1129, %v1132
    %1136 = vrot.lane.b32.xlu0 %v1130, 64
    %v1137 = vpop.permute.xlu0 %1136
    %v1139 = vmul.f32 %v1129, %v1137
    %1141 = vrot.lane.b32.xlu0 %v1139, 32
    %v1142 = vpop.permute.xlu0 %1141
    %v1144 = vadd.f32 %v1134, %v1142
    %v1145 = vtanh.pop %v1144
    %1147 = vrot.lane.b32.xlu0 %v1145, 64
    %v1148 = vpop.permute.xlu0 %1147
    %v1150 = vmul.f32 %v1129, %v1148
    %1152 = vrot.lane.b32.xlu0 %v1123, 32
    %v1153 = vpop.permute.xlu0 %1152
    %1155 = vst.msk [vmem:[#allocation2 + $0x8] sm:$0xc] %vm552, %v1153
    %1157 = vrot.lane.b32.xlu0 %v1150, 32
    %v1158 = vpop.permute.xlu0 %1157
    %1160 = vst.msk [vmem:[#allocation3] sm:$0x30] %vm558, %v1158
    %v1161 = vrot.slane %v1150, 2
    %1162 = vrot.lane.b32.xlu0 %v1161, 64
    %v1163 = vpop.permute.xlu0 %1162
    %v1165 = vsel %vm168, %v1153, %v1163
    %v1167 = vrot.slane %v1165, 2
    %v1168 = vsel %vm66, %v1167, 0
    %1170 = vmatprep.subr.mxu0 %v253
    %1171 = vmatpush1.msra.mxu0 %v252
    %1172 = vmatprep.subr.mxu0 %v255
    %1173 = vmatpush1.msra.mxu0 %v254
    %1174 = vmatprep.subr.mxu0 %v257
    %1175 = vmatpush1.msra.mxu0 %v256
    %1176 = vmatprep.subr.mxu0 %v259
    %1177 = vmatpush1.msra.mxu0 %v258
    %1178 = vmatprep.subr.mxu0 %v261
    %1179 = vmatpush1.msra.mxu0 %v260
    %1180 = vmatprep.subr.mxu0 %v263
    %1181 = vmatpush1.msra.mxu0 %v262
    %1182 = vmatprep.subr.mxu0 %v265
    %1183 = vmatpush1.msra.mxu0 %v264
    %1184 = vmatprep.subr.mxu0 %v267
    %1185 = vmatpush1.msra.mxu0 %v266
    %1186 = vmatprep.subr.mxu0 0.0
    %1187 = vmatpush1.msra.mxu0 0.0
    %1188 = vmatprep.subr.mxu0 0.0
    %1189 = vmatpush1.msra.mxu0 0.0
    %1190 = vmatprep.subr.mxu0 0.0
    %1191 = vmatpush1.msra.mxu0 0.0
    %1192 = vmatprep.subr.mxu0 0.0
    %1193 = vmatpush1.msra.mxu0 0.0
    %1194 = vmatprep.subr.mxu0 0.0
    %1195 = vmatpush1.msra.mxu0 0.0
    %1196 = vmatprep.subr.mxu0 0.0
    %1197 = vmatpush1.msra.mxu0 0.0
    %1198 = vmatprep.subr.mxu0 0.0
    %1199 = vmatpush1.msra.mxu0 0.0
    %1200 = vmatprep.subr.mxu0 0.0
    %1201 = vmatpush1.msra.mxu0 0.0
    %1202 = vmatprep.subr.mxu0 0.0
    %1203 = vmatpush1.msra.mxu0 0.0
    %1204 = vmatprep.subr.mxu0 0.0
    %1205 = vmatpush1.msra.mxu0 0.0
    %1206 = vmatprep.subr.mxu0 0.0
    %1207 = vmatpush1.msra.mxu0 0.0
    %1208 = vmatprep.subr.mxu0 0.0
    %1209 = vmatpush1.msra.mxu0 0.0
    %1210 = vmatprep.subr.mxu0 0.0
    %1211 = vmatpush1.msra.mxu0 0.0
    %1212 = vmatprep.subr.mxu0 0.0
    %1213 = vmatpush1.msra.mxu0 0.0
    %1214 = vmatprep.subr.mxu0 0.0
    %1215 = vmatpush1.msra.mxu0 0.0
    %1216 = vmatprep.subr.mxu0 0.0
    %1217 = vmatpush1.msra.mxu0 0.0
    %1218 = vmatprep.subr.mxu0 0.0
    %1219 = vmatpush1.msra.mxu0 0.0
    %1220 = vmatprep.subr.mxu0 0.0
    %1221 = vmatpush1.msra.mxu0 0.0
    %1222 = vmatprep.subr.mxu0 0.0
    %1223 = vmatpush1.msra.mxu0 0.0
    %1224 = vmatprep.subr.mxu0 0.0
    %1225 = vmatpush1.msra.mxu0 0.0
    %1226 = vmatprep.subr.mxu0 0.0
    %1227 = vmatpush1.msra.mxu0 0.0
    %1228 = vmatprep.subr.mxu0 0.0
    %1229 = vmatpush1.msra.mxu0 0.0
    %1230 = vmatprep.subr.mxu0 0.0
    %1231 = vmatpush1.msra.mxu0 0.0
    %1232 = vmatprep.subr.mxu0 0.0
    %1233 = vmatpush1.msra.mxu0 0.0
    %1234 = vmatprep.mubr.f32.mxu0 0.0
    %1235 = vmatmul.mubr.f32.gmra.mrb[0].mxu0 %v1168
    %v1236 = vpop.f32.mrb[0].mxu0
    %v1237 = vadd.f32 0.0, %v1236
    %v1238 = vpop.f32.mrb[0].mxu0
    %v1239 = vadd.f32 0.0, %v1238
    %1240 = vdwg.mxu0
    %v1242 = vrot.slane %v1237, 4
    %v1244 = vadd.f32 %v248, %v1242
    %v1246 = vrot.slane %v1239, 6
    %v1248 = vadd.f32 %v244, %v1246
    %v1249 = vxor.u32 %v1244, 2147483648
    %v1250 = vmul.f32 %v1249, 1.442695
    %v1251 = vpow.pop %v1250
    %v1252 = vadd.f32 %v1251, 1.0
    %v1253 = vrcp.pop %v1252
    %v1254 = vmul.f32 1.0, %v1253
    %v1255 = vtanh.pop %v1244
    %v1257 = vrot.slane %v1117, 6
    %v1259 = vmul.f32 %v1254, %v1257
    %1261 = vrot.lane.b32.xlu0 %v1255, 64
    %v1262 = vpop.permute.xlu0 %1261
    %v1264 = vmul.f32 %v1254, %v1262
    %1266 = vrot.lane.b32.xlu0 %v1264, 32
    %v1267 = vpop.permute.xlu0 %1266
    %v1269 = vadd.f32 %v1259, %v1267
    %v1270 = vtanh.pop %v1269
    %1272 = vrot.lane.b32.xlu0 %v1270, 64
    %v1273 = vpop.permute.xlu0 %1272
    %v1275 = vmul.f32 %v1254, %v1273
    %v1276 = vxor.u32 %v1248, 2147483648
    %v1277 = vmul.f32 %v1276, 1.442695
    %v1278 = vpow.pop %v1277
    %v1279 = vadd.f32 %v1278, 1.0
    %v1280 = vrcp.pop %v1279
    %v1281 = vmul.f32 1.0, %v1280
    %v1282 = vtanh.pop %v1248
    %v1284 = vrot.slane %v1144, 2
    %v1286 = vmul.f32 %v1281, %v1284
    %1288 = vrot.lane.b32.xlu0 %v1282, 64
    %v1289 = vpop.permute.xlu0 %1288
    %v1291 = vmul.f32 %v1281, %v1289
    %1293 = vrot.lane.b32.xlu0 %v1291, 32
    %v1294 = vpop.permute.xlu0 %1293
    %v1296 = vadd.f32 %v1286, %v1294
    %v1297 = vtanh.pop %v1296
    %1299 = vrot.lane.b32.xlu0 %v1297, 64
    %v1300 = vpop.permute.xlu0 %1299
    %v1302 = vmul.f32 %v1281, %v1300
    %1304 = vrot.lane.b32.xlu0 %v1275, 32
    %v1305 = vpop.permute.xlu0 %1304
    %1307 = vst.msk [vmem:[#allocation2 + $0x8] sm:$0x30] %vm558, %v1305
    %1309 = vrot.lane.b32.xlu0 %v1302, 32
    %v1310 = vpop.permute.xlu0 %1309
    %1312 = vst.msk [vmem:[#allocation3] sm:$0xc] %vm552, %v1310
    %v1313 = vrot.slane %v1302, 6
    %1314 = vrot.lane.b32.xlu0 %v1313, 64
    %v1315 = vpop.permute.xlu0 %1314
    %v1317 = vsel %vm168, %v1305, %v1315
    %v1319 = vrot.slane %v1317, 4
    %v1320 = vsel %vm66, %v1319, 0
    %1322 = vmatprep.subr.mxu0 %v253
    %1323 = vmatpush1.msra.mxu0 %v252
    %1324 = vmatprep.subr.mxu0 %v255
    %1325 = vmatpush1.msra.mxu0 %v254
    %1326 = vmatprep.subr.mxu0 %v257
    %1327 = vmatpush1.msra.mxu0 %v256
    %1328 = vmatprep.subr.mxu0 %v259
    %1329 = vmatpush1.msra.mxu0 %v258
    %1330 = vmatprep.subr.mxu0 %v261
    %1331 = vmatpush1.msra.mxu0 %v260
    %1332 = vmatprep.subr.mxu0 %v263
    %1333 = vmatpush1.msra.mxu0 %v262
    %1334 = vmatprep.subr.mxu0 %v265
    %1335 = vmatpush1.msra.mxu0 %v264
    %1336 = vmatprep.subr.mxu0 %v267
    %1337 = vmatpush1.msra.mxu0 %v266
    %1338 = vmatprep.subr.mxu0 0.0
    %1339 = vmatpush1.msra.mxu0 0.0
    %1340 = vmatprep.subr.mxu0 0.0
    %1341 = vmatpush1.msra.mxu0 0.0
    %1342 = vmatprep.subr.mxu0 0.0
    %1343 = vmatpush1.msra.mxu0 0.0
    %1344 = vmatprep.subr.mxu0 0.0
    %1345 = vmatpush1.msra.mxu0 0.0
    %1346 = vmatprep.subr.mxu0 0.0
    %1347 = vmatpush1.msra.mxu0 0.0
    %1348 = vmatprep.subr.mxu0 0.0
    %1349 = vmatpush1.msra.mxu0 0.0
    %1350 = vmatprep.subr.mxu0 0.0
    %1351 = vmatpush1.msra.mxu0 0.0
    %1352 = vmatprep.subr.mxu0 0.0
    %1353 = vmatpush1.msra.mxu0 0.0
    %1354 = vmatprep.subr.mxu0 0.0
    %1355 = vmatpush1.msra.mxu0 0.0
    %1356 = vmatprep.subr.mxu0 0.0
    %1357 = vmatpush1.msra.mxu0 0.0
    %1358 = vmatprep.subr.mxu0 0.0
    %1359 = vmatpush1.msra.mxu0 0.0
    %1360 = vmatprep.subr.mxu0 0.0
    %1361 = vmatpush1.msra.mxu0 0.0
    %1362 = vmatprep.subr.mxu0 0.0
    %1363 = vmatpush1.msra.mxu0 0.0
    %1364 = vmatprep.subr.mxu0 0.0
    %1365 = vmatpush1.msra.mxu0 0.0
    %1366 = vmatprep.subr.mxu0 0.0
    %1367 = vmatpush1.msra.mxu0 0.0
    %1368 = vmatprep.subr.mxu0 0.0
    %1369 = vmatpush1.msra.mxu0 0.0
    %1370 = vmatprep.subr.mxu0 0.0
    %1371 = vmatpush1.msra.mxu0 0.0
    %1372 = vmatprep.subr.mxu0 0.0
    %1373 = vmatpush1.msra.mxu0 0.0
    %1374 = vmatprep.subr.mxu0 0.0
    %1375 = vmatpush1.msra.mxu0 0.0
    %1376 = vmatprep.subr.mxu0 0.0
    %1377 = vmatpush1.msra.mxu0 0.0
    %1378 = vmatprep.subr.mxu0 0.0
    %1379 = vmatpush1.msra.mxu0 0.0
    %1380 = vmatprep.subr.mxu0 0.0
    %1381 = vmatpush1.msra.mxu0 0.0
    %1382 = vmatprep.subr.mxu0 0.0
    %1383 = vmatpush1.msra.mxu0 0.0
    %1384 = vmatprep.subr.mxu0 0.0
    %1385 = vmatpush1.msra.mxu0 0.0
    %1386 = vmatprep.mubr.f32.mxu0 0.0
    %1387 = vmatmul.mubr.f32.gmra.mrb[0].mxu0 %v1320
    %v1388 = vpop.f32.mrb[0].mxu0
    %v1389 = vadd.f32 0.0, %v1388
    %v1390 = vpop.f32.mrb[0].mxu0
    %v1391 = vadd.f32 0.0, %v1390
    %1392 = vdwg.mxu0
    %v1394 = vrot.slane %v1389, 2
    %v1396 = vadd.f32 %v248, %v1394
    %v1397 = vadd.f32 %v244, %v1391
    %v1398 = vxor.u32 %v1396, 2147483648
    %v1399 = vmul.f32 %v1398, 1.442695
    %v1400 = vpow.pop %v1399
    %v1401 = vadd.f32 %v1400, 1.0
    %v1402 = vrcp.pop %v1401
    %v1403 = vmul.f32 1.0, %v1402
    %v1404 = vtanh.pop %v1396
    %v1406 = vrot.slane %v1269, 6
    %v1408 = vmul.f32 %v1403, %v1406
    %1410 = vrot.lane.b32.xlu0 %v1404, 64
    %v1411 = vpop.permute.xlu0 %1410
    %v1413 = vmul.f32 %v1403, %v1411
    %1415 = vrot.lane.b32.xlu0 %v1413, 32
    %v1416 = vpop.permute.xlu0 %1415
    %v1418 = vadd.f32 %v1408, %v1416
    %v1419 = vtanh.pop %v1418
    %1421 = vrot.lane.b32.xlu0 %v1419, 64
    %v1422 = vpop.permute.xlu0 %1421
    %v1424 = vmul.f32 %v1403, %v1422
    %v1425 = vxor.u32 %v1397, 2147483648
    %v1426 = vmul.f32 %v1425, 1.442695
    %v1427 = vpow.pop %v1426
    %v1428 = vadd.f32 %v1427, 1.0
    %v1429 = vrcp.pop %v1428
    %v1430 = vmul.f32 1.0, %v1429
    %v1431 = vtanh.pop %v1397
    %v1433 = vrot.slane %v1296, 2
    %v1435 = vmul.f32 %v1430, %v1433
    %1437 = vrot.lane.b32.xlu0 %v1431, 64
    %v1438 = vpop.permute.xlu0 %1437
    %v1440 = vmul.f32 %v1430, %v1438
    %1442 = vrot.lane.b32.xlu0 %v1440, 32
    %v1443 = vpop.permute.xlu0 %1442
    %v1445 = vadd.f32 %v1435, %v1443
    %v1446 = vtanh.pop %v1445
    %1448 = vrot.lane.b32.xlu0 %v1446, 64
    %v1449 = vpop.permute.xlu0 %1448
    %v1451 = vmul.f32 %v1430, %v1449
    %1453 = vrot.lane.b32.xlu0 %v1424, 32
    %v1454 = vpop.permute.xlu0 %1453
    %1456 = vst.msk [vmem:[#allocation2 + $0x8] sm:$0xc0] %vm405, %v1454
    %1458 = vrot.lane.b32.xlu0 %v1451, 32
    %v1459 = vpop.permute.xlu0 %1458
    %1461 = vst.msk [vmem:[#allocation3] sm:$0x3] %vm399, %v1459
    %v1462 = vld [vmem:[#allocation2] sm:$0xff]
    %v1463 = vld [vmem:[#allocation2 + $0x8] sm:$0xff]
    %v1464 = vld [vmem:[#allocation3] sm:$0xff]
    %v1465 = vld [vmem:[#allocation3 + $0x8] sm:$0xff]
    %v1466 = vld [vmem:[%s5] sm:$0xff]
    %v1467 = vld [vmem:[%s5 + $0x8] sm:$0xff]
    %v1468 = vld [vmem:[%s5 + $0x10] sm:$0xff]
    %v1469 = vld [vmem:[%s5 + $0x18] sm:$0xff]
    %v1470 = vld [vmem:[%s5 + $0x20] sm:$0xff]
    %v1471 = vld [vmem:[%s5 + $0x28] sm:$0xff]
    %v1472 = vld [vmem:[%s5 + $0x30] sm:$0xff]
    %v1473 = vld [vmem:[%s5 + $0x38] sm:$0xff]
    %v1475 = vsel %vm168, %v1464, 0
    %v1478 = vsel %vm168, %v1465, 0
    %1480 = vmatprep.subr.mxu0 0.0
    %1481 = vmatpush1.msra.mxu0 %v1470
    %1482 = vmatprep.subr.mxu0 0.0
    %1483 = vmatpush1.msra.mxu0 %v1471
    %1484 = vmatprep.subr.mxu0 0.0
    %1485 = vmatpush1.msra.mxu0 %v1472
    %1486 = vmatprep.subr.mxu0 0.0
    %1487 = vmatpush1.msra.mxu0 %v1473
    %1488 = vmatprep.subr.mxu0 0.0
    %1489 = vmatpush1.msra.mxu0 0.0
    %1490 = vmatprep.subr.mxu0 0.0
    %1491 = vmatpush1.msra.mxu0 0.0
    %1492 = vmatprep.subr.mxu0 0.0
    %1493 = vmatpush1.msra.mxu0 0.0
    %1494 = vmatprep.subr.mxu0 0.0
    %1495 = vmatpush1.msra.mxu0 0.0
    %1496 = vmatprep.subr.mxu0 0.0
    %1497 = vmatpush1.msra.mxu0 0.0
    %1498 = vmatprep.subr.mxu0 0.0
    %1499 = vmatpush1.msra.mxu0 0.0
    %1500 = vmatprep.subr.mxu0 0.0
    %1501 = vmatpush1.msra.mxu0 0.0
    %1502 = vmatprep.subr.mxu0 0.0
    %1503 = vmatpush1.msra.mxu0 0.0
    %1504 = vmatprep.subr.mxu0 0.0
    %1505 = vmatpush1.msra.mxu0 0.0
    %1506 = vmatprep.subr.mxu0 0.0
    %1507 = vmatpush1.msra.mxu0 0.0
    %1508 = vmatprep.subr.mxu0 0.0
    %1509 = vmatpush1.msra.mxu0 0.0
    %1510 = vmatprep.subr.mxu0 0.0
    %1511 = vmatpush1.msra.mxu0 0.0
    %1512 = vmatprep.subr.mxu0 0.0
    %1513 = vmatpush1.msra.mxu0 0.0
    %1514 = vmatprep.subr.mxu0 0.0
    %1515 = vmatpush1.msra.mxu0 0.0
    %1516 = vmatprep.subr.mxu0 0.0
    %1517 = vmatpush1.msra.mxu0 0.0
    %1518 = vmatprep.subr.mxu0 0.0
    %1519 = vmatpush1.msra.mxu0 0.0
    %1520 = vmatprep.subr.mxu0 0.0
    %1521 = vmatpush1.msra.mxu0 0.0
    %1522 = vmatprep.subr.mxu0 0.0
    %1523 = vmatpush1.msra.mxu0 0.0
    %1524 = vmatprep.subr.mxu0 0.0
    %1525 = vmatpush1.msra.mxu0 0.0
    %1526 = vmatprep.subr.mxu0 0.0
    %1527 = vmatpush1.msra.mxu0 0.0
    %1528 = vmatprep.subr.mxu0 0.0
    %1529 = vmatpush1.msra.mxu0 0.0
    %1530 = vmatprep.subr.mxu0 0.0
    %1531 = vmatpush1.msra.mxu0 0.0
    %1532 = vmatprep.subr.mxu0 0.0
    %1533 = vmatpush1.msra.mxu0 0.0
    %1534 = vmatprep.subr.mxu0 0.0
    %1535 = vmatpush1.msra.mxu0 0.0
    %1536 = vmatprep.subr.mxu0 0.0
    %1537 = vmatpush1.msra.mxu0 0.0
    %1538 = vmatprep.subr.mxu0 0.0
    %1539 = vmatpush1.msra.mxu0 0.0
    %1540 = vmatprep.subr.mxu0 0.0
    %1541 = vmatpush1.msra.mxu0 0.0
    %1542 = vmatprep.subr.mxu0 0.0
    %1543 = vmatpush1.msra.mxu0 0.0
    %1544 = vmatprep.mubr.f32.mxu0 0.0
    %1545 = vmatmul.mubr.f32.gmra.mrb[0].mxu0 %v1475
    %v1546 = vpop.f32.mrb[0].mxu0
    %v1547 = vadd.f32 0.0, %v1546
    %v1548 = vpop.f32.mrb[0].mxu0
    %1549 = vmatprep.mubr.f32.mxu0 0.0
    %1550 = vmatmul.mubr.f32.gmra.mrb[0].mxu0 %v1478
    %v1551 = vpop.f32.mrb[0].mxu0
    %v1552 = vadd.f32 0.0, %v1551
    %v1553 = vpop.f32.mrb[0].mxu0
    %1554 = vdwg.mxu0
    %v1556 = vsel %vm168, %v1462, 0
    %v1559 = vsel %vm168, %v1463, 0
    %1561 = vmatprep.subr.mxu0 0.0
    %1562 = vmatpush1.msra.mxu0 %v1466
    %1563 = vmatprep.subr.mxu0 0.0
    %1564 = vmatpush1.msra.mxu0 %v1467
    %1565 = vmatprep.subr.mxu0 0.0
    %1566 = vmatpush1.msra.mxu0 %v1468
    %1567 = vmatprep.subr.mxu0 0.0
    %1568 = vmatpush1.msra.mxu0 %v1469
    %1569 = vmatprep.subr.mxu0 0.0
    %1570 = vmatpush1.msra.mxu0 0.0
    %1571 = vmatprep.subr.mxu0 0.0
    %1572 = vmatpush1.msra.mxu0 0.0
    %1573 = vmatprep.subr.mxu0 0.0
    %1574 = vmatpush1.msra.mxu0 0.0
    %1575 = vmatprep.subr.mxu0 0.0
    %1576 = vmatpush1.msra.mxu0 0.0
    %1577 = vmatprep.subr.mxu0 0.0
    %1578 = vmatpush1.msra.mxu0 0.0
    %1579 = vmatprep.subr.mxu0 0.0
    %1580 = vmatpush1.msra.mxu0 0.0
    %1581 = vmatprep.subr.mxu0 0.0
    %1582 = vmatpush1.msra.mxu0 0.0
    %1583 = vmatprep.subr.mxu0 0.0
    %1584 = vmatpush1.msra.mxu0 0.0
    %1585 = vmatprep.subr.mxu0 0.0
    %1586 = vmatpush1.msra.mxu0 0.0
    %1587 = vmatprep.subr.mxu0 0.0
    %1588 = vmatpush1.msra.mxu0 0.0
    %1589 = vmatprep.subr.mxu0 0.0
    %1590 = vmatpush1.msra.mxu0 0.0
    %1591 = vmatprep.subr.mxu0 0.0
    %1592 = vmatpush1.msra.mxu0 0.0
    %1593 = vmatprep.subr.mxu0 0.0
    %1594 = vmatpush1.msra.mxu0 0.0
    %1595 = vmatprep.subr.mxu0 0.0
    %1596 = vmatpush1.msra.mxu0 0.0
    %1597 = vmatprep.subr.mxu0 0.0
    %1598 = vmatpush1.msra.mxu0 0.0
    %1599 = vmatprep.subr.mxu0 0.0
    %1600 = vmatpush1.msra.mxu0 0.0
    %1601 = vmatprep.subr.mxu0 0.0
    %1602 = vmatpush1.msra.mxu0 0.0
    %1603 = vmatprep.subr.mxu0 0.0
    %1604 = vmatpush1.msra.mxu0 0.0
    %1605 = vmatprep.subr.mxu0 0.0
    %1606 = vmatpush1.msra.mxu0 0.0
    %1607 = vmatprep.subr.mxu0 0.0
    %1608 = vmatpush1.msra.mxu0 0.0
    %1609 = vmatprep.subr.mxu0 0.0
    %1610 = vmatpush1.msra.mxu0 0.0
    %1611 = vmatprep.subr.mxu0 0.0
    %1612 = vmatpush1.msra.mxu0 0.0
    %1613 = vmatprep.subr.mxu0 0.0
    %1614 = vmatpush1.msra.mxu0 0.0
    %1615 = vmatprep.subr.mxu0 0.0
    %1616 = vmatpush1.msra.mxu0 0.0
    %1617 = vmatprep.subr.mxu0 0.0
    %1618 = vmatpush1.msra.mxu0 0.0
    %1619 = vmatprep.subr.mxu0 0.0
    %1620 = vmatpush1.msra.mxu0 0.0
    %1621 = vmatprep.subr.mxu0 0.0
    %1622 = vmatpush1.msra.mxu0 0.0
    %1623 = vmatprep.subr.mxu0 0.0
    %1624 = vmatpush1.msra.mxu0 0.0
    %1625 = vmatprep.mubr.f32.mxu0 0.0
    %1626 = vmatmul.mubr.f32.gmra.mrb[0].mxu0 %v1556
    %v1627 = vpop.f32.mrb[0].mxu0
    %v1628 = vadd.f32 %v1547, %v1627
    %v1629 = vpop.f32.mrb[0].mxu0
    %1630 = vmatprep.mubr.f32.mxu0 0.0
    %1631 = vmatmul.mubr.f32.gmra.mrb[0].mxu0 %v1559
    %v1632 = vpop.f32.mrb[0].mxu0
    %v1633 = vadd.f32 %v1552, %v1632
    %v1634 = vpop.f32.mrb[0].mxu0
    %1635 = vdwg.mxu0
    %v1636 = vld [vmem:[%s7] sm:$0x1]
    %v1638 = vlaneseq
    %v1639 = vshrl.u32 %v1638, 7
    %v1640 = vsub.s32 0, %v1639
    %v1641 = vrot.slane %v1636, %v1640
    %v1643 = vadd.f32 %v1628, %v1641
    %v1644 = vadd.f32 %v1633, %v1641
    %v1645 = vld [vmem:[%s6] sm:$0xff]
    %v1646 = vld [vmem:[%s6 + $0x8] sm:$0xff]
    %v1647 = vld [vmem:[%s6 + $0x10] sm:$0xff]
    %v1648 = vld [vmem:[%s6 + $0x18] sm:$0xff]
    %v1649 = vsel %vm168, 0.0, 0
    %1651 = vmatprep.subr.mxu0 0.0
    %1652 = vmatpush1.msra.mxu0 %v1645
    %1653 = vmatprep.subr.mxu0 0.0
    %1654 = vmatpush1.msra.mxu0 %v1646
    %1655 = vmatprep.subr.mxu0 0.0
    %1656 = vmatpush1.msra.mxu0 %v1647
    %1657 = vmatprep.subr.mxu0 0.0
    %1658 = vmatpush1.msra.mxu0 %v1648
    %1659 = vmatprep.subr.mxu0 0.0
    %1660 = vmatpush1.msra.mxu0 0.0
    %1661 = vmatprep.subr.mxu0 0.0
    %1662 = vmatpush1.msra.mxu0 0.0
    %1663 = vmatprep.subr.mxu0 0.0
    %1664 = vmatpush1.msra.mxu0 0.0
    %1665 = vmatprep.subr.mxu0 0.0
    %1666 = vmatpush1.msra.mxu0 0.0
    %1667 = vmatprep.subr.mxu0 0.0
    %1668 = vmatpush1.msra.mxu0 0.0
    %1669 = vmatprep.subr.mxu0 0.0
    %1670 = vmatpush1.msra.mxu0 0.0
    %1671 = vmatprep.subr.mxu0 0.0
    %1672 = vmatpush1.msra.mxu0 0.0
    %1673 = vmatprep.subr.mxu0 0.0
    %1674 = vmatpush1.msra.mxu0 0.0
    %1675 = vmatprep.subr.mxu0 0.0
    %1676 = vmatpush1.msra.mxu0 0.0
    %1677 = vmatprep.subr.mxu0 0.0
    %1678 = vmatpush1.msra.mxu0 0.0
    %1679 = vmatprep.subr.mxu0 0.0
    %1680 = vmatpush1.msra.mxu0 0.0
    %1681 = vmatprep.subr.mxu0 0.0
    %1682 = vmatpush1.msra.mxu0 0.0
    %1683 = vmatprep.subr.mxu0 0.0
    %1684 = vmatpush1.msra.mxu0 0.0
    %1685 = vmatprep.subr.mxu0 0.0
    %1686 = vmatpush1.msra.mxu0 0.0
    %1687 = vmatprep.subr.mxu0 0.0
    %1688 = vmatpush1.msra.mxu0 0.0
    %1689 = vmatprep.subr.mxu0 0.0
    %1690 = vmatpush1.msra.mxu0 0.0
    %1691 = vmatprep.subr.mxu0 0.0
    %1692 = vmatpush1.msra.mxu0 0.0
    %1693 = vmatprep.subr.mxu0 0.0
    %1694 = vmatpush1.msra.mxu0 0.0
    %1695 = vmatprep.subr.mxu0 0.0
    %1696 = vmatpush1.msra.mxu0 0.0
    %1697 = vmatprep.subr.mxu0 0.0
    %1698 = vmatpush1.msra.mxu0 0.0
    %1699 = vmatprep.subr.mxu0 0.0
    %1700 = vmatpush1.msra.mxu0 0.0
    %1701 = vmatprep.subr.mxu0 0.0
    %1702 = vmatpush1.msra.mxu0 0.0
    %1703 = vmatprep.subr.mxu0 0.0
    %1704 = vmatpush1.msra.mxu0 0.0
    %1705 = vmatprep.subr.mxu0 0.0
    %1706 = vmatpush1.msra.mxu0 0.0
    %1707 = vmatprep.subr.mxu0 0.0
    %1708 = vmatpush1.msra.mxu0 0.0
    %1709 = vmatprep.subr.mxu0 0.0
    %1710 = vmatpush1.msra.mxu0 0.0
    %1711 = vmatprep.subr.mxu0 0.0
    %1712 = vmatpush1.msra.mxu0 0.0
    %1713 = vmatprep.subr.mxu0 0.0
    %1714 = vmatpush1.msra.mxu0 0.0
    %1715 = vmatprep.mubr.f32.mxu0 0.0
    %1716 = vmatmul.mubr.f32.gmra.mrb[0].mxu0 %v1649
    %v1717 = vpop.f32.mrb[0].mxu0
    %v1718 = vadd.f32 0.0, %v1717
    %v1719 = vpop.f32.mrb[0].mxu0
    %1720 = vdwg.mxu0
    %v1722 = vrot.slane %v1718, 2
    %v1724 = vadd.f32 %v1644, %v1722
    %v1725 = vxor.u32 %v1724, 2147483648
    %v1726 = vmul.f32 %v1725, 1.442695
    %v1727 = vpow.pop %v1726
    %v1728 = vadd.f32 %v1727, 1.0
    %v1729 = vrcp.pop %v1728
    %v1730 = vmul.f32 1.0, %v1729
    %v1731 = vtanh.pop %v1724
    %v1732 = vmul.f32 %v1730, 0.0
    %1734 = vrot.lane.b32.xlu0 %v1731, 64
    %v1735 = vpop.permute.xlu0 %1734
    %v1737 = vmul.f32 %v1730, %v1735
    %1739 = vrot.lane.b32.xlu0 %v1737, 32
    %v1740 = vpop.permute.xlu0 %1739
    %v1742 = vadd.f32 %v1732, %v1740
    %v1743 = vtanh.pop %v1742
    %1745 = vrot.lane.b32.xlu0 %v1743, 64
    %v1746 = vpop.permute.xlu0 %1745
    %v1748 = vmul.f32 %v1730, %v1746
    %v1750 = vrot.slane %v1748, 6
    %1751 = vrot.lane.b32.xlu0 %v1750, 32
    %v1752 = vpop.permute.xlu0 %1751
    %v1753 = vsel %vm168, %v1752, 0
    %1755 = vmatprep.subr.mxu0 0.0
    %1756 = vmatpush1.msra.mxu0 %v1645
    %1757 = vmatprep.subr.mxu0 0.0
    %1758 = vmatpush1.msra.mxu0 %v1646
    %1759 = vmatprep.subr.mxu0 0.0
    %1760 = vmatpush1.msra.mxu0 %v1647
    %1761 = vmatprep.subr.mxu0 0.0
    %1762 = vmatpush1.msra.mxu0 %v1648
    %1763 = vmatprep.subr.mxu0 0.0
    %1764 = vmatpush1.msra.mxu0 0.0
    %1765 = vmatprep.subr.mxu0 0.0
    %1766 = vmatpush1.msra.mxu0 0.0
    %1767 = vmatprep.subr.mxu0 0.0
    %1768 = vmatpush1.msra.mxu0 0.0
    %1769 = vmatprep.subr.mxu0 0.0
    %1770 = vmatpush1.msra.mxu0 0.0
    %1771 = vmatprep.subr.mxu0 0.0
    %1772 = vmatpush1.msra.mxu0 0.0
    %1773 = vmatprep.subr.mxu0 0.0
    %1774 = vmatpush1.msra.mxu0 0.0
    %1775 = vmatprep.subr.mxu0 0.0
    %1776 = vmatpush1.msra.mxu0 0.0
    %1777 = vmatprep.subr.mxu0 0.0
    %1778 = vmatpush1.msra.mxu0 0.0
    %1779 = vmatprep.subr.mxu0 0.0
    %1780 = vmatpush1.msra.mxu0 0.0
    %1781 = vmatprep.subr.mxu0 0.0
    %1782 = vmatpush1.msra.mxu0 0.0
    %1783 = vmatprep.subr.mxu0 0.0
    %1784 = vmatpush1.msra.mxu0 0.0
    %1785 = vmatprep.subr.mxu0 0.0
    %1786 = vmatpush1.msra.mxu0 0.0
    %1787 = vmatprep.subr.mxu0 0.0
    %1788 = vmatpush1.msra.mxu0 0.0
    %1789 = vmatprep.subr.mxu0 0.0
    %1790 = vmatpush1.msra.mxu0 0.0
    %1791 = vmatprep.subr.mxu0 0.0
    %1792 = vmatpush1.msra.mxu0 0.0
    %1793 = vmatprep.subr.mxu0 0.0
    %1794 = vmatpush1.msra.mxu0 0.0
    %1795 = vmatprep.subr.mxu0 0.0
    %1796 = vmatpush1.msra.mxu0 0.0
    %1797 = vmatprep.subr.mxu0 0.0
    %1798 = vmatpush1.msra.mxu0 0.0
    %1799 = vmatprep.subr.mxu0 0.0
    %1800 = vmatpush1.msra.mxu0 0.0
    %1801 = vmatprep.subr.mxu0 0.0
    %1802 = vmatpush1.msra.mxu0 0.0
    %1803 = vmatprep.subr.mxu0 0.0
    %1804 = vmatpush1.msra.mxu0 0.0
    %1805 = vmatprep.subr.mxu0 0.0
    %1806 = vmatpush1.msra.mxu0 0.0
    %1807 = vmatprep.subr.mxu0 0.0
    %1808 = vmatpush1.msra.mxu0 0.0
    %1809 = vmatprep.subr.mxu0 0.0
    %1810 = vmatpush1.msra.mxu0 0.0
    %1811 = vmatprep.subr.mxu0 0.0
    %1812 = vmatpush1.msra.mxu0 0.0
    %1813 = vmatprep.subr.mxu0 0.0
    %1814 = vmatpush1.msra.mxu0 0.0
    %1815 = vmatprep.subr.mxu0 0.0
    %1816 = vmatpush1.msra.mxu0 0.0
    %1817 = vmatprep.subr.mxu0 0.0
    %1818 = vmatpush1.msra.mxu0 0.0
    %1819 = vmatprep.mubr.f32.mxu0 0.0
    %1820 = vmatmul.mubr.f32.gmra.mrb[0].mxu0 %v1753
    %v1821 = vpop.f32.mrb[0].mxu0
    %v1822 = vadd.f32 0.0, %v1821
    %v1823 = vpop.f32.mrb[0].mxu0
    %1824 = vdwg.mxu0
    %v1826 = vrot.slane %v1822, 4
    %v1828 = vadd.f32 %v1644, %v1826
    %v1829 = vxor.u32 %v1828, 2147483648
    %v1830 = vmul.f32 %v1829, 1.442695
    %v1831 = vpow.pop %v1830
    %v1832 = vadd.f32 %v1831, 1.0
    %v1833 = vrcp.pop %v1832
    %v1834 = vmul.f32 1.0, %v1833
    %v1835 = vtanh.pop %v1828
    %v1837 = vrot.slane %v1742, 2
    %v1839 = vmul.f32 %v1834, %v1837
    %1841 = vrot.lane.b32.xlu0 %v1835, 64
    %v1842 = vpop.permute.xlu0 %1841
    %v1844 = vmul.f32 %v1834, %v1842
    %1846 = vrot.lane.b32.xlu0 %v1844, 32
    %v1847 = vpop.permute.xlu0 %1846
    %v1849 = vadd.f32 %v1839, %v1847
    %v1850 = vtanh.pop %v1849
    %1852 = vrot.lane.b32.xlu0 %v1850, 64
    %v1853 = vpop.permute.xlu0 %1852
    %v1855 = vmul.f32 %v1834, %v1853
    %v1857 = vrot.slane %v1855, 4
    %1858 = vrot.lane.b32.xlu0 %v1857, 32
    %v1859 = vpop.permute.xlu0 %1858
    %v1860 = vsel %vm168, %v1859, 0
    %1862 = vmatprep.subr.mxu0 0.0
    %1863 = vmatpush1.msra.mxu0 %v1645
    %1864 = vmatprep.subr.mxu0 0.0
    %1865 = vmatpush1.msra.mxu0 %v1646
    %1866 = vmatprep.subr.mxu0 0.0
    %1867 = vmatpush1.msra.mxu0 %v1647
    %1868 = vmatprep.subr.mxu0 0.0
    %1869 = vmatpush1.msra.mxu0 %v1648
    %1870 = vmatprep.subr.mxu0 0.0
    %1871 = vmatpush1.msra.mxu0 0.0
    %1872 = vmatprep.subr.mxu0 0.0
    %1873 = vmatpush1.msra.mxu0 0.0
    %1874 = vmatprep.subr.mxu0 0.0
    %1875 = vmatpush1.msra.mxu0 0.0
    %1876 = vmatprep.subr.mxu0 0.0
    %1877 = vmatpush1.msra.mxu0 0.0
    %1878 = vmatprep.subr.mxu0 0.0
    %1879 = vmatpush1.msra.mxu0 0.0
    %1880 = vmatprep.subr.mxu0 0.0
    %1881 = vmatpush1.msra.mxu0 0.0
    %1882 = vmatprep.subr.mxu0 0.0
    %1883 = vmatpush1.msra.mxu0 0.0
    %1884 = vmatprep.subr.mxu0 0.0
    %1885 = vmatpush1.msra.mxu0 0.0
    %1886 = vmatprep.subr.mxu0 0.0
    %1887 = vmatpush1.msra.mxu0 0.0
    %1888 = vmatprep.subr.mxu0 0.0
    %1889 = vmatpush1.msra.mxu0 0.0
    %1890 = vmatprep.subr.mxu0 0.0
    %1891 = vmatpush1.msra.mxu0 0.0
    %1892 = vmatprep.subr.mxu0 0.0
    %1893 = vmatpush1.msra.mxu0 0.0
    %1894 = vmatprep.subr.mxu0 0.0
    %1895 = vmatpush1.msra.mxu0 0.0
    %1896 = vmatprep.subr.mxu0 0.0
    %1897 = vmatpush1.msra.mxu0 0.0
    %1898 = vmatprep.subr.mxu0 0.0
    %1899 = vmatpush1.msra.mxu0 0.0
    %1900 = vmatprep.subr.mxu0 0.0
    %1901 = vmatpush1.msra.mxu0 0.0
    %1902 = vmatprep.subr.mxu0 0.0
    %1903 = vmatpush1.msra.mxu0 0.0
    %1904 = vmatprep.subr.mxu0 0.0
    %1905 = vmatpush1.msra.mxu0 0.0
    %1906 = vmatprep.subr.mxu0 0.0
    %1907 = vmatpush1.msra.mxu0 0.0
    %1908 = vmatprep.subr.mxu0 0.0
    %1909 = vmatpush1.msra.mxu0 0.0
    %1910 = vmatprep.subr.mxu0 0.0
    %1911 = vmatpush1.msra.mxu0 0.0
    %1912 = vmatprep.subr.mxu0 0.0
    %1913 = vmatpush1.msra.mxu0 0.0
    %1914 = vmatprep.subr.mxu0 0.0
    %1915 = vmatpush1.msra.mxu0 0.0
    %1916 = vmatprep.subr.mxu0 0.0
    %1917 = vmatpush1.msra.mxu0 0.0
    %1918 = vmatprep.subr.mxu0 0.0
    %1919 = vmatpush1.msra.mxu0 0.0
    %1920 = vmatprep.subr.mxu0 0.0
    %1921 = vmatpush1.msra.mxu0 0.0
    %1922 = vmatprep.subr.mxu0 0.0
    %1923 = vmatpush1.msra.mxu0 0.0
    %1924 = vmatprep.subr.mxu0 0.0
    %1925 = vmatpush1.msra.mxu0 0.0
    %1926 = vmatprep.mubr.f32.mxu0 0.0
    %1927 = vmatmul.mubr.f32.gmra.mrb[0].mxu0 %v1860
    %v1928 = vpop.f32.mrb[0].mxu0
    %v1929 = vadd.f32 0.0, %v1928
    %v1930 = vpop.f32.mrb[0].mxu0
    %1931 = vdwg.mxu0
    %v1933 = vrot.slane %v1929, 6
    %v1935 = vadd.f32 %v1644, %v1933
    %v1936 = vxor.u32 %v1935, 2147483648
    %v1937 = vmul.f32 %v1936, 1.442695
    %v1938 = vpow.pop %v1937
    %v1939 = vadd.f32 %v1938, 1.0
    %v1940 = vrcp.pop %v1939
    %v1941 = vmul.f32 1.0, %v1940
    %v1942 = vtanh.pop %v1935
    %v1944 = vrot.slane %v1849, 2
    %v1946 = vmul.f32 %v1941, %v1944
    %1948 = vrot.lane.b32.xlu0 %v1942, 64
    %v1949 = vpop.permute.xlu0 %1948
    %v1951 = vmul.f32 %v1941, %v1949
    %1953 = vrot.lane.b32.xlu0 %v1951, 32
    %v1954 = vpop.permute.xlu0 %1953
    %v1956 = vadd.f32 %v1946, %v1954
    %v1957 = vtanh.pop %v1956
    %1959 = vrot.lane.b32.xlu0 %v1957, 64
    %v1960 = vpop.permute.xlu0 %1959
    %v1962 = vmul.f32 %v1941, %v1960
    %v1964 = vrot.slane %v1962, 2
    %1965 = vrot.lane.b32.xlu0 %v1964, 32
    %v1966 = vpop.permute.xlu0 %1965
    %v1967 = vsel %vm168, %v1966, 0
    %1969 = vmatprep.subr.mxu0 0.0
    %1970 = vmatpush1.msra.mxu0 %v1645
    %1971 = vmatprep.subr.mxu0 0.0
    %1972 = vmatpush1.msra.mxu0 %v1646
    %1973 = vmatprep.subr.mxu0 0.0
    %1974 = vmatpush1.msra.mxu0 %v1647
    %1975 = vmatprep.subr.mxu0 0.0
    %1976 = vmatpush1.msra.mxu0 %v1648
    %1977 = vmatprep.subr.mxu0 0.0
    %1978 = vmatpush1.msra.mxu0 0.0
    %1979 = vmatprep.subr.mxu0 0.0
    %1980 = vmatpush1.msra.mxu0 0.0
    %1981 = vmatprep.subr.mxu0 0.0
    %1982 = vmatpush1.msra.mxu0 0.0
    %1983 = vmatprep.subr.mxu0 0.0
    %1984 = vmatpush1.msra.mxu0 0.0
    %1985 = vmatprep.subr.mxu0 0.0
    %1986 = vmatpush1.msra.mxu0 0.0
    %1987 = vmatprep.subr.mxu0 0.0
    %1988 = vmatpush1.msra.mxu0 0.0
    %1989 = vmatprep.subr.mxu0 0.0
    %1990 = vmatpush1.msra.mxu0 0.0
    %1991 = vmatprep.subr.mxu0 0.0
    %1992 = vmatpush1.msra.mxu0 0.0
    %1993 = vmatprep.subr.mxu0 0.0
    %1994 = vmatpush1.msra.mxu0 0.0
    %1995 = vmatprep.subr.mxu0 0.0
    %1996 = vmatpush1.msra.mxu0 0.0
    %1997 = vmatprep.subr.mxu0 0.0
    %1998 = vmatpush1.msra.mxu0 0.0
    %1999 = vmatprep.subr.mxu0 0.0
    %2000 = vmatpush1.msra.mxu0 0.0
    %2001 = vmatprep.subr.mxu0 0.0
    %2002 = vmatpush1.msra.mxu0 0.0
    %2003 = vmatprep.subr.mxu0 0.0
    %2004 = vmatpush1.msra.mxu0 0.0
    %2005 = vmatprep.subr.mxu0 0.0
    %2006 = vmatpush1.msra.mxu0 0.0
    %2007 = vmatprep.subr.mxu0 0.0
    %2008 = vmatpush1.msra.mxu0 0.0
    %2009 = vmatprep.subr.mxu0 0.0
    %2010 = vmatpush1.msra.mxu0 0.0
    %2011 = vmatprep.subr.mxu0 0.0
    %2012 = vmatpush1.msra.mxu0 0.0
    %2013 = vmatprep.subr.mxu0 0.0
    %2014 = vmatpush1.msra.mxu0 0.0
    %2015 = vmatprep.subr.mxu0 0.0
    %2016 = vmatpush1.msra.mxu0 0.0
    %2017 = vmatprep.subr.mxu0 0.0
    %2018 = vmatpush1.msra.mxu0 0.0
    %2019 = vmatprep.subr.mxu0 0.0
    %2020 = vmatpush1.msra.mxu0 0.0
    %2021 = vmatprep.subr.mxu0 0.0
    %2022 = vmatpush1.msra.mxu0 0.0
    %2023 = vmatprep.subr.mxu0 0.0
    %2024 = vmatpush1.msra.mxu0 0.0
    %2025 = vmatprep.subr.mxu0 0.0
    %2026 = vmatpush1.msra.mxu0 0.0
    %2027 = vmatprep.subr.mxu0 0.0
    %2028 = vmatpush1.msra.mxu0 0.0
    %2029 = vmatprep.subr.mxu0 0.0
    %2030 = vmatpush1.msra.mxu0 0.0
    %2031 = vmatprep.subr.mxu0 0.0
    %2032 = vmatpush1.msra.mxu0 0.0
    %2033 = vmatprep.mubr.f32.mxu0 0.0
    %2034 = vmatmul.mubr.f32.gmra.mrb[0].mxu0 %v1967
    %v2035 = vpop.f32.mrb[0].mxu0
    %v2036 = vadd.f32 0.0, %v2035
    %v2037 = vpop.f32.mrb[0].mxu0
    %2038 = vdwg.mxu0
    %v2039 = vadd.f32 %v1644, %v2036
    %v2040 = vxor.u32 %v2039, 2147483648
    %v2041 = vmul.f32 %v2040, 1.442695
    %v2042 = vpow.pop %v2041
    %v2043 = vadd.f32 %v2042, 1.0
    %v2044 = vrcp.pop %v2043
    %v2045 = vmul.f32 1.0, %v2044
    %v2046 = vtanh.pop %v2039
    %v2048 = vrot.slane %v1956, 2
    %v2050 = vmul.f32 %v2045, %v2048
    %2052 = vrot.lane.b32.xlu0 %v2046, 64
    %v2053 = vpop.permute.xlu0 %2052
    %v2055 = vmul.f32 %v2045, %v2053
    %2057 = vrot.lane.b32.xlu0 %v2055, 32
    %v2058 = vpop.permute.xlu0 %2057
    %v2060 = vadd.f32 %v2050, %v2058
    %v2061 = vtanh.pop %v2060
    %2063 = vrot.lane.b32.xlu0 %v2061, 64
    %v2064 = vpop.permute.xlu0 %2063
    %v2066 = vmul.f32 %v2045, %v2064
    %2068 = vrot.lane.b32.xlu0 %v2066, 32
    %v2069 = vpop.permute.xlu0 %2068
    %v2070 = vsel %vm168, %v2069, 0
    %2072 = vmatprep.subr.mxu0 0.0
    %2073 = vmatpush1.msra.mxu0 %v1645
    %2074 = vmatprep.subr.mxu0 0.0
    %2075 = vmatpush1.msra.mxu0 %v1646
    %2076 = vmatprep.subr.mxu0 0.0
    %2077 = vmatpush1.msra.mxu0 %v1647
    %2078 = vmatprep.subr.mxu0 0.0
    %2079 = vmatpush1.msra.mxu0 %v1648
    %2080 = vmatprep.subr.mxu0 0.0
    %2081 = vmatpush1.msra.mxu0 0.0
    %2082 = vmatprep.subr.mxu0 0.0
    %2083 = vmatpush1.msra.mxu0 0.0
    %2084 = vmatprep.subr.mxu0 0.0
    %2085 = vmatpush1.msra.mxu0 0.0
    %2086 = vmatprep.subr.mxu0 0.0
    %2087 = vmatpush1.msra.mxu0 0.0
    %2088 = vmatprep.subr.mxu0 0.0
    %2089 = vmatpush1.msra.mxu0 0.0
    %2090 = vmatprep.subr.mxu0 0.0
    %2091 = vmatpush1.msra.mxu0 0.0
    %2092 = vmatprep.subr.mxu0 0.0
    %2093 = vmatpush1.msra.mxu0 0.0
    %2094 = vmatprep.subr.mxu0 0.0
    %2095 = vmatpush1.msra.mxu0 0.0
    %2096 = vmatprep.subr.mxu0 0.0
    %2097 = vmatpush1.msra.mxu0 0.0
    %2098 = vmatprep.subr.mxu0 0.0
    %2099 = vmatpush1.msra.mxu0 0.0
    %2100 = vmatprep.subr.mxu0 0.0
    %2101 = vmatpush1.msra.mxu0 0.0
    %2102 = vmatprep.subr.mxu0 0.0
    %2103 = vmatpush1.msra.mxu0 0.0
    %2104 = vmatprep.subr.mxu0 0.0
    %2105 = vmatpush1.msra.mxu0 0.0
    %2106 = vmatprep.subr.mxu0 0.0
    %2107 = vmatpush1.msra.mxu0 0.0
    %2108 = vmatprep.subr.mxu0 0.0
    %2109 = vmatpush1.msra.mxu0 0.0
    %2110 = vmatprep.subr.mxu0 0.0
    %2111 = vmatpush1.msra.mxu0 0.0
    %2112 = vmatprep.subr.mxu0 0.0
    %2113 = vmatpush1.msra.mxu0 0.0
    %2114 = vmatprep.subr.mxu0 0.0
    %2115 = vmatpush1.msra.mxu0 0.0
    %2116 = vmatprep.subr.mxu0 0.0
    %2117 = vmatpush1.msra.mxu0 0.0
    %2118 = vmatprep.subr.mxu0 0.0
    %2119 = vmatpush1.msra.mxu0 0.0
    %2120 = vmatprep.subr.mxu0 0.0
    %2121 = vmatpush1.msra.mxu0 0.0
    %2122 = vmatprep.subr.mxu0 0.0
    %2123 = vmatpush1.msra.mxu0 0.0
    %2124 = vmatprep.subr.mxu0 0.0
    %2125 = vmatpush1.msra.mxu0 0.0
    %2126 = vmatprep.subr.mxu0 0.0
    %2127 = vmatpush1.msra.mxu0 0.0
    %2128 = vmatprep.subr.mxu0 0.0
    %2129 = vmatpush1.msra.mxu0 0.0
    %2130 = vmatprep.subr.mxu0 0.0
    %2131 = vmatpush1.msra.mxu0 0.0
    %2132 = vmatprep.subr.mxu0 0.0
    %2133 = vmatpush1.msra.mxu0 0.0
    %2134 = vmatprep.subr.mxu0 0.0
    %2135 = vmatpush1.msra.mxu0 0.0
    %2136 = vmatprep.mubr.f32.mxu0 0.0
    %2137 = vmatmul.mubr.f32.gmra.mrb[0].mxu0 %v2070
    %v2138 = vpop.f32.mrb[0].mxu0
    %v2139 = vadd.f32 0.0, %v2138
    %v2140 = vpop.f32.mrb[0].mxu0
    %2141 = vdwg.mxu0
    %v2143 = vrot.slane %v2139, 2
    %v2145 = vadd.f32 %v1643, %v2143
    %v2146 = vxor.u32 %v2145, 2147483648
    %v2147 = vmul.f32 %v2146, 1.442695
    %v2148 = vpow.pop %v2147
    %v2149 = vadd.f32 %v2148, 1.0
    %v2150 = vrcp.pop %v2149
    %v2151 = vmul.f32 1.0, %v2150
    %v2152 = vtanh.pop %v2145
    %v2154 = vrot.slane %v2060, 2
    %v2156 = vmul.f32 %v2151, %v2154
    %2158 = vrot.lane.b32.xlu0 %v2152, 64
    %v2159 = vpop.permute.xlu0 %2158
    %v2161 = vmul.f32 %v2151, %v2159
    %2163 = vrot.lane.b32.xlu0 %v2161, 32
    %v2164 = vpop.permute.xlu0 %2163
    %v2166 = vadd.f32 %v2156, %v2164
    %v2167 = vtanh.pop %v2166
    %2169 = vrot.lane.b32.xlu0 %v2167, 64
    %v2170 = vpop.permute.xlu0 %2169
    %v2172 = vmul.f32 %v2151, %v2170
    %v2174 = vrot.slane %v2172, 6
    %2175 = vrot.lane.b32.xlu0 %v2174, 32
    %v2176 = vpop.permute.xlu0 %2175
    %v2177 = vsel %vm168, %v2176, 0
    %2179 = vmatprep.subr.mxu0 0.0
    %2180 = vmatpush1.msra.mxu0 %v1645
    %2181 = vmatprep.subr.mxu0 0.0
    %2182 = vmatpush1.msra.mxu0 %v1646
    %2183 = vmatprep.subr.mxu0 0.0
    %2184 = vmatpush1.msra.mxu0 %v1647
    %2185 = vmatprep.subr.mxu0 0.0
    %2186 = vmatpush1.msra.mxu0 %v1648
    %2187 = vmatprep.subr.mxu0 0.0
    %2188 = vmatpush1.msra.mxu0 0.0
    %2189 = vmatprep.subr.mxu0 0.0
    %2190 = vmatpush1.msra.mxu0 0.0
    %2191 = vmatprep.subr.mxu0 0.0
    %2192 = vmatpush1.msra.mxu0 0.0
    %2193 = vmatprep.subr.mxu0 0.0
    %2194 = vmatpush1.msra.mxu0 0.0
    %2195 = vmatprep.subr.mxu0 0.0
    %2196 = vmatpush1.msra.mxu0 0.0
    %2197 = vmatprep.subr.mxu0 0.0
    %2198 = vmatpush1.msra.mxu0 0.0
    %2199 = vmatprep.subr.mxu0 0.0
    %2200 = vmatpush1.msra.mxu0 0.0
    %2201 = vmatprep.subr.mxu0 0.0
    %2202 = vmatpush1.msra.mxu0 0.0
    %2203 = vmatprep.subr.mxu0 0.0
    %2204 = vmatpush1.msra.mxu0 0.0
    %2205 = vmatprep.subr.mxu0 0.0
    %2206 = vmatpush1.msra.mxu0 0.0
    %2207 = vmatprep.subr.mxu0 0.0
    %2208 = vmatpush1.msra.mxu0 0.0
    %2209 = vmatprep.subr.mxu0 0.0
    %2210 = vmatpush1.msra.mxu0 0.0
    %2211 = vmatprep.subr.mxu0 0.0
    %2212 = vmatpush1.msra.mxu0 0.0
    %2213 = vmatprep.subr.mxu0 0.0
    %2214 = vmatpush1.msra.mxu0 0.0
    %2215 = vmatprep.subr.mxu0 0.0
    %2216 = vmatpush1.msra.mxu0 0.0
    %2217 = vmatprep.subr.mxu0 0.0
    %2218 = vmatpush1.msra.mxu0 0.0
    %2219 = vmatprep.subr.mxu0 0.0
    %2220 = vmatpush1.msra.mxu0 0.0
    %2221 = vmatprep.subr.mxu0 0.0
    %2222 = vmatpush1.msra.mxu0 0.0
    %2223 = vmatprep.subr.mxu0 0.0
    %2224 = vmatpush1.msra.mxu0 0.0
    %2225 = vmatprep.subr.mxu0 0.0
    %2226 = vmatpush1.msra.mxu0 0.0
    %2227 = vmatprep.subr.mxu0 0.0
    %2228 = vmatpush1.msra.mxu0 0.0
    %2229 = vmatprep.subr.mxu0 0.0
    %2230 = vmatpush1.msra.mxu0 0.0
    %2231 = vmatprep.subr.mxu0 0.0
    %2232 = vmatpush1.msra.mxu0 0.0
    %2233 = vmatprep.subr.mxu0 0.0
    %2234 = vmatpush1.msra.mxu0 0.0
    %2235 = vmatprep.subr.mxu0 0.0
    %2236 = vmatpush1.msra.mxu0 0.0
    %2237 = vmatprep.subr.mxu0 0.0
    %2238 = vmatpush1.msra.mxu0 0.0
    %2239 = vmatprep.subr.mxu0 0.0
    %2240 = vmatpush1.msra.mxu0 0.0
    %2241 = vmatprep.subr.mxu0 0.0
    %2242 = vmatpush1.msra.mxu0 0.0
    %2243 = vmatprep.mubr.f32.mxu0 0.0
    %2244 = vmatmul.mubr.f32.gmra.mrb[0].mxu0 %v2177
    %v2245 = vpop.f32.mrb[0].mxu0
    %v2246 = vadd.f32 0.0, %v2245
    %v2247 = vpop.f32.mrb[0].mxu0
    %2248 = vdwg.mxu0
    %v2250 = vrot.slane %v2246, 4
    %v2252 = vadd.f32 %v1643, %v2250
    %v2253 = vxor.u32 %v2252, 2147483648
    %v2254 = vmul.f32 %v2253, 1.442695
    %v2255 = vpow.pop %v2254
    %v2256 = vadd.f32 %v2255, 1.0
    %v2257 = vrcp.pop %v2256
    %v2258 = vmul.f32 1.0, %v2257
    %v2259 = vtanh.pop %v2252
    %v2261 = vrot.slane %v2166, 2
    %v2263 = vmul.f32 %v2258, %v2261
    %2265 = vrot.lane.b32.xlu0 %v2259, 64
    %v2266 = vpop.permute.xlu0 %2265
    %v2268 = vmul.f32 %v2258, %v2266
    %2270 = vrot.lane.b32.xlu0 %v2268, 32
    %v2271 = vpop.permute.xlu0 %2270
    %v2273 = vadd.f32 %v2263, %v2271
    %v2274 = vtanh.pop %v2273
    %2276 = vrot.lane.b32.xlu0 %v2274, 64
    %v2277 = vpop.permute.xlu0 %2276
    %v2279 = vmul.f32 %v2258, %v2277
    %v2281 = vrot.slane %v2279, 4
    %2282 = vrot.lane.b32.xlu0 %v2281, 32
    %v2283 = vpop.permute.xlu0 %2282
    %v2284 = vsel %vm168, %v2283, 0
    %2286 = vmatprep.subr.mxu0 0.0
    %2287 = vmatpush1.msra.mxu0 %v1645
    %2288 = vmatprep.subr.mxu0 0.0
    %2289 = vmatpush1.msra.mxu0 %v1646
    %2290 = vmatprep.subr.mxu0 0.0
    %2291 = vmatpush1.msra.mxu0 %v1647
    %2292 = vmatprep.subr.mxu0 0.0
    %2293 = vmatpush1.msra.mxu0 %v1648
    %2294 = vmatprep.subr.mxu0 0.0
    %2295 = vmatpush1.msra.mxu0 0.0
    %2296 = vmatprep.subr.mxu0 0.0
    %2297 = vmatpush1.msra.mxu0 0.0
    %2298 = vmatprep.subr.mxu0 0.0
    %2299 = vmatpush1.msra.mxu0 0.0
    %2300 = vmatprep.subr.mxu0 0.0
    %2301 = vmatpush1.msra.mxu0 0.0
    %2302 = vmatprep.subr.mxu0 0.0
    %2303 = vmatpush1.msra.mxu0 0.0
    %2304 = vmatprep.subr.mxu0 0.0
    %2305 = vmatpush1.msra.mxu0 0.0
    %2306 = vmatprep.subr.mxu0 0.0
    %2307 = vmatpush1.msra.mxu0 0.0
    %2308 = vmatprep.subr.mxu0 0.0
    %2309 = vmatpush1.msra.mxu0 0.0
    %2310 = vmatprep.subr.mxu0 0.0
    %2311 = vmatpush1.msra.mxu0 0.0
    %2312 = vmatprep.subr.mxu0 0.0
    %2313 = vmatpush1.msra.mxu0 0.0
    %2314 = vmatprep.subr.mxu0 0.0
    %2315 = vmatpush1.msra.mxu0 0.0
    %2316 = vmatprep.subr.mxu0 0.0
    %2317 = vmatpush1.msra.mxu0 0.0
    %2318 = vmatprep.subr.mxu0 0.0
    %2319 = vmatpush1.msra.mxu0 0.0
    %2320 = vmatprep.subr.mxu0 0.0
    %2321 = vmatpush1.msra.mxu0 0.0
    %2322 = vmatprep.subr.mxu0 0.0
    %2323 = vmatpush1.msra.mxu0 0.0
    %2324 = vmatprep.subr.mxu0 0.0
    %2325 = vmatpush1.msra.mxu0 0.0
    %2326 = vmatprep.subr.mxu0 0.0
    %2327 = vmatpush1.msra.mxu0 0.0
    %2328 = vmatprep.subr.mxu0 0.0
    %2329 = vmatpush1.msra.mxu0 0.0
    %2330 = vmatprep.subr.mxu0 0.0
    %2331 = vmatpush1.msra.mxu0 0.0
    %2332 = vmatprep.subr.mxu0 0.0
    %2333 = vmatpush1.msra.mxu0 0.0
    %2334 = vmatprep.subr.mxu0 0.0
    %2335 = vmatpush1.msra.mxu0 0.0
    %2336 = vmatprep.subr.mxu0 0.0
    %2337 = vmatpush1.msra.mxu0 0.0
    %2338 = vmatprep.subr.mxu0 0.0
    %2339 = vmatpush1.msra.mxu0 0.0
    %2340 = vmatprep.subr.mxu0 0.0
    %2341 = vmatpush1.msra.mxu0 0.0
    %2342 = vmatprep.subr.mxu0 0.0
    %2343 = vmatpush1.msra.mxu0 0.0
    %2344 = vmatprep.subr.mxu0 0.0
    %2345 = vmatpush1.msra.mxu0 0.0
    %2346 = vmatprep.subr.mxu0 0.0
    %2347 = vmatpush1.msra.mxu0 0.0
    %2348 = vmatprep.subr.mxu0 0.0
    %2349 = vmatpush1.msra.mxu0 0.0
    %2350 = vmatprep.mubr.f32.mxu0 0.0
    %2351 = vmatmul.mubr.f32.gmra.mrb[0].mxu0 %v2284
    %v2352 = vpop.f32.mrb[0].mxu0
    %v2353 = vadd.f32 0.0, %v2352
    %v2354 = vpop.f32.mrb[0].mxu0
    %2355 = vdwg.mxu0
    %v2357 = vrot.slane %v2353, 6
    %v2359 = vadd.f32 %v1643, %v2357
    %v2360 = vxor.u32 %v2359, 2147483648
    %v2361 = vmul.f32 %v2360, 1.442695
    %v2362 = vpow.pop %v2361
    %v2363 = vadd.f32 %v2362, 1.0
    %v2364 = vrcp.pop %v2363
    %v2365 = vmul.f32 1.0, %v2364
    %v2366 = vtanh.pop %v2359
    %v2368 = vrot.slane %v2273, 2
    %v2370 = vmul.f32 %v2365, %v2368
    %2372 = vrot.lane.b32.xlu0 %v2366, 64
    %v2373 = vpop.permute.xlu0 %2372
    %v2375 = vmul.f32 %v2365, %v2373
    %2377 = vrot.lane.b32.xlu0 %v2375, 32
    %v2378 = vpop.permute.xlu0 %2377
    %v2380 = vadd.f32 %v2370, %v2378
    %v2381 = vtanh.pop %v2380
    %2383 = vrot.lane.b32.xlu0 %v2381, 64
    %v2384 = vpop.permute.xlu0 %2383
    %v2386 = vmul.f32 %v2365, %v2384
    %v2388 = vrot.slane %v2386, 2
    %2389 = vrot.lane.b32.xlu0 %v2388, 32
    %v2390 = vpop.permute.xlu0 %2389
    %v2391 = vsel %vm168, %v2390, 0
    %2393 = vmatprep.subr.mxu0 0.0
    %2394 = vmatpush1.msra.mxu0 %v1645
    %2395 = vmatprep.subr.mxu0 0.0
    %2396 = vmatpush1.msra.mxu0 %v1646
    %2397 = vmatprep.subr.mxu0 0.0
    %2398 = vmatpush1.msra.mxu0 %v1647
    %2399 = vmatprep.subr.mxu0 0.0
    %2400 = vmatpush1.msra.mxu0 %v1648
    %2401 = vmatprep.subr.mxu0 0.0
    %2402 = vmatpush1.msra.mxu0 0.0
    %2403 = vmatprep.subr.mxu0 0.0
    %2404 = vmatpush1.msra.mxu0 0.0
    %2405 = vmatprep.subr.mxu0 0.0
    %2406 = vmatpush1.msra.mxu0 0.0
    %2407 = vmatprep.subr.mxu0 0.0
    %2408 = vmatpush1.msra.mxu0 0.0
    %2409 = vmatprep.subr.mxu0 0.0
    %2410 = vmatpush1.msra.mxu0 0.0
    %2411 = vmatprep.subr.mxu0 0.0
    %2412 = vmatpush1.msra.mxu0 0.0
    %2413 = vmatprep.subr.mxu0 0.0
    %2414 = vmatpush1.msra.mxu0 0.0
    %2415 = vmatprep.subr.mxu0 0.0
    %2416 = vmatpush1.msra.mxu0 0.0
    %2417 = vmatprep.subr.mxu0 0.0
    %2418 = vmatpush1.msra.mxu0 0.0
    %2419 = vmatprep.subr.mxu0 0.0
    %2420 = vmatpush1.msra.mxu0 0.0
    %2421 = vmatprep.subr.mxu0 0.0
    %2422 = vmatpush1.msra.mxu0 0.0
    %2423 = vmatprep.subr.mxu0 0.0
    %2424 = vmatpush1.msra.mxu0 0.0
    %2425 = vmatprep.subr.mxu0 0.0
    %2426 = vmatpush1.msra.mxu0 0.0
    %2427 = vmatprep.subr.mxu0 0.0
    %2428 = vmatpush1.msra.mxu0 0.0
    %2429 = vmatprep.subr.mxu0 0.0
    %2430 = vmatpush1.msra.mxu0 0.0
    %2431 = vmatprep.subr.mxu0 0.0
    %2432 = vmatpush1.msra.mxu0 0.0
    %2433 = vmatprep.subr.mxu0 0.0
    %2434 = vmatpush1.msra.mxu0 0.0
    %2435 = vmatprep.subr.mxu0 0.0
    %2436 = vmatpush1.msra.mxu0 0.0
    %2437 = vmatprep.subr.mxu0 0.0
    %2438 = vmatpush1.msra.mxu0 0.0
    %2439 = vmatprep.subr.mxu0 0.0
    %2440 = vmatpush1.msra.mxu0 0.0
    %2441 = vmatprep.subr.mxu0 0.0
    %2442 = vmatpush1.msra.mxu0 0.0
    %2443 = vmatprep.subr.mxu0 0.0
    %2444 = vmatpush1.msra.mxu0 0.0
    %2445 = vmatprep.subr.mxu0 0.0
    %2446 = vmatpush1.msra.mxu0 0.0
    %2447 = vmatprep.subr.mxu0 0.0
    %2448 = vmatpush1.msra.mxu0 0.0
    %2449 = vmatprep.subr.mxu0 0.0
    %2450 = vmatpush1.msra.mxu0 0.0
    %2451 = vmatprep.subr.mxu0 0.0
    %2452 = vmatpush1.msra.mxu0 0.0
    %2453 = vmatprep.subr.mxu0 0.0
    %2454 = vmatpush1.msra.mxu0 0.0
    %2455 = vmatprep.subr.mxu0 0.0
    %2456 = vmatpush1.msra.mxu0 0.0
    %2457 = vmatprep.mubr.f32.mxu0 0.0
    %2458 = vmatmul.mubr.f32.gmra.mrb[0].mxu0 %v2391
    %v2459 = vpop.f32.mrb[0].mxu0
    %v2460 = vadd.f32 0.0, %v2459
    %v2461 = vpop.f32.mrb[0].mxu0
    %2462 = vdwg.mxu0
    %v2463 = vadd.f32 %v1643, %v2460
    %v2464 = vxor.u32 %v2463, 2147483648
    %v2465 = vmul.f32 %v2464, 1.442695
    %v2466 = vpow.pop %v2465
    %v2467 = vadd.f32 %v2466, 1.0
    %v2468 = vrcp.pop %v2467
    %v2469 = vmul.f32 1.0, %v2468
    %v2470 = vtanh.pop %v2463
    %v2472 = vrot.slane %v2380, 2
    %v2474 = vmul.f32 %v2469, %v2472
    %2476 = vrot.lane.b32.xlu0 %v2470, 64
    %v2477 = vpop.permute.xlu0 %2476
    %v2479 = vmul.f32 %v2469, %v2477
    %2481 = vrot.lane.b32.xlu0 %v2479, 32
    %v2482 = vpop.permute.xlu0 %2481
    %v2484 = vadd.f32 %v2474, %v2482
    %v2485 = vtanh.pop %v2484
    %2487 = vrot.lane.b32.xlu0 %v2485, 64
    %v2488 = vpop.permute.xlu0 %2487
    %v2490 = vmul.f32 %v2469, %v2488
    %v2491 = vld [vmem:[%s8] sm:$0xff]
    %v2492 = vld [vmem:[%s8 + $0x8] sm:$0xff]
    %v2493 = vld [vmem:[%s8 + $0x10] sm:$0xff]
    %v2494 = vld [vmem:[%s8 + $0x18] sm:$0xff]
    %v2495 = vld [vmem:[%s9] sm:$0x1]
    %v2497 = vlaneseq
    %v2498 = vshrl.u32 %v2497, 7
    %v2499 = vsub.s32 0, %v2498
    %v2500 = vrot.slane %v2495, %v2499
    %2503 = vrot.lane.b32.xlu0 %v2490, 32
    %v2504 = vpop.permute.xlu0 %2503
    %v2505 = vsel %vm168, %v2504, 0
    %2507 = vmatprep.subr.mxu0 0.0
    %2508 = vmatpush1.msra.mxu0 %v2491
    %2509 = vmatprep.subr.mxu0 0.0
    %2510 = vmatpush1.msra.mxu0 %v2492
    %2511 = vmatprep.subr.mxu0 0.0
    %2512 = vmatpush1.msra.mxu0 %v2493
    %2513 = vmatprep.subr.mxu0 0.0
    %2514 = vmatpush1.msra.mxu0 %v2494
    %2515 = vmatprep.subr.mxu0 0.0
    %2516 = vmatpush1.msra.mxu0 0.0
    %2517 = vmatprep.subr.mxu0 0.0
    %2518 = vmatpush1.msra.mxu0 0.0
    %2519 = vmatprep.subr.mxu0 0.0
    %2520 = vmatpush1.msra.mxu0 0.0
    %2521 = vmatprep.subr.mxu0 0.0
    %2522 = vmatpush1.msra.mxu0 0.0
    %2523 = vmatprep.subr.mxu0 0.0
    %2524 = vmatpush1.msra.mxu0 0.0
    %2525 = vmatprep.subr.mxu0 0.0
    %2526 = vmatpush1.msra.mxu0 0.0
    %2527 = vmatprep.subr.mxu0 0.0
    %2528 = vmatpush1.msra.mxu0 0.0
    %2529 = vmatprep.subr.mxu0 0.0
    %2530 = vmatpush1.msra.mxu0 0.0
    %2531 = vmatprep.subr.mxu0 0.0
    %2532 = vmatpush1.msra.mxu0 0.0
    %2533 = vmatprep.subr.mxu0 0.0
    %2534 = vmatpush1.msra.mxu0 0.0
    %2535 = vmatprep.subr.mxu0 0.0
    %2536 = vmatpush1.msra.mxu0 0.0
    %2537 = vmatprep.subr.mxu0 0.0
    %2538 = vmatpush1.msra.mxu0 0.0
    %2539 = vmatprep.subr.mxu0 0.0
    %2540 = vmatpush1.msra.mxu0 0.0
    %2541 = vmatprep.subr.mxu0 0.0
    %2542 = vmatpush1.msra.mxu0 0.0
    %2543 = vmatprep.subr.mxu0 0.0
    %2544 = vmatpush1.msra.mxu0 0.0
    %2545 = vmatprep.subr.mxu0 0.0
    %2546 = vmatpush1.msra.mxu0 0.0
    %2547 = vmatprep.subr.mxu0 0.0
    %2548 = vmatpush1.msra.mxu0 0.0
    %2549 = vmatprep.subr.mxu0 0.0
    %2550 = vmatpush1.msra.mxu0 0.0
    %2551 = vmatprep.subr.mxu0 0.0
    %2552 = vmatpush1.msra.mxu0 0.0
    %2553 = vmatprep.subr.mxu0 0.0
    %2554 = vmatpush1.msra.mxu0 0.0
    %2555 = vmatprep.subr.mxu0 0.0
    %2556 = vmatpush1.msra.mxu0 0.0
    %2557 = vmatprep.subr.mxu0 0.0
    %2558 = vmatpush1.msra.mxu0 0.0
    %2559 = vmatprep.subr.mxu0 0.0
    %2560 = vmatpush1.msra.mxu0 0.0
    %2561 = vmatprep.subr.mxu0 0.0
    %2562 = vmatpush1.msra.mxu0 0.0
    %2563 = vmatprep.subr.mxu0 0.0
    %2564 = vmatpush1.msra.mxu0 0.0
    %2565 = vmatprep.subr.mxu0 0.0
    %2566 = vmatpush1.msra.mxu0 0.0
    %2567 = vmatprep.subr.mxu0 0.0
    %2568 = vmatpush1.msra.mxu0 0.0
    %2569 = vmatprep.subr.mxu0 0.0
    %2570 = vmatpush1.msra.mxu0 0.0
    %2571 = vmatprep.mubr.f32.mxu0 0.0
    %2572 = vmatmul.mubr.f32.gmra.mrb[0].mxu0 %v2505
    %v2573 = vpop.f32.mrb[0].mxu0
    %v2574 = vadd.f32 %v2500, %v2573
    %v2575 = vpop.f32.mrb[0].mxu0
    %2576 = vdwg.mxu0
    %v2577 = vld [vmem:[%s10] sm:$0xff]
    %v2578 = vld [vmem:[%s10 + $0x8] sm:$0xff]
    %v2579 = vld [vmem:[%s10 + $0x10] sm:$0xff]
    %v2580 = vld [vmem:[%s10 + $0x18] sm:$0xff]
    %v2581 = vld [vmem:[%s11] sm:$0x1]
    %v2583 = vlaneseq
    %v2584 = vshrl.u32 %v2583, 7
    %v2585 = vsub.s32 0, %v2584
    %v2586 = vrot.slane %v2581, %v2585
    %v2589 = vsel %vm168, %v2574, 0
    %2591 = vmatprep.subr.mxu0 0.0
    %2592 = vmatpush1.msra.mxu0 %v2577
    %2593 = vmatprep.subr.mxu0 0.0
    %2594 = vmatpush1.msra.mxu0 %v2578
    %2595 = vmatprep.subr.mxu0 0.0
    %2596 = vmatpush1.msra.mxu0 %v2579
    %2597 = vmatprep.subr.mxu0 0.0
    %2598 = vmatpush1.msra.mxu0 %v2580
    %2599 = vmatprep.subr.mxu0 0.0
    %2600 = vmatpush1.msra.mxu0 0.0
    %2601 = vmatprep.subr.mxu0 0.0
    %2602 = vmatpush1.msra.mxu0 0.0
    %2603 = vmatprep.subr.mxu0 0.0
    %2604 = vmatpush1.msra.mxu0 0.0
    %2605 = vmatprep.subr.mxu0 0.0
    %2606 = vmatpush1.msra.mxu0 0.0
    %2607 = vmatprep.subr.mxu0 0.0
    %2608 = vmatpush1.msra.mxu0 0.0
    %2609 = vmatprep.subr.mxu0 0.0
    %2610 = vmatpush1.msra.mxu0 0.0
    %2611 = vmatprep.subr.mxu0 0.0
    %2612 = vmatpush1.msra.mxu0 0.0
    %2613 = vmatprep.subr.mxu0 0.0
    %2614 = vmatpush1.msra.mxu0 0.0
    %2615 = vmatprep.subr.mxu0 0.0
    %2616 = vmatpush1.msra.mxu0 0.0
    %2617 = vmatprep.subr.mxu0 0.0
    %2618 = vmatpush1.msra.mxu0 0.0
    %2619 = vmatprep.subr.mxu0 0.0
    %2620 = vmatpush1.msra.mxu0 0.0
    %2621 = vmatprep.subr.mxu0 0.0
    %2622 = vmatpush1.msra.mxu0 0.0
    %2623 = vmatprep.subr.mxu0 0.0
    %2624 = vmatpush1.msra.mxu0 0.0
    %2625 = vmatprep.subr.mxu0 0.0
    %2626 = vmatpush1.msra.mxu0 0.0
    %2627 = vmatprep.subr.mxu0 0.0
    %2628 = vmatpush1.msra.mxu0 0.0
    %2629 = vmatprep.subr.mxu0 0.0
    %2630 = vmatpush1.msra.mxu0 0.0
    %2631 = vmatprep.subr.mxu0 0.0
    %2632 = vmatpush1.msra.mxu0 0.0
    %2633 = vmatprep.subr.mxu0 0.0
    %2634 = vmatpush1.msra.mxu0 0.0
    %2635 = vmatprep.subr.mxu0 0.0
    %2636 = vmatpush1.msra.mxu0 0.0
    %2637 = vmatprep.subr.mxu0 0.0
    %2638 = vmatpush1.msra.mxu0 0.0
    %2639 = vmatprep.subr.mxu0 0.0
    %2640 = vmatpush1.msra.mxu0 0.0
    %2641 = vmatprep.subr.mxu0 0.0
    %2642 = vmatpush1.msra.mxu0 0.0
    %2643 = vmatprep.subr.mxu0 0.0
    %2644 = vmatpush1.msra.mxu0 0.0
    %2645 = vmatprep.subr.mxu0 0.0
    %2646 = vmatpush1.msra.mxu0 0.0
    %2647 = vmatprep.subr.mxu0 0.0
    %2648 = vmatpush1.msra.mxu0 0.0
    %2649 = vmatprep.subr.mxu0 0.0
    %2650 = vmatpush1.msra.mxu0 0.0
    %2651 = vmatprep.subr.mxu0 0.0
    %2652 = vmatpush1.msra.mxu0 0.0
    %2653 = vmatprep.subr.mxu0 0.0
    %2654 = vmatpush1.msra.mxu0 0.0
    %2655 = vmatprep.mubr.f32.mxu0 0.0
    %2656 = vmatmul.mubr.f32.gmra.mrb[0].mxu0 %v2589
    %v2657 = vpop.f32.mrb[0].mxu0
    %v2658 = vadd.f32 %v2586, %v2657
    %v2659 = vpop.f32.mrb[0].mxu0
    %2660 = vdwg.mxu0
    %vm2661 = vcmask 517120
    %2662 = vst.msk [vmem:[#allocation4] sm:$0x3] %vm2661, %v2658
    // Predicated region
    $region50: #{lofi_lstm_forward.1} parent=1 // pred_check
      _
    $region51: #{lofi_lstm_forward.1} parent=1 // pred_check_branch
      %2664 = sbr.rel (0) target = $region53
    $region52: #{lofi_lstm_forward.1} parent=1 // pred_region
      %s2666 = ssub.s32 32, 32
      %2667 = vsyncadd [#allocation5], %s2666
      %s2669 = sshll.u32 [#allocation4], 4
      %s2670 = int_to_ptr.vmem [resolvable:$true] %s2669
      %2672 = dma.vmem_to_hbm [thread:$0]  %s2670, 32, %s12, [#allocation5]
    $region53: #{lofi_lstm_forward.1} parent=1 // pred_fallthru
      _
    // Predicated region
    $region54: #{lofi_lstm_forward.1} parent=1 // pred_check
      _
    $region55: #{lofi_lstm_forward.1} parent=1 // pred_check_branch
      %2674 = sbr.rel (0) target = $region57
    $region56: #{lofi_lstm_forward.1} parent=1 // pred_region
      %2675 = dma.done [#allocation5], 32
    $region57: #{lofi_lstm_forward.1} parent=1 // pred_fallthru
      _
    %2676 = vsyncpa [#allocation5], 1

</llo_original>
